<compile_context>
chip_gen: v6e
topology: v6e:2x2x1
jax: 0.10.0
libtpu: 0.0.40
codegen_flags: <defaults>
</compile_context>

<pallas_src>
import functools

import jax
import jax.numpy as jnp
import numpy as np
from jax.experimental import pallas as pl
from jax.experimental.pallas import tpu as pltpu


def _round_up(a, b):
    return (a + b - 1) // b * b


def _convt_hardsig_kernel(w_ref, x_ref, o_ref, xs_ref, *, H, W, C, HALO):
    """One output tile.

    w_ref  : (4*C_out_p, 4*C)  packed block weight (resident, constant index)
    x_ref  : (C, X_in)         whole flattened zero-padded input (resident)
    o_ref  : (4*C_out_p, T)    output tile (parity-major rows, lane-dense)
    xs_ref : (4*C, T)          VMEM scratch holding the stacked shifted views
    """
    T = o_ref.shape[-1]
    T_win = T + HALO
    base = pl.multiple_of(pl.program_id(0) * T, 128)   # lane-aligned tile start

    # global flattened input index of every tile column
    t = base + jax.lax.broadcasted_iota(jnp.int32, (1, T), 1)
    row_ok = t < (H - 1) * W                     # input row i+1 exists
    if (W & (W - 1)) == 0:                       # power-of-two W: bit test
        col_ok = ((t + 1) & (W - 1)) != 0        # input col j+1 exists
    else:
        col_ok = ((t + 1) % W) != 0              # general W (vector rem)

    # aligned dynamic window: current tile + halo (halo columns are zeros /
    # boundary-masked, so the padded tail is safe)
    xw = x_ref[:, pl.ds(base, T_win)]            # (C, T + HALO)

    # assemble the 4 shifted views; boundary masks folded into the stores
    xs_ref[0 * C:1 * C, :] = xw[:, 0:T]                                  # x[i, j]
    xs_ref[1 * C:2 * C, :] = jnp.where(col_ok, xw[:, 1:T + 1], 0.0)      # x[i, j+1]
    xs_ref[2 * C:3 * C, :] = jnp.where(row_ok, xw[:, W:T + W], 0.0)      # x[i+1, j]
    xs_ref[3 * C:4 * C, :] = jnp.where(row_ok & col_ok,
                                       xw[:, W + 1:T + W + 1], 0.0)      # x[i+1, j+1]

    # single fused MXU matmul: (4*C_out_p, 4*C) @ (4*C, T)
    y = jax.lax.dot_general(
        w_ref[...], xs_ref[...],
        dimension_numbers=(((1,), (0,)), ((), ())),
        preferred_element_type=jnp.float32)

    # fused epilogue: (+3 literal bias) + (+3 from v2), clamp [0, 6], / 6
    y = y + 6.0
    o_ref[...] = (jnp.clip(y, 0.0, 6.0) * (1.0 / 6.0)).astype(o_ref.dtype)


def _num_output_tiles(T_full):
    """1 grid step on single-TC chips; 2 parallel tiles on 2-TC chips (v7x)."""
    try:
        kind = jax.devices()[0].device_kind.lower()
    except Exception:
        return 1
    two_cores = ("v7" in kind) or ("7x" in kind)
    if two_cores and T_full >= 512 and T_full % 256 == 0:
        return 2
    return 1


def model_forward(x_nchw, w_pt, *, num_tiles=None):
    """x_nchw: (1, C_in, H, W) f32; w_pt: (C_in, C_out, 3, 3) f32 (PyTorch
    conv_transpose2d weight layout). Returns (1, C_out, 2H, 2W) f32."""
    N, C_in, H, W = x_nchw.shape
    C_in_w, C_out, K, K2 = w_pt.shape
    assert N == 1 and C_in == C_in_w and K == 3 and K2 == 3
    HW = H * W

    C = _round_up(C_in, 8)            # sublane-aligned padded input channels
    C_out_p = _round_up(C_out, 8)     # sublane-aligned padded output channels
    T_full = _round_up(HW, 128)       # lane-aligned flattened output width
    HALO = _round_up(W + 1, 128)      # halo needed by the shift-by-(W+1) view

    if num_tiles is None:
        num_tiles = _num_output_tiles(T_full)
    if T_full % (num_tiles * 128) != 0:
        num_tiles = 1
    T = T_full // num_tiles
    X_in = T_full + HALO              # zero-padded input width incl. halo

    # -- glue: flatten + zero-pad the input ONCE; it stays resident in VMEM --
    x_flat = jnp.pad(x_nchw[0].reshape(C_in, HW).astype(jnp.float32),
                     ((0, C - C_in), (0, X_in - HW)))

    # -- glue: pack the 9 taps into one block weight W_big --------------------
    # w_k[kh, kw] is the (C_out, C_in) tap; block (parity p, shift s) of W_big
    # holds the tap mapping shifted view s to output parity p.
    # parity order: 0=ee, 1=eo, 2=oe, 3=oo; shift order: 0=x00,1=x01,2=x10,3=x11
    w_k = jnp.transpose(w_pt, (2, 3, 1, 0)).astype(jnp.float32)  # (3,3,Cout,Cin)
    TAPS = {(0, 0): (1, 1),
            (1, 1): (1, 0), (1, 0): (1, 2),
            (2, 2): (0, 1), (2, 0): (2, 1),
            (3, 3): (0, 0), (3, 2): (0, 2), (3, 1): (2, 0), (3, 0): (2, 2)}
    w_big = jnp.zeros((4 * C_out_p, 4 * C), jnp.float32)
    for (p, s), (kh, kw) in TAPS.items():
        w_big = w_big.at[p * C_out_p:p * C_out_p + C_out,
                         s * C:s * C + C_in].set(w_k[kh, kw])

    kernel = functools.partial(_convt_hardsig_kernel, H=H, W=W, C=C, HALO=HALO)
    out = pl.pallas_call(
        kernel,
        out_shape=jax.ShapeDtypeStruct((4 * C_out_p, T_full), jnp.float32),
        grid=(num_tiles,),
        in_specs=[
            # block weight: tiny, constant block (fetched once)
            pl.BlockSpec((4 * C_out_p, 4 * C), lambda i: (0, 0)),
            # whole input, constant block: single DMA, resident in VMEM
            pl.BlockSpec((C, X_in), lambda i: (0, 0)),
        ],
        out_specs=pl.BlockSpec((4 * C_out_p, T), lambda i: (0, i)),
        scratch_shapes=[pltpu.VMEM((4 * C, T), jnp.float32)],
        compiler_params=pltpu.CompilerParams(
            dimension_semantics=("parallel",)),
    )(w_big, x_flat)

    # -- glue: crop padding and interleave the 4 parity planes back to NCHW ---
    # TODO(synk): this XLA transpose is the one remaining non-kernel pass; a
    # consumer that accepts the parity-major (4*C_out, HW) slab could drop it.
    y = out[:, :HW].reshape(2, 2, C_out_p, H, W)[:, :, :C_out]   # [ph,pw,oc,i,j]
    y = jnp.transpose(y, (2, 3, 0, 4, 1)).reshape(C_out, 2 * H, 2 * W)
    return y[None]


def _reference(x_nchw, w_pt):
    """Plain-JAX reference: transposed conv via lhs-dilated conv + epilogue."""
    w_conv = jnp.transpose(w_pt, (1, 0, 2, 3))[:, :, ::-1, ::-1]  # OIHW, flipped
    y = jax.lax.conv_general_dilated(
        x_nchw, w_conv, window_strides=(1, 1),
        padding=((1, 2), (1, 2)), lhs_dilation=(2, 2),
        dimension_numbers=('NCHW', 'OIHW', 'NCHW'))
    y = y + 6.0
    return jnp.clip(y, 0.0, 6.0) / 6.0


if __name__ == "__main__":
    key = jax.random.PRNGKey(0)
    k1, k2, k3, k4 = jax.random.split(key, 4)

    # spec shapes: x1 (1, 3, 64, 64); weight (C_in=3, C_out=8, 3, 3)
    C_in, C_out, H, W = 3, 8, 64, 64
    x1 = jax.random.normal(k1, (1, C_in, H, W), dtype=jnp.float32)
    x2 = jax.random.normal(k2, (C_in, C_out, 3, 3), dtype=jnp.float32)

    out = jax.block_until_ready(model_forward(x1, x2))
    ref = jax.block_until_ready(_reference(x1, x2))
    assert out.shape == (1, C_out, 2 * H, 2 * W), out.shape
    np.testing.assert_allclose(np.asarray(out), np.asarray(ref),
                               rtol=1e-3, atol=1e-3)

    # small extra case exercising channel padding (C_in=5->8, C_out=6->8)
    x3 = jax.random.normal(k3, (1, 5, 16, 16), dtype=jnp.float32)
    x4 = jax.random.normal(k4, (5, 6, 3, 3), dtype=jnp.float32)
    out2 = jax.block_until_ready(model_forward(x3, x4))
    ref2 = jax.block_until_ready(_reference(x3, x4))
    assert out2.shape == (1, 6, 32, 32), out2.shape
    np.testing.assert_allclose(np.asarray(out2), np.asarray(ref2),
                               rtol=1e-3, atol=1e-3)

    print("KERNEL_OK")
</pallas_src>

<mosaic_0001>
module attributes {stable_mosaic.version = 11 : i64} {
  func.func @_convt_hardsig_kernel(%arg0: i32, %arg1: memref<32x32xf32, #tpu.memory_space<vmem>>, %arg2: memref<8x4224xf32, #tpu.memory_space<vmem>>, %arg3: memref<32x4096xf32, #tpu.memory_space<vmem>>, %arg4: memref<32x4096xf32, #tpu.memory_space<vmem>>) attributes {dimension_semantics = [#tpu.dimension_semantics<parallel>], iteration_bounds = array<i64: 1>, scalar_prefetch = 0 : i64, scratch_operands = 1 : i64, tpu.core_type = #tpu.core_type<tc>, window_params = [{pipeline_mode = #tpu.pipeline_mode<synchronous>, transform_indices = @transform_0, window_bounds = array<i64: 32, 32>}, {pipeline_mode = #tpu.pipeline_mode<synchronous>, transform_indices = @transform_1, window_bounds = array<i64: 8, 4224>}, {transform_indices = @transform_2, window_bounds = array<i64: 32, 4096>}]} {
    %c4096_i32 = arith.constant 4096 : i32
    %0 = arith.muli %arg0, %c4096_i32 : i32
    %1 = tpu.assume_multiple %0, 128 : i32
    %2 = tpu.iota {dimensions = array<i32: 1>} : vector<1x4096xi32>
    %3 = vector.broadcast %1 : i32 to vector<1x4096xi32>
    %4 = arith.addi %3, %2 : vector<1x4096xi32>
    %c4032_i32 = arith.constant 4032 : i32
    %5 = vector.broadcast %c4032_i32 : i32 to vector<1x4096xi32>
    %6 = arith.cmpi slt, %4, %5 : vector<1x4096xi32>
    %c1_i32 = arith.constant 1 : i32
    %7 = vector.broadcast %c1_i32 : i32 to vector<1x4096xi32>
    %8 = arith.addi %4, %7 : vector<1x4096xi32>
    %c63_i32 = arith.constant 63 : i32
    %9 = vector.broadcast %c63_i32 : i32 to vector<1x4096xi32>
    %10 = arith.andi %8, %9 : vector<1x4096xi32>
    %c0_i32 = arith.constant 0 : i32
    %11 = vector.broadcast %c0_i32 : i32 to vector<1x4096xi32>
    %12 = arith.cmpi ne, %10, %11 : vector<1x4096xi32>
    %c0 = arith.constant 0 : index
    %13 = arith.index_cast %1 : i32 to index
    %14 = vector.load %arg2[%c0, %13] : memref<8x4224xf32, #tpu.memory_space<vmem>>, vector<8x4224xf32>
    %15 = vector.extract_strided_slice %14 {offsets = [0, 0], sizes = [8, 4096], strides = [1, 1]} : vector<8x4224xf32> to vector<8x4096xf32>
    %c0_0 = arith.constant 0 : index
    %c0_1 = arith.constant 0 : index
    %16 = vector.load %arg4[%c0_0, %c0_1] : memref<32x4096xf32, #tpu.memory_space<vmem>>, vector<8x4096xf32>
    tpu.vector_store %arg4[%c0_0, %c0_1], %15 {strides = array<i32>} : memref<32x4096xf32, #tpu.memory_space<vmem>>, vector<8x4096xf32>,
    %17 = vector.extract_strided_slice %14 {offsets = [0, 1], sizes = [8, 4096], strides = [1, 1]} : vector<8x4224xf32> to vector<8x4096xf32>
    %cst = arith.constant 0.000000e+00 : f32
    %18 = vector.shape_cast %12 : vector<1x4096xi1> to vector<1x4096xi1>
    %19 = vector.broadcast %18 : vector<1x4096xi1> to vector<8x4096xi1>
    %20 = vector.broadcast %cst : f32 to vector<8x4096xf32>
    %21 = arith.select %19, %17, %20 : vector<8x4096xi1>, vector<8x4096xf32>
    %c8 = arith.constant 8 : index
    %c0_2 = arith.constant 0 : index
    %22 = vector.load %arg4[%c8, %c0_2] : memref<32x4096xf32, #tpu.memory_space<vmem>>, vector<8x4096xf32>
    tpu.vector_store %arg4[%c8, %c0_2], %21 {strides = array<i32>} : memref<32x4096xf32, #tpu.memory_space<vmem>>, vector<8x4096xf32>,
    %23 = vector.extract_strided_slice %14 {offsets = [0, 64], sizes = [8, 4096], strides = [1, 1]} : vector<8x4224xf32> to vector<8x4096xf32>
    %cst_3 = arith.constant 0.000000e+00 : f32
    %24 = vector.shape_cast %6 : vector<1x4096xi1> to vector<1x4096xi1>
    %25 = vector.broadcast %24 : vector<1x4096xi1> to vector<8x4096xi1>
    %26 = vector.broadcast %cst_3 : f32 to vector<8x4096xf32>
    %27 = arith.select %25, %23, %26 : vector<8x4096xi1>, vector<8x4096xf32>
    %c16 = arith.constant 16 : index
    %c0_4 = arith.constant 0 : index
    %28 = vector.load %arg4[%c16, %c0_4] : memref<32x4096xf32, #tpu.memory_space<vmem>>, vector<8x4096xf32>
    tpu.vector_store %arg4[%c16, %c0_4], %27 {strides = array<i32>} : memref<32x4096xf32, #tpu.memory_space<vmem>>, vector<8x4096xf32>,
    %29 = arith.andi %6, %12 : vector<1x4096xi1>
    %30 = vector.extract_strided_slice %14 {offsets = [0, 65], sizes = [8, 4096], strides = [1, 1]} : vector<8x4224xf32> to vector<8x4096xf32>
    %cst_5 = arith.constant 0.000000e+00 : f32
    %31 = vector.shape_cast %29 : vector<1x4096xi1> to vector<1x4096xi1>
    %32 = vector.broadcast %31 : vector<1x4096xi1> to vector<8x4096xi1>
    %33 = vector.broadcast %cst_5 : f32 to vector<8x4096xf32>
    %34 = arith.select %32, %30, %33 : vector<8x4096xi1>, vector<8x4096xf32>
    %c24 = arith.constant 24 : index
    %c0_6 = arith.constant 0 : index
    %35 = vector.load %arg4[%c24, %c0_6] : memref<32x4096xf32, #tpu.memory_space<vmem>>, vector<8x4096xf32>
    tpu.vector_store %arg4[%c24, %c0_6], %34 {strides = array<i32>} : memref<32x4096xf32, #tpu.memory_space<vmem>>, vector<8x4096xf32>,
    %c0_7 = arith.constant 0 : index
    %c0_8 = arith.constant 0 : index
    %36 = vector.load %arg1[%c0_7, %c0_8] : memref<32x32xf32, #tpu.memory_space<vmem>>, vector<32x32xf32>
    %c0_9 = arith.constant 0 : index
    %c0_10 = arith.constant 0 : index
    %37 = vector.load %arg4[%c0_9, %c0_10] : memref<32x4096xf32, #tpu.memory_space<vmem>>, vector<32x4096xf32>
    %cst_11 = arith.constant dense<0.000000e+00> : vector<32x4096xf32>
    %38 = tpu.matmul %36, %37, %cst_11 {dimension_numbers = #tpu.dot_dimension_numbers<[1], [0], [0], [1], [0, 0, 1, 1], [], []>} : vector<32x32xf32>, vector<32x4096xf32>, vector<32x4096xf32> -> vector<32x4096xf32>
    %cst_12 = arith.constant 6.000000e+00 : f32
    %39 = vector.broadcast %cst_12 : f32 to vector<32x4096xf32>
    %40 = arith.addf %38, %39 : vector<32x4096xf32>
    %cst_13 = arith.constant 0.000000e+00 : f32
    %cst_14 = arith.constant 6.000000e+00 : f32
    %41 = vector.broadcast %cst_13 : f32 to vector<32x4096xf32>
    %42 = arith.maximumf %41, %40 : vector<32x4096xf32>
    %43 = vector.broadcast %cst_14 : f32 to vector<32x4096xf32>
    %44 = arith.minimumf %43, %42 : vector<32x4096xf32>
    %cst_15 = arith.constant 0.166666672 : f32
    %45 = vector.broadcast %cst_15 : f32 to vector<32x4096xf32>
    %46 = arith.mulf %44, %45 : vector<32x4096xf32>
    %c0_16 = arith.constant 0 : index
    %c0_17 = arith.constant 0 : index
    %47 = vector.load %arg3[%c0_16, %c0_17] : memref<32x4096xf32, #tpu.memory_space<vmem>>, vector<32x4096xf32>
    tpu.vector_store %arg3[%c0_16, %c0_17], %46 {strides = array<i32>} : memref<32x4096xf32, #tpu.memory_space<vmem>>, vector<32x4096xf32>,
    return
  }
  func.func @transform_0(%arg0: i32) -> (i32, i32) {
    %c0_i32 = arith.constant 0 : i32
    %c0_i32_0 = arith.constant 0 : i32
    %c0_i32_1 = arith.constant 0 : i32
    return %c0_i32, %c0_i32_0 : i32, i32
  }
  func.func @transform_1(%arg0: i32) -> (i32, i32) {
    %c0_i32 = arith.constant 0 : i32
    %c0_i32_0 = arith.constant 0 : i32
    %c0_i32_1 = arith.constant 0 : i32
    return %c0_i32, %c0_i32_0 : i32, i32
  }
  func.func @transform_2(%arg0: i32) -> (i32, i32) {
    %c0_i32 = arith.constant 0 : i32
    %c0_i32_0 = arith.constant 0 : i32
    return %c0_i32, %arg0 : i32, i32
  }
}

</mosaic_0001>

<llo_original>
// kernel: tpu_custom_call.1
$region0: #{tpu_custom_call.1}
  #allocation0 [shape = 'u32[]', space=smem, size = 0x4, offset = 0x4, fixed_abs, tag = 'smem constant byte address 0x4 - core index']
  #allocation1 [shape = 'u32[144,128]{1,0:T(1,128)}', space=vmem, size = 0x12000, scoped, tag = 'internal scratch']
  #allocation2 [shape = 'f32[32,4096]{1,0:T(8,128)}', space=vmem, size = 0x80000, scoped, tag = 'scratch operand']
  %s0 = inlined_call_operand.hbm [shape: f32[32,32], index: 0, kind: input, shape index: {}]
  %s1 = inlined_call_operand.hbm [shape: f32[8,4224], index: 1, kind: input, shape index: {}]
  %s2 = inlined_call_operand.hbm [shape: f32[32,4096], index: 2, kind: output, shape index: {}]
  %s3 = sld [smem:[#allocation0]]
  $region26: #{tpu_custom_call.1} parent=0
    _
  %s5 = ssub.s32 1, %s3
  %s6 = scalar_select 0, %s5, %s3
  $region1: #{tpu_custom_call.1} parent=0
    #allocation3 [shape = 'u8[16384]{0}', space=vmem, size = 0x4000, scoped, tag = 'input window, operand 0, single buffered']
    #allocation4 [shape = 's32[1]{0}', space=sflag, size = 0x4, scoped, tag = 'scoped memory for tpu_custom_call.1']
    #allocation5 [shape = 's32[1]{0}', space=sflag, size = 0x4, scoped, tag = 'scoped memory for tpu_custom_call.1']
    #allocation6 [shape = 'u8[135168]{0}', space=vmem, size = 0x21000, scoped, tag = 'input window, operand 1, single buffered']
    #allocation7 [shape = 's32[1]{0}', space=sflag, size = 0x4, scoped, tag = 'scoped memory for tpu_custom_call.1']
    #allocation8 [shape = 'u8[524288]{0}', space=vmem, size = 0x80000, scoped, tag = 'output window, operand 0, single buffered']
    %7 = vsyncpa [#allocation4], 0
    %8 = vsyncpa [#allocation7], 0
    %9 = vsyncpa [#allocation5], 0
    // Predicated region
    $region2: #{tpu_custom_call.1} parent=1 // pred_check
      _
    $region3: #{tpu_custom_call.1} parent=1 // pred_check_branch
      %11 = sbr.rel (0) target = $region5
    $region4: #{tpu_custom_call.1} parent=1 // pred_region
      %s13 = ssub.s32 512, 512
      %14 = vsyncadd [#allocation4], %s13
      %s15 = sshll.u32 [#allocation3], 4
      %s16 = int_to_ptr.vmem [resolvable:$true] %s15
      %21 = dma.hbm_to_vmem [thread:$0]  %s0, 512, %s16, [#allocation4], 128, 128, 8
    $region5: #{tpu_custom_call.1} parent=1 // pred_fallthru
      _
    // Predicated region
    $region6: #{tpu_custom_call.1} parent=1 // pred_check
      _
    $region7: #{tpu_custom_call.1} parent=1 // pred_check_branch
      %23 = sbr.rel (0) target = $region9
    $region8: #{tpu_custom_call.1} parent=1 // pred_region
      %s25 = ssub.s32 4224, 4224
      %26 = vsyncadd [#allocation7], %s25
      %s28 = sshll.u32 [#allocation6], 4
      %s29 = int_to_ptr.vmem [resolvable:$true] %s28
      %31 = dma.hbm_to_vmem [thread:$0]  %s1, 4224, %s29, [#allocation7]
    $region9: #{tpu_custom_call.1} parent=1 // pred_fallthru
      _
    // Predicated region
    $region10: #{tpu_custom_call.1} parent=1 // pred_check
      _
    $region11: #{tpu_custom_call.1} parent=1 // pred_check_branch
      %33 = sbr.rel (0) target = $region13
    $region12: #{tpu_custom_call.1} parent=1 // pred_region
      %34 = dma.done [#allocation4], 512
    $region13: #{tpu_custom_call.1} parent=1 // pred_fallthru
      _
    // Predicated region
    $region14: #{tpu_custom_call.1} parent=1 // pred_check
      _
    $region15: #{tpu_custom_call.1} parent=1 // pred_check_branch
      %36 = sbr.rel (0) target = $region17
    $region16: #{tpu_custom_call.1} parent=1 // pred_region
      %37 = dma.done [#allocation7], 4224
    $region17: #{tpu_custom_call.1} parent=1 // pred_fallthru
      _
    %s38 = smul.u32 0, 4096
    %v39 = vlaneseq
    %v40 = vand.u32 %v39, 127
    %v41 = vadd.s32 %v40, 128
    %v42 = vadd.s32 %v40, 256
    %v43 = vadd.s32 %v40, 384
    %v44 = vadd.s32 %v40, 512
    %v45 = vadd.s32 %v40, 640
    %v46 = vadd.s32 %v40, 768
    %v47 = vadd.s32 %v40, 896
    %v48 = vadd.s32 %v40, 1024
    %v49 = vadd.s32 %v40, 1152
    %v50 = vadd.s32 %v40, 1280
    %v51 = vadd.s32 %v40, 1408
    %v52 = vadd.s32 %v40, 1536
    %v53 = vadd.s32 %v40, 1664
    %v54 = vadd.s32 %v40, 1792
    %v55 = vadd.s32 %v40, 1920
    %v56 = vadd.s32 %v40, 2048
    %v57 = vadd.s32 %v40, 2176
    %v58 = vadd.s32 %v40, 2304
    %v59 = vadd.s32 %v40, 2432
    %v60 = vadd.s32 %v40, 2560
    %v61 = vadd.s32 %v40, 2688
    %v62 = vadd.s32 %v40, 2816
    %v63 = vadd.s32 %v40, 2944
    %v64 = vadd.s32 %v40, 3072
    %v65 = vadd.s32 %v40, 3200
    %v66 = vadd.s32 %v40, 3328
    %v67 = vadd.s32 %v40, 3456
    %v68 = vadd.s32 %v40, 3584
    %v69 = vadd.s32 %v40, 3712
    %v70 = vadd.s32 %v40, 3840
    %v71 = vadd.s32 %v40, 3968
    %v72 = vstv %s38
    %v73 = vadd.s32 %v72, %v40
    %v74 = vadd.s32 %v72, %v41
    %v75 = vadd.s32 %v72, %v42
    %v76 = vadd.s32 %v72, %v43
    %v77 = vadd.s32 %v72, %v44
    %v78 = vadd.s32 %v72, %v45
    %v79 = vadd.s32 %v72, %v46
    %v80 = vadd.s32 %v72, %v47
    %v81 = vadd.s32 %v72, %v48
    %v82 = vadd.s32 %v72, %v49
    %v83 = vadd.s32 %v72, %v50
    %v84 = vadd.s32 %v72, %v51
    %v85 = vadd.s32 %v72, %v52
    %v86 = vadd.s32 %v72, %v53
    %v87 = vadd.s32 %v72, %v54
    %v88 = vadd.s32 %v72, %v55
    %v89 = vadd.s32 %v72, %v56
    %v90 = vadd.s32 %v72, %v57
    %v91 = vadd.s32 %v72, %v58
    %v92 = vadd.s32 %v72, %v59
    %v93 = vadd.s32 %v72, %v60
    %v94 = vadd.s32 %v72, %v61
    %v95 = vadd.s32 %v72, %v62
    %v96 = vadd.s32 %v72, %v63
    %v97 = vadd.s32 %v72, %v64
    %v98 = vadd.s32 %v72, %v65
    %v99 = vadd.s32 %v72, %v66
    %v100 = vadd.s32 %v72, %v67
    %v101 = vadd.s32 %v72, %v68
    %v102 = vadd.s32 %v72, %v69
    %v103 = vadd.s32 %v72, %v70
    %v104 = vadd.s32 %v72, %v71
    %vm105 = vcmp.lt.s32.totalorder %v73, 4032
    %vm106 = vcmp.lt.s32.totalorder %v74, 4032
    %vm107 = vcmp.lt.s32.totalorder %v75, 4032
    %vm108 = vcmp.lt.s32.totalorder %v76, 4032
    %vm109 = vcmp.lt.s32.totalorder %v77, 4032
    %vm110 = vcmp.lt.s32.totalorder %v78, 4032
    %vm111 = vcmp.lt.s32.totalorder %v79, 4032
    %vm112 = vcmp.lt.s32.totalorder %v80, 4032
    %vm113 = vcmp.lt.s32.totalorder %v81, 4032
    %vm114 = vcmp.lt.s32.totalorder %v82, 4032
    %vm115 = vcmp.lt.s32.totalorder %v83, 4032
    %vm116 = vcmp.lt.s32.totalorder %v84, 4032
    %vm117 = vcmp.lt.s32.totalorder %v85, 4032
    %vm118 = vcmp.lt.s32.totalorder %v86, 4032
    %vm119 = vcmp.lt.s32.totalorder %v87, 4032
    %vm120 = vcmp.lt.s32.totalorder %v88, 4032
    %vm121 = vcmp.lt.s32.totalorder %v89, 4032
    %vm122 = vcmp.lt.s32.totalorder %v90, 4032
    %vm123 = vcmp.lt.s32.totalorder %v91, 4032
    %vm124 = vcmp.lt.s32.totalorder %v92, 4032
    %vm125 = vcmp.lt.s32.totalorder %v93, 4032
    %vm126 = vcmp.lt.s32.totalorder %v94, 4032
    %vm127 = vcmp.lt.s32.totalorder %v95, 4032
    %vm128 = vcmp.lt.s32.totalorder %v96, 4032
    %vm129 = vcmp.lt.s32.totalorder %v97, 4032
    %vm130 = vcmp.lt.s32.totalorder %v98, 4032
    %vm131 = vcmp.lt.s32.totalorder %v99, 4032
    %vm132 = vcmp.lt.s32.totalorder %v100, 4032
    %vm133 = vcmp.lt.s32.totalorder %v101, 4032
    %vm134 = vcmp.lt.s32.totalorder %v102, 4032
    %vm135 = vcmp.lt.s32.totalorder %v103, 4032
    %vm136 = vcmp.lt.s32.totalorder %v104, 4032
    %v137 = vadd.s32 %v73, 1
    %v138 = vadd.s32 %v74, 1
    %v139 = vadd.s32 %v75, 1
    %v140 = vadd.s32 %v76, 1
    %v141 = vadd.s32 %v77, 1
    %v142 = vadd.s32 %v78, 1
    %v143 = vadd.s32 %v79, 1
    %v144 = vadd.s32 %v80, 1
    %v145 = vadd.s32 %v81, 1
    %v146 = vadd.s32 %v82, 1
    %v147 = vadd.s32 %v83, 1
    %v148 = vadd.s32 %v84, 1
    %v149 = vadd.s32 %v85, 1
    %v150 = vadd.s32 %v86, 1
    %v151 = vadd.s32 %v87, 1
    %v152 = vadd.s32 %v88, 1
    %v153 = vadd.s32 %v89, 1
    %v154 = vadd.s32 %v90, 1
    %v155 = vadd.s32 %v91, 1
    %v156 = vadd.s32 %v92, 1
    %v157 = vadd.s32 %v93, 1
    %v158 = vadd.s32 %v94, 1
    %v159 = vadd.s32 %v95, 1
    %v160 = vadd.s32 %v96, 1
    %v161 = vadd.s32 %v97, 1
    %v162 = vadd.s32 %v98, 1
    %v163 = vadd.s32 %v99, 1
    %v164 = vadd.s32 %v100, 1
    %v165 = vadd.s32 %v101, 1
    %v166 = vadd.s32 %v102, 1
    %v167 = vadd.s32 %v103, 1
    %v168 = vadd.s32 %v104, 1
    %v169 = vand.u32 %v137, 63
    %v170 = vand.u32 %v138, 63
    %v171 = vand.u32 %v139, 63
    %v172 = vand.u32 %v140, 63
    %v173 = vand.u32 %v141, 63
    %v174 = vand.u32 %v142, 63
    %v175 = vand.u32 %v143, 63
    %v176 = vand.u32 %v144, 63
    %v177 = vand.u32 %v145, 63
    %v178 = vand.u32 %v146, 63
    %v179 = vand.u32 %v147, 63
    %v180 = vand.u32 %v148, 63
    %v181 = vand.u32 %v149, 63
    %v182 = vand.u32 %v150, 63
    %v183 = vand.u32 %v151, 63
    %v184 = vand.u32 %v152, 63
    %v185 = vand.u32 %v153, 63
    %v186 = vand.u32 %v154, 63
    %v187 = vand.u32 %v155, 63
    %v188 = vand.u32 %v156, 63
    %v189 = vand.u32 %v157, 63
    %v190 = vand.u32 %v158, 63
    %v191 = vand.u32 %v159, 63
    %v192 = vand.u32 %v160, 63
    %v193 = vand.u32 %v161, 63
    %v194 = vand.u32 %v162, 63
    %v195 = vand.u32 %v163, 63
    %v196 = vand.u32 %v164, 63
    %v197 = vand.u32 %v165, 63
    %v198 = vand.u32 %v166, 63
    %v199 = vand.u32 %v167, 63
    %v200 = vand.u32 %v168, 63
    %vm201 = vcmp.ne.s32.totalorder %v169, 0
    %vm202 = vcmp.ne.s32.totalorder %v170, 0
    %vm203 = vcmp.ne.s32.totalorder %v171, 0
    %vm204 = vcmp.ne.s32.totalorder %v172, 0
    %vm205 = vcmp.ne.s32.totalorder %v173, 0
    %vm206 = vcmp.ne.s32.totalorder %v174, 0
    %vm207 = vcmp.ne.s32.totalorder %v175, 0
    %vm208 = vcmp.ne.s32.totalorder %v176, 0
    %vm209 = vcmp.ne.s32.totalorder %v177, 0
    %vm210 = vcmp.ne.s32.totalorder %v178, 0
    %vm211 = vcmp.ne.s32.totalorder %v179, 0
    %vm212 = vcmp.ne.s32.totalorder %v180, 0
    %vm213 = vcmp.ne.s32.totalorder %v181, 0
    %vm214 = vcmp.ne.s32.totalorder %v182, 0
    %vm215 = vcmp.ne.s32.totalorder %v183, 0
    %vm216 = vcmp.ne.s32.totalorder %v184, 0
    %vm217 = vcmp.ne.s32.totalorder %v185, 0
    %vm218 = vcmp.ne.s32.totalorder %v186, 0
    %vm219 = vcmp.ne.s32.totalorder %v187, 0
    %vm220 = vcmp.ne.s32.totalorder %v188, 0
    %vm221 = vcmp.ne.s32.totalorder %v189, 0
    %vm222 = vcmp.ne.s32.totalorder %v190, 0
    %vm223 = vcmp.ne.s32.totalorder %v191, 0
    %vm224 = vcmp.ne.s32.totalorder %v192, 0
    %vm225 = vcmp.ne.s32.totalorder %v193, 0
    %vm226 = vcmp.ne.s32.totalorder %v194, 0
    %vm227 = vcmp.ne.s32.totalorder %v195, 0
    %vm228 = vcmp.ne.s32.totalorder %v196, 0
    %vm229 = vcmp.ne.s32.totalorder %v197, 0
    %vm230 = vcmp.ne.s32.totalorder %v198, 0
    %vm231 = vcmp.ne.s32.totalorder %v199, 0
    %vm232 = vcmp.ne.s32.totalorder %v200, 0
    %s233 = sshra.s32 %s38, 7
    %s234 = sand.u32 %s38, 127
    %s235 = smul.addr %s233, 8
    %s236 = scalar_lea.vmem [#allocation6], %s235
    %v237 = vld [vmem:[%s236] sm:$0xff]
    %v238 = vld [vmem:[%s236 + $0x8] sm:$0xff]
    %v239 = vld [vmem:[%s236 + $0x10] sm:$0xff]
    %v240 = vld [vmem:[%s236 + $0x18] sm:$0xff]
    %v241 = vld [vmem:[%s236 + $0x20] sm:$0xff]
    %v242 = vld [vmem:[%s236 + $0x28] sm:$0xff]
    %v243 = vld [vmem:[%s236 + $0x30] sm:$0xff]
    %v244 = vld [vmem:[%s236 + $0x38] sm:$0xff]
    %v245 = vld [vmem:[%s236 + $0x40] sm:$0xff]
    %v246 = vld [vmem:[%s236 + $0x48] sm:$0xff]
    %v247 = vld [vmem:[%s236 + $0x50] sm:$0xff]
    %v248 = vld [vmem:[%s236 + $0x58] sm:$0xff]
    %v249 = vld [vmem:[%s236 + $0x60] sm:$0xff]
    %v250 = vld [vmem:[%s236 + $0x68] sm:$0xff]
    %v251 = vld [vmem:[%s236 + $0x70] sm:$0xff]
    %v252 = vld [vmem:[%s236 + $0x78] sm:$0xff]
    %v253 = vld [vmem:[%s236 + $0x80] sm:$0xff]
    %v254 = vld [vmem:[%s236 + $0x88] sm:$0xff]
    %v255 = vld [vmem:[%s236 + $0x90] sm:$0xff]
    %v256 = vld [vmem:[%s236 + $0x98] sm:$0xff]
    %v257 = vld [vmem:[%s236 + $0xa0] sm:$0xff]
    %v258 = vld [vmem:[%s236 + $0xa8] sm:$0xff]
    %v259 = vld [vmem:[%s236 + $0xb0] sm:$0xff]
    %v260 = vld [vmem:[%s236 + $0xb8] sm:$0xff]
    %v261 = vld [vmem:[%s236 + $0xc0] sm:$0xff]
    %v262 = vld [vmem:[%s236 + $0xc8] sm:$0xff]
    %v263 = vld [vmem:[%s236 + $0xd0] sm:$0xff]
    %v264 = vld [vmem:[%s236 + $0xd8] sm:$0xff]
    %v265 = vld [vmem:[%s236 + $0xe0] sm:$0xff]
    %v266 = vld [vmem:[%s236 + $0xe8] sm:$0xff]
    %v267 = vld [vmem:[%s236 + $0xf0] sm:$0xff]
    %v268 = vld [vmem:[%s236 + $0xf8] sm:$0xff]
    %v269 = vld [vmem:[%s236 + $0x100] sm:$0xff]
    %270 = vst [vmem:[#allocation2] sm:$0xff] %v237
    %271 = vst [vmem:[#allocation2 + $0x8] sm:$0xff] %v238
    %272 = vst [vmem:[#allocation2 + $0x10] sm:$0xff] %v239
    %273 = vst [vmem:[#allocation2 + $0x18] sm:$0xff] %v240
    %274 = vst [vmem:[#allocation2 + $0x20] sm:$0xff] %v241
    %275 = vst [vmem:[#allocation2 + $0x28] sm:$0xff] %v242
    %276 = vst [vmem:[#allocation2 + $0x30] sm:$0xff] %v243
    %277 = vst [vmem:[#allocation2 + $0x38] sm:$0xff] %v244
    %278 = vst [vmem:[#allocation2 + $0x40] sm:$0xff] %v245
    %279 = vst [vmem:[#allocation2 + $0x48] sm:$0xff] %v246
    %280 = vst [vmem:[#allocation2 + $0x50] sm:$0xff] %v247
    %281 = vst [vmem:[#allocation2 + $0x58] sm:$0xff] %v248
    %282 = vst [vmem:[#allocation2 + $0x60] sm:$0xff] %v249
    %283 = vst [vmem:[#allocation2 + $0x68] sm:$0xff] %v250
    %284 = vst [vmem:[#allocation2 + $0x70] sm:$0xff] %v251
    %285 = vst [vmem:[#allocation2 + $0x78] sm:$0xff] %v252
    %286 = vst [vmem:[#allocation2 + $0x80] sm:$0xff] %v253
    %287 = vst [vmem:[#allocation2 + $0x88] sm:$0xff] %v254
    %288 = vst [vmem:[#allocation2 + $0x90] sm:$0xff] %v255
    %289 = vst [vmem:[#allocation2 + $0x98] sm:$0xff] %v256
    %290 = vst [vmem:[#allocation2 + $0xa0] sm:$0xff] %v257
    %291 = vst [vmem:[#allocation2 + $0xa8] sm:$0xff] %v258
    %292 = vst [vmem:[#allocation2 + $0xb0] sm:$0xff] %v259
    %293 = vst [vmem:[#allocation2 + $0xb8] sm:$0xff] %v260
    %294 = vst [vmem:[#allocation2 + $0xc0] sm:$0xff] %v261
    %295 = vst [vmem:[#allocation2 + $0xc8] sm:$0xff] %v262
    %296 = vst [vmem:[#allocation2 + $0xd0] sm:$0xff] %v263
    %297 = vst [vmem:[#allocation2 + $0xd8] sm:$0xff] %v264
    %298 = vst [vmem:[#allocation2 + $0xe0] sm:$0xff] %v265
    %299 = vst [vmem:[#allocation2 + $0xe8] sm:$0xff] %v266
    %300 = vst [vmem:[#allocation2 + $0xf0] sm:$0xff] %v267
    %301 = vst [vmem:[#allocation2 + $0xf8] sm:$0xff] %v268
    %v302 = vsel %vm201, 1, 0
    %v303 = vsel %vm202, 1, 0
    %v304 = vsel %vm203, 1, 0
    %v305 = vsel %vm204, 1, 0
    %v306 = vsel %vm205, 1, 0
    %v307 = vsel %vm206, 1, 0
    %v308 = vsel %vm207, 1, 0
    %v309 = vsel %vm208, 1, 0
    %v310 = vsel %vm209, 1, 0
    %v311 = vsel %vm210, 1, 0
    %v312 = vsel %vm211, 1, 0
    %v313 = vsel %vm212, 1, 0
    %v314 = vsel %vm213, 1, 0
    %v315 = vsel %vm214, 1, 0
    %v316 = vsel %vm215, 1, 0
    %v317 = vsel %vm216, 1, 0
    %v318 = vsel %vm217, 1, 0
    %v319 = vsel %vm218, 1, 0
    %v320 = vsel %vm219, 1, 0
    %v321 = vsel %vm220, 1, 0
    %v322 = vsel %vm221, 1, 0
    %v323 = vsel %vm222, 1, 0
    %v324 = vsel %vm223, 1, 0
    %v325 = vsel %vm224, 1, 0
    %v326 = vsel %vm225, 1, 0
    %v327 = vsel %vm226, 1, 0
    %v328 = vsel %vm227, 1, 0
    %v329 = vsel %vm228, 1, 0
    %v330 = vsel %vm229, 1, 0
    %v331 = vsel %vm230, 1, 0
    %v332 = vsel %vm231, 1, 0
    %v333 = vsel %vm232, 1, 0
    %vm334 = vcmp.eq.s32.totalorder %v302, 1
    %vm335 = vcmp.eq.s32.totalorder %v303, 1
    %vm336 = vcmp.eq.s32.totalorder %v304, 1
    %vm337 = vcmp.eq.s32.totalorder %v305, 1
    %vm338 = vcmp.eq.s32.totalorder %v306, 1
    %vm339 = vcmp.eq.s32.totalorder %v307, 1
    %vm340 = vcmp.eq.s32.totalorder %v308, 1
    %vm341 = vcmp.eq.s32.totalorder %v309, 1
    %vm342 = vcmp.eq.s32.totalorder %v310, 1
    %vm343 = vcmp.eq.s32.totalorder %v311, 1
    %vm344 = vcmp.eq.s32.totalorder %v312, 1
    %vm345 = vcmp.eq.s32.totalorder %v313, 1
    %vm346 = vcmp.eq.s32.totalorder %v314, 1
    %vm347 = vcmp.eq.s32.totalorder %v315, 1
    %vm348 = vcmp.eq.s32.totalorder %v316, 1
    %vm349 = vcmp.eq.s32.totalorder %v317, 1
    %vm350 = vcmp.eq.s32.totalorder %v318, 1
    %vm351 = vcmp.eq.s32.totalorder %v319, 1
    %vm352 = vcmp.eq.s32.totalorder %v320, 1
    %vm353 = vcmp.eq.s32.totalorder %v321, 1
    %vm354 = vcmp.eq.s32.totalorder %v322, 1
    %vm355 = vcmp.eq.s32.totalorder %v323, 1
    %vm356 = vcmp.eq.s32.totalorder %v324, 1
    %vm357 = vcmp.eq.s32.totalorder %v325, 1
    %vm358 = vcmp.eq.s32.totalorder %v326, 1
    %vm359 = vcmp.eq.s32.totalorder %v327, 1
    %vm360 = vcmp.eq.s32.totalorder %v328, 1
    %vm361 = vcmp.eq.s32.totalorder %v329, 1
    %vm362 = vcmp.eq.s32.totalorder %v330, 1
    %vm363 = vcmp.eq.s32.totalorder %v331, 1
    %vm364 = vcmp.eq.s32.totalorder %v332, 1
    %vm365 = vcmp.eq.s32.totalorder %v333, 1
    %399 = vrot.lane.b32.xlu0 %v237, 127
    %v400 = vpop.permute.xlu0 %399
    %401 = vrot.lane.b32.xlu0 %v238, 127
    %v402 = vpop.permute.xlu0 %401
    %403 = vrot.lane.b32.xlu0 %v239, 127
    %v404 = vpop.permute.xlu0 %403
    %405 = vrot.lane.b32.xlu0 %v240, 127
    %v406 = vpop.permute.xlu0 %405
    %407 = vrot.lane.b32.xlu0 %v241, 127
    %v408 = vpop.permute.xlu0 %407
    %409 = vrot.lane.b32.xlu0 %v242, 127
    %v410 = vpop.permute.xlu0 %409
    %411 = vrot.lane.b32.xlu0 %v243, 127
    %v412 = vpop.permute.xlu0 %411
    %413 = vrot.lane.b32.xlu0 %v244, 127
    %v414 = vpop.permute.xlu0 %413
    %415 = vrot.lane.b32.xlu0 %v245, 127
    %v416 = vpop.permute.xlu0 %415
    %417 = vrot.lane.b32.xlu0 %v246, 127
    %v418 = vpop.permute.xlu0 %417
    %419 = vrot.lane.b32.xlu0 %v247, 127
    %v420 = vpop.permute.xlu0 %419
    %421 = vrot.lane.b32.xlu0 %v248, 127
    %v422 = vpop.permute.xlu0 %421
    %423 = vrot.lane.b32.xlu0 %v249, 127
    %v424 = vpop.permute.xlu0 %423
    %425 = vrot.lane.b32.xlu0 %v250, 127
    %v426 = vpop.permute.xlu0 %425
    %427 = vrot.lane.b32.xlu0 %v251, 127
    %v428 = vpop.permute.xlu0 %427
    %429 = vrot.lane.b32.xlu0 %v252, 127
    %v430 = vpop.permute.xlu0 %429
    %431 = vrot.lane.b32.xlu0 %v253, 127
    %v432 = vpop.permute.xlu0 %431
    %433 = vrot.lane.b32.xlu0 %v254, 127
    %v434 = vpop.permute.xlu0 %433
    %435 = vrot.lane.b32.xlu0 %v255, 127
    %v436 = vpop.permute.xlu0 %435
    %437 = vrot.lane.b32.xlu0 %v256, 127
    %v438 = vpop.permute.xlu0 %437
    %439 = vrot.lane.b32.xlu0 %v257, 127
    %v440 = vpop.permute.xlu0 %439
    %441 = vrot.lane.b32.xlu0 %v258, 127
    %v442 = vpop.permute.xlu0 %441
    %443 = vrot.lane.b32.xlu0 %v259, 127
    %v444 = vpop.permute.xlu0 %443
    %445 = vrot.lane.b32.xlu0 %v260, 127
    %v446 = vpop.permute.xlu0 %445
    %447 = vrot.lane.b32.xlu0 %v261, 127
    %v448 = vpop.permute.xlu0 %447
    %449 = vrot.lane.b32.xlu0 %v262, 127
    %v450 = vpop.permute.xlu0 %449
    %451 = vrot.lane.b32.xlu0 %v263, 127
    %v452 = vpop.permute.xlu0 %451
    %453 = vrot.lane.b32.xlu0 %v264, 127
    %v454 = vpop.permute.xlu0 %453
    %455 = vrot.lane.b32.xlu0 %v265, 127
    %v456 = vpop.permute.xlu0 %455
    %457 = vrot.lane.b32.xlu0 %v266, 127
    %v458 = vpop.permute.xlu0 %457
    %459 = vrot.lane.b32.xlu0 %v267, 127
    %v460 = vpop.permute.xlu0 %459
    %461 = vrot.lane.b32.xlu0 %v268, 127
    %v462 = vpop.permute.xlu0 %461
    %463 = vrot.lane.b32.xlu0 %v269, 127
    %v464 = vpop.permute.xlu0 %463
    %vm465 = vcmask 1039360
    %v466 = vsel %vm465, %v400, %v402
    %v467 = vsel %vm465, %v402, %v404
    %v468 = vsel %vm465, %v404, %v406
    %v469 = vsel %vm465, %v406, %v408
    %v470 = vsel %vm465, %v408, %v410
    %v471 = vsel %vm465, %v410, %v412
    %v472 = vsel %vm465, %v412, %v414
    %v473 = vsel %vm465, %v414, %v416
    %v474 = vsel %vm465, %v416, %v418
    %v475 = vsel %vm465, %v418, %v420
    %v476 = vsel %vm465, %v420, %v422
    %v477 = vsel %vm465, %v422, %v424
    %v478 = vsel %vm465, %v424, %v426
    %v479 = vsel %vm465, %v426, %v428
    %v480 = vsel %vm465, %v428, %v430
    %v481 = vsel %vm465, %v430, %v432
    %v482 = vsel %vm465, %v432, %v434
    %v483 = vsel %vm465, %v434, %v436
    %v484 = vsel %vm465, %v436, %v438
    %v485 = vsel %vm465, %v438, %v440
    %v486 = vsel %vm465, %v440, %v442
    %v487 = vsel %vm465, %v442, %v444
    %v488 = vsel %vm465, %v444, %v446
    %v489 = vsel %vm465, %v446, %v448
    %v490 = vsel %vm465, %v448, %v450
    %v491 = vsel %vm465, %v450, %v452
    %v492 = vsel %vm465, %v452, %v454
    %v493 = vsel %vm465, %v454, %v456
    %v494 = vsel %vm465, %v456, %v458
    %v495 = vsel %vm465, %v458, %v460
    %v496 = vsel %vm465, %v460, %v462
    %v497 = vsel %vm465, %v462, %v464
    %v530 = vsel %vm334, %v466, 0.0
    %v531 = vsel %vm335, %v467, 0.0
    %v532 = vsel %vm336, %v468, 0.0
    %v533 = vsel %vm337, %v469, 0.0
    %v534 = vsel %vm338, %v470, 0.0
    %v535 = vsel %vm339, %v471, 0.0
    %v536 = vsel %vm340, %v472, 0.0
    %v537 = vsel %vm341, %v473, 0.0
    %v538 = vsel %vm342, %v474, 0.0
    %v539 = vsel %vm343, %v475, 0.0
    %v540 = vsel %vm344, %v476, 0.0
    %v541 = vsel %vm345, %v477, 0.0
    %v542 = vsel %vm346, %v478, 0.0
    %v543 = vsel %vm347, %v479, 0.0
    %v544 = vsel %vm348, %v480, 0.0
    %v545 = vsel %vm349, %v481, 0.0
    %v546 = vsel %vm350, %v482, 0.0
    %v547 = vsel %vm351, %v483, 0.0
    %v548 = vsel %vm352, %v484, 0.0
    %v549 = vsel %vm353, %v485, 0.0
    %v550 = vsel %vm354, %v486, 0.0
    %v551 = vsel %vm355, %v487, 0.0
    %v552 = vsel %vm356, %v488, 0.0
    %v553 = vsel %vm357, %v489, 0.0
    %v554 = vsel %vm358, %v490, 0.0
    %v555 = vsel %vm359, %v491, 0.0
    %v556 = vsel %vm360, %v492, 0.0
    %v557 = vsel %vm361, %v493, 0.0
    %v558 = vsel %vm362, %v494, 0.0
    %v559 = vsel %vm363, %v495, 0.0
    %v560 = vsel %vm364, %v496, 0.0
    %v561 = vsel %vm365, %v497, 0.0
    %562 = vst [vmem:[#allocation2 + $0x100] sm:$0xff] %v530
    %563 = vst [vmem:[#allocation2 + $0x108] sm:$0xff] %v531
    %564 = vst [vmem:[#allocation2 + $0x110] sm:$0xff] %v532
    %565 = vst [vmem:[#allocation2 + $0x118] sm:$0xff] %v533
    %566 = vst [vmem:[#allocation2 + $0x120] sm:$0xff] %v534
    %567 = vst [vmem:[#allocation2 + $0x128] sm:$0xff] %v535
    %568 = vst [vmem:[#allocation2 + $0x130] sm:$0xff] %v536
    %569 = vst [vmem:[#allocation2 + $0x138] sm:$0xff] %v537
    %570 = vst [vmem:[#allocation2 + $0x140] sm:$0xff] %v538
    %571 = vst [vmem:[#allocation2 + $0x148] sm:$0xff] %v539
    %572 = vst [vmem:[#allocation2 + $0x150] sm:$0xff] %v540
    %573 = vst [vmem:[#allocation2 + $0x158] sm:$0xff] %v541
    %574 = vst [vmem:[#allocation2 + $0x160] sm:$0xff] %v542
    %575 = vst [vmem:[#allocation2 + $0x168] sm:$0xff] %v543
    %576 = vst [vmem:[#allocation2 + $0x170] sm:$0xff] %v544
    %577 = vst [vmem:[#allocation2 + $0x178] sm:$0xff] %v545
    %578 = vst [vmem:[#allocation2 + $0x180] sm:$0xff] %v546
    %579 = vst [vmem:[#allocation2 + $0x188] sm:$0xff] %v547
    %580 = vst [vmem:[#allocation2 + $0x190] sm:$0xff] %v548
    %581 = vst [vmem:[#allocation2 + $0x198] sm:$0xff] %v549
    %582 = vst [vmem:[#allocation2 + $0x1a0] sm:$0xff] %v550
    %583 = vst [vmem:[#allocation2 + $0x1a8] sm:$0xff] %v551
    %584 = vst [vmem:[#allocation2 + $0x1b0] sm:$0xff] %v552
    %585 = vst [vmem:[#allocation2 + $0x1b8] sm:$0xff] %v553
    %586 = vst [vmem:[#allocation2 + $0x1c0] sm:$0xff] %v554
    %587 = vst [vmem:[#allocation2 + $0x1c8] sm:$0xff] %v555
    %588 = vst [vmem:[#allocation2 + $0x1d0] sm:$0xff] %v556
    %589 = vst [vmem:[#allocation2 + $0x1d8] sm:$0xff] %v557
    %590 = vst [vmem:[#allocation2 + $0x1e0] sm:$0xff] %v558
    %591 = vst [vmem:[#allocation2 + $0x1e8] sm:$0xff] %v559
    %592 = vst [vmem:[#allocation2 + $0x1f0] sm:$0xff] %v560
    %593 = vst [vmem:[#allocation2 + $0x1f8] sm:$0xff] %v561
    %v594 = vsel %vm105, 1, 0
    %v595 = vsel %vm106, 1, 0
    %v596 = vsel %vm107, 1, 0
    %v597 = vsel %vm108, 1, 0
    %v598 = vsel %vm109, 1, 0
    %v599 = vsel %vm110, 1, 0
    %v600 = vsel %vm111, 1, 0
    %v601 = vsel %vm112, 1, 0
    %v602 = vsel %vm113, 1, 0
    %v603 = vsel %vm114, 1, 0
    %v604 = vsel %vm115, 1, 0
    %v605 = vsel %vm116, 1, 0
    %v606 = vsel %vm117, 1, 0
    %v607 = vsel %vm118, 1, 0
    %v608 = vsel %vm119, 1, 0
    %v609 = vsel %vm120, 1, 0
    %v610 = vsel %vm121, 1, 0
    %v611 = vsel %vm122, 1, 0
    %v612 = vsel %vm123, 1, 0
    %v613 = vsel %vm124, 1, 0
    %v614 = vsel %vm125, 1, 0
    %v615 = vsel %vm126, 1, 0
    %v616 = vsel %vm127, 1, 0
    %v617 = vsel %vm128, 1, 0
    %v618 = vsel %vm129, 1, 0
    %v619 = vsel %vm130, 1, 0
    %v620 = vsel %vm131, 1, 0
    %v621 = vsel %vm132, 1, 0
    %v622 = vsel %vm133, 1, 0
    %v623 = vsel %vm134, 1, 0
    %v624 = vsel %vm135, 1, 0
    %v625 = vsel %vm136, 1, 0
    %vm626 = vcmp.eq.s32.totalorder %v594, 1
    %vm627 = vcmp.eq.s32.totalorder %v595, 1
    %vm628 = vcmp.eq.s32.totalorder %v596, 1
    %vm629 = vcmp.eq.s32.totalorder %v597, 1
    %vm630 = vcmp.eq.s32.totalorder %v598, 1
    %vm631 = vcmp.eq.s32.totalorder %v599, 1
    %vm632 = vcmp.eq.s32.totalorder %v600, 1
    %vm633 = vcmp.eq.s32.totalorder %v601, 1
    %vm634 = vcmp.eq.s32.totalorder %v602, 1
    %vm635 = vcmp.eq.s32.totalorder %v603, 1
    %vm636 = vcmp.eq.s32.totalorder %v604, 1
    %vm637 = vcmp.eq.s32.totalorder %v605, 1
    %vm638 = vcmp.eq.s32.totalorder %v606, 1
    %vm639 = vcmp.eq.s32.totalorder %v607, 1
    %vm640 = vcmp.eq.s32.totalorder %v608, 1
    %vm641 = vcmp.eq.s32.totalorder %v609, 1
    %vm642 = vcmp.eq.s32.totalorder %v610, 1
    %vm643 = vcmp.eq.s32.totalorder %v611, 1
    %vm644 = vcmp.eq.s32.totalorder %v612, 1
    %vm645 = vcmp.eq.s32.totalorder %v613, 1
    %vm646 = vcmp.eq.s32.totalorder %v614, 1
    %vm647 = vcmp.eq.s32.totalorder %v615, 1
    %vm648 = vcmp.eq.s32.totalorder %v616, 1
    %vm649 = vcmp.eq.s32.totalorder %v617, 1
    %vm650 = vcmp.eq.s32.totalorder %v618, 1
    %vm651 = vcmp.eq.s32.totalorder %v619, 1
    %vm652 = vcmp.eq.s32.totalorder %v620, 1
    %vm653 = vcmp.eq.s32.totalorder %v621, 1
    %vm654 = vcmp.eq.s32.totalorder %v622, 1
    %vm655 = vcmp.eq.s32.totalorder %v623, 1
    %vm656 = vcmp.eq.s32.totalorder %v624, 1
    %vm657 = vcmp.eq.s32.totalorder %v625, 1
    %658 = vrot.lane.b32.xlu0 %v237, 64
    %v659 = vpop.permute.xlu0 %658
    %660 = vrot.lane.b32.xlu0 %v238, 64
    %v661 = vpop.permute.xlu0 %660
    %662 = vrot.lane.b32.xlu0 %v239, 64
    %v663 = vpop.permute.xlu0 %662
    %664 = vrot.lane.b32.xlu0 %v240, 64
    %v665 = vpop.permute.xlu0 %664
    %666 = vrot.lane.b32.xlu0 %v241, 64
    %v667 = vpop.permute.xlu0 %666
    %668 = vrot.lane.b32.xlu0 %v242, 64
    %v669 = vpop.permute.xlu0 %668
    %670 = vrot.lane.b32.xlu0 %v243, 64
    %v671 = vpop.permute.xlu0 %670
    %672 = vrot.lane.b32.xlu0 %v244, 64
    %v673 = vpop.permute.xlu0 %672
    %674 = vrot.lane.b32.xlu0 %v245, 64
    %v675 = vpop.permute.xlu0 %674
    %676 = vrot.lane.b32.xlu0 %v246, 64
    %v677 = vpop.permute.xlu0 %676
    %678 = vrot.lane.b32.xlu0 %v247, 64
    %v679 = vpop.permute.xlu0 %678
    %680 = vrot.lane.b32.xlu0 %v248, 64
    %v681 = vpop.permute.xlu0 %680
    %682 = vrot.lane.b32.xlu0 %v249, 64
    %v683 = vpop.permute.xlu0 %682
    %684 = vrot.lane.b32.xlu0 %v250, 64
    %v685 = vpop.permute.xlu0 %684
    %686 = vrot.lane.b32.xlu0 %v251, 64
    %v687 = vpop.permute.xlu0 %686
    %688 = vrot.lane.b32.xlu0 %v252, 64
    %v689 = vpop.permute.xlu0 %688
    %690 = vrot.lane.b32.xlu0 %v253, 64
    %v691 = vpop.permute.xlu0 %690
    %692 = vrot.lane.b32.xlu0 %v254, 64
    %v693 = vpop.permute.xlu0 %692
    %694 = vrot.lane.b32.xlu0 %v255, 64
    %v695 = vpop.permute.xlu0 %694
    %696 = vrot.lane.b32.xlu0 %v256, 64
    %v697 = vpop.permute.xlu0 %696
    %698 = vrot.lane.b32.xlu0 %v257, 64
    %v699 = vpop.permute.xlu0 %698
    %700 = vrot.lane.b32.xlu0 %v258, 64
    %v701 = vpop.permute.xlu0 %700
    %702 = vrot.lane.b32.xlu0 %v259, 64
    %v703 = vpop.permute.xlu0 %702
    %704 = vrot.lane.b32.xlu0 %v260, 64
    %v705 = vpop.permute.xlu0 %704
    %706 = vrot.lane.b32.xlu0 %v261, 64
    %v707 = vpop.permute.xlu0 %706
    %708 = vrot.lane.b32.xlu0 %v262, 64
    %v709 = vpop.permute.xlu0 %708
    %710 = vrot.lane.b32.xlu0 %v263, 64
    %v711 = vpop.permute.xlu0 %710
    %712 = vrot.lane.b32.xlu0 %v264, 64
    %v713 = vpop.permute.xlu0 %712
    %714 = vrot.lane.b32.xlu0 %v265, 64
    %v715 = vpop.permute.xlu0 %714
    %716 = vrot.lane.b32.xlu0 %v266, 64
    %v717 = vpop.permute.xlu0 %716
    %718 = vrot.lane.b32.xlu0 %v267, 64
    %v719 = vpop.permute.xlu0 %718
    %720 = vrot.lane.b32.xlu0 %v268, 64
    %v721 = vpop.permute.xlu0 %720
    %722 = vrot.lane.b32.xlu0 %v269, 64
    %v723 = vpop.permute.xlu0 %722
    %vm724 = vcmask 523264
    %v725 = vsel %vm724, %v659, %v661
    %v726 = vsel %vm724, %v661, %v663
    %v727 = vsel %vm724, %v663, %v665
    %v728 = vsel %vm724, %v665, %v667
    %v729 = vsel %vm724, %v667, %v669
    %v730 = vsel %vm724, %v669, %v671
    %v731 = vsel %vm724, %v671, %v673
    %v732 = vsel %vm724, %v673, %v675
    %v733 = vsel %vm724, %v675, %v677
    %v734 = vsel %vm724, %v677, %v679
    %v735 = vsel %vm724, %v679, %v681
    %v736 = vsel %vm724, %v681, %v683
    %v737 = vsel %vm724, %v683, %v685
    %v738 = vsel %vm724, %v685, %v687
    %v739 = vsel %vm724, %v687, %v689
    %v740 = vsel %vm724, %v689, %v691
    %v741 = vsel %vm724, %v691, %v693
    %v742 = vsel %vm724, %v693, %v695
    %v743 = vsel %vm724, %v695, %v697
    %v744 = vsel %vm724, %v697, %v699
    %v745 = vsel %vm724, %v699, %v701
    %v746 = vsel %vm724, %v701, %v703
    %v747 = vsel %vm724, %v703, %v705
    %v748 = vsel %vm724, %v705, %v707
    %v749 = vsel %vm724, %v707, %v709
    %v750 = vsel %vm724, %v709, %v711
    %v751 = vsel %vm724, %v711, %v713
    %v752 = vsel %vm724, %v713, %v715
    %v753 = vsel %vm724, %v715, %v717
    %v754 = vsel %vm724, %v717, %v719
    %v755 = vsel %vm724, %v719, %v721
    %v756 = vsel %vm724, %v721, %v723
    %v789 = vsel %vm626, %v725, 0.0
    %v790 = vsel %vm627, %v726, 0.0
    %v791 = vsel %vm628, %v727, 0.0
    %v792 = vsel %vm629, %v728, 0.0
    %v793 = vsel %vm630, %v729, 0.0
    %v794 = vsel %vm631, %v730, 0.0
    %v795 = vsel %vm632, %v731, 0.0
    %v796 = vsel %vm633, %v732, 0.0
    %v797 = vsel %vm634, %v733, 0.0
    %v798 = vsel %vm635, %v734, 0.0
    %v799 = vsel %vm636, %v735, 0.0
    %v800 = vsel %vm637, %v736, 0.0
    %v801 = vsel %vm638, %v737, 0.0
    %v802 = vsel %vm639, %v738, 0.0
    %v803 = vsel %vm640, %v739, 0.0
    %v804 = vsel %vm641, %v740, 0.0
    %v805 = vsel %vm642, %v741, 0.0
    %v806 = vsel %vm643, %v742, 0.0
    %v807 = vsel %vm644, %v743, 0.0
    %v808 = vsel %vm645, %v744, 0.0
    %v809 = vsel %vm646, %v745, 0.0
    %v810 = vsel %vm647, %v746, 0.0
    %v811 = vsel %vm648, %v747, 0.0
    %v812 = vsel %vm649, %v748, 0.0
    %v813 = vsel %vm650, %v749, 0.0
    %v814 = vsel %vm651, %v750, 0.0
    %v815 = vsel %vm652, %v751, 0.0
    %v816 = vsel %vm653, %v752, 0.0
    %v817 = vsel %vm654, %v753, 0.0
    %v818 = vsel %vm655, %v754, 0.0
    %v819 = vsel %vm656, %v755, 0.0
    %v820 = vsel %vm657, %v756, 0.0
    %821 = vst [vmem:[#allocation2 + $0x200] sm:$0xff] %v789
    %822 = vst [vmem:[#allocation2 + $0x208] sm:$0xff] %v790
    %823 = vst [vmem:[#allocation2 + $0x210] sm:$0xff] %v791
    %824 = vst [vmem:[#allocation2 + $0x218] sm:$0xff] %v792
    %825 = vst [vmem:[#allocation2 + $0x220] sm:$0xff] %v793
    %826 = vst [vmem:[#allocation2 + $0x228] sm:$0xff] %v794
    %827 = vst [vmem:[#allocation2 + $0x230] sm:$0xff] %v795
    %828 = vst [vmem:[#allocation2 + $0x238] sm:$0xff] %v796
    %829 = vst [vmem:[#allocation2 + $0x240] sm:$0xff] %v797
    %830 = vst [vmem:[#allocation2 + $0x248] sm:$0xff] %v798
    %831 = vst [vmem:[#allocation2 + $0x250] sm:$0xff] %v799
    %832 = vst [vmem:[#allocation2 + $0x258] sm:$0xff] %v800
    %833 = vst [vmem:[#allocation2 + $0x260] sm:$0xff] %v801
    %834 = vst [vmem:[#allocation2 + $0x268] sm:$0xff] %v802
    %835 = vst [vmem:[#allocation2 + $0x270] sm:$0xff] %v803
    %836 = vst [vmem:[#allocation2 + $0x278] sm:$0xff] %v804
    %837 = vst [vmem:[#allocation2 + $0x280] sm:$0xff] %v805
    %838 = vst [vmem:[#allocation2 + $0x288] sm:$0xff] %v806
    %839 = vst [vmem:[#allocation2 + $0x290] sm:$0xff] %v807
    %840 = vst [vmem:[#allocation2 + $0x298] sm:$0xff] %v808
    %841 = vst [vmem:[#allocation2 + $0x2a0] sm:$0xff] %v809
    %842 = vst [vmem:[#allocation2 + $0x2a8] sm:$0xff] %v810
    %843 = vst [vmem:[#allocation2 + $0x2b0] sm:$0xff] %v811
    %844 = vst [vmem:[#allocation2 + $0x2b8] sm:$0xff] %v812
    %845 = vst [vmem:[#allocation2 + $0x2c0] sm:$0xff] %v813
    %846 = vst [vmem:[#allocation2 + $0x2c8] sm:$0xff] %v814
    %847 = vst [vmem:[#allocation2 + $0x2d0] sm:$0xff] %v815
    %848 = vst [vmem:[#allocation2 + $0x2d8] sm:$0xff] %v816
    %849 = vst [vmem:[#allocation2 + $0x2e0] sm:$0xff] %v817
    %850 = vst [vmem:[#allocation2 + $0x2e8] sm:$0xff] %v818
    %851 = vst [vmem:[#allocation2 + $0x2f0] sm:$0xff] %v819
    %852 = vst [vmem:[#allocation2 + $0x2f8] sm:$0xff] %v820
    %vm853 = vmand %vm105, %vm201
    %vm854 = vmand %vm106, %vm202
    %vm855 = vmand %vm107, %vm203
    %vm856 = vmand %vm108, %vm204
    %vm857 = vmand %vm109, %vm205
    %vm858 = vmand %vm110, %vm206
    %vm859 = vmand %vm111, %vm207
    %vm860 = vmand %vm112, %vm208
    %vm861 = vmand %vm113, %vm209
    %vm862 = vmand %vm114, %vm210
    %vm863 = vmand %vm115, %vm211
    %vm864 = vmand %vm116, %vm212
    %vm865 = vmand %vm117, %vm213
    %vm866 = vmand %vm118, %vm214
    %vm867 = vmand %vm119, %vm215
    %vm868 = vmand %vm120, %vm216
    %vm869 = vmand %vm121, %vm217
    %vm870 = vmand %vm122, %vm218
    %vm871 = vmand %vm123, %vm219
    %vm872 = vmand %vm124, %vm220
    %vm873 = vmand %vm125, %vm221
    %vm874 = vmand %vm126, %vm222
    %vm875 = vmand %vm127, %vm223
    %vm876 = vmand %vm128, %vm224
    %vm877 = vmand %vm129, %vm225
    %vm878 = vmand %vm130, %vm226
    %vm879 = vmand %vm131, %vm227
    %vm880 = vmand %vm132, %vm228
    %vm881 = vmand %vm133, %vm229
    %vm882 = vmand %vm134, %vm230
    %vm883 = vmand %vm135, %vm231
    %vm884 = vmand %vm136, %vm232
    %v885 = vsel %vm853, 1, 0
    %v886 = vsel %vm854, 1, 0
    %v887 = vsel %vm855, 1, 0
    %v888 = vsel %vm856, 1, 0
    %v889 = vsel %vm857, 1, 0
    %v890 = vsel %vm858, 1, 0
    %v891 = vsel %vm859, 1, 0
    %v892 = vsel %vm860, 1, 0
    %v893 = vsel %vm861, 1, 0
    %v894 = vsel %vm862, 1, 0
    %v895 = vsel %vm863, 1, 0
    %v896 = vsel %vm864, 1, 0
    %v897 = vsel %vm865, 1, 0
    %v898 = vsel %vm866, 1, 0
    %v899 = vsel %vm867, 1, 0
    %v900 = vsel %vm868, 1, 0
    %v901 = vsel %vm869, 1, 0
    %v902 = vsel %vm870, 1, 0
    %v903 = vsel %vm871, 1, 0
    %v904 = vsel %vm872, 1, 0
    %v905 = vsel %vm873, 1, 0
    %v906 = vsel %vm874, 1, 0
    %v907 = vsel %vm875, 1, 0
    %v908 = vsel %vm876, 1, 0
    %v909 = vsel %vm877, 1, 0
    %v910 = vsel %vm878, 1, 0
    %v911 = vsel %vm879, 1, 0
    %v912 = vsel %vm880, 1, 0
    %v913 = vsel %vm881, 1, 0
    %v914 = vsel %vm882, 1, 0
    %v915 = vsel %vm883, 1, 0
    %v916 = vsel %vm884, 1, 0
    %vm917 = vcmp.eq.s32.totalorder %v885, 1
    %vm918 = vcmp.eq.s32.totalorder %v886, 1
    %vm919 = vcmp.eq.s32.totalorder %v887, 1
    %vm920 = vcmp.eq.s32.totalorder %v888, 1
    %vm921 = vcmp.eq.s32.totalorder %v889, 1
    %vm922 = vcmp.eq.s32.totalorder %v890, 1
    %vm923 = vcmp.eq.s32.totalorder %v891, 1
    %vm924 = vcmp.eq.s32.totalorder %v892, 1
    %vm925 = vcmp.eq.s32.totalorder %v893, 1
    %vm926 = vcmp.eq.s32.totalorder %v894, 1
    %vm927 = vcmp.eq.s32.totalorder %v895, 1
    %vm928 = vcmp.eq.s32.totalorder %v896, 1
    %vm929 = vcmp.eq.s32.totalorder %v897, 1
    %vm930 = vcmp.eq.s32.totalorder %v898, 1
    %vm931 = vcmp.eq.s32.totalorder %v899, 1
    %vm932 = vcmp.eq.s32.totalorder %v900, 1
    %vm933 = vcmp.eq.s32.totalorder %v901, 1
    %vm934 = vcmp.eq.s32.totalorder %v902, 1
    %vm935 = vcmp.eq.s32.totalorder %v903, 1
    %vm936 = vcmp.eq.s32.totalorder %v904, 1
    %vm937 = vcmp.eq.s32.totalorder %v905, 1
    %vm938 = vcmp.eq.s32.totalorder %v906, 1
    %vm939 = vcmp.eq.s32.totalorder %v907, 1
    %vm940 = vcmp.eq.s32.totalorder %v908, 1
    %vm941 = vcmp.eq.s32.totalorder %v909, 1
    %vm942 = vcmp.eq.s32.totalorder %v910, 1
    %vm943 = vcmp.eq.s32.totalorder %v911, 1
    %vm944 = vcmp.eq.s32.totalorder %v912, 1
    %vm945 = vcmp.eq.s32.totalorder %v913, 1
    %vm946 = vcmp.eq.s32.totalorder %v914, 1
    %vm947 = vcmp.eq.s32.totalorder %v915, 1
    %vm948 = vcmp.eq.s32.totalorder %v916, 1
    %949 = vrot.lane.b32.xlu0 %v237, 63
    %v950 = vpop.permute.xlu0 %949
    %951 = vrot.lane.b32.xlu0 %v238, 63
    %v952 = vpop.permute.xlu0 %951
    %953 = vrot.lane.b32.xlu0 %v239, 63
    %v954 = vpop.permute.xlu0 %953
    %955 = vrot.lane.b32.xlu0 %v240, 63
    %v956 = vpop.permute.xlu0 %955
    %957 = vrot.lane.b32.xlu0 %v241, 63
    %v958 = vpop.permute.xlu0 %957
    %959 = vrot.lane.b32.xlu0 %v242, 63
    %v960 = vpop.permute.xlu0 %959
    %961 = vrot.lane.b32.xlu0 %v243, 63
    %v962 = vpop.permute.xlu0 %961
    %963 = vrot.lane.b32.xlu0 %v244, 63
    %v964 = vpop.permute.xlu0 %963
    %965 = vrot.lane.b32.xlu0 %v245, 63
    %v966 = vpop.permute.xlu0 %965
    %967 = vrot.lane.b32.xlu0 %v246, 63
    %v968 = vpop.permute.xlu0 %967
    %969 = vrot.lane.b32.xlu0 %v247, 63
    %v970 = vpop.permute.xlu0 %969
    %971 = vrot.lane.b32.xlu0 %v248, 63
    %v972 = vpop.permute.xlu0 %971
    %973 = vrot.lane.b32.xlu0 %v249, 63
    %v974 = vpop.permute.xlu0 %973
    %975 = vrot.lane.b32.xlu0 %v250, 63
    %v976 = vpop.permute.xlu0 %975
    %977 = vrot.lane.b32.xlu0 %v251, 63
    %v978 = vpop.permute.xlu0 %977
    %979 = vrot.lane.b32.xlu0 %v252, 63
    %v980 = vpop.permute.xlu0 %979
    %981 = vrot.lane.b32.xlu0 %v253, 63
    %v982 = vpop.permute.xlu0 %981
    %983 = vrot.lane.b32.xlu0 %v254, 63
    %v984 = vpop.permute.xlu0 %983
    %985 = vrot.lane.b32.xlu0 %v255, 63
    %v986 = vpop.permute.xlu0 %985
    %987 = vrot.lane.b32.xlu0 %v256, 63
    %v988 = vpop.permute.xlu0 %987
    %989 = vrot.lane.b32.xlu0 %v257, 63
    %v990 = vpop.permute.xlu0 %989
    %991 = vrot.lane.b32.xlu0 %v258, 63
    %v992 = vpop.permute.xlu0 %991
    %993 = vrot.lane.b32.xlu0 %v259, 63
    %v994 = vpop.permute.xlu0 %993
    %995 = vrot.lane.b32.xlu0 %v260, 63
    %v996 = vpop.permute.xlu0 %995
    %997 = vrot.lane.b32.xlu0 %v261, 63
    %v998 = vpop.permute.xlu0 %997
    %999 = vrot.lane.b32.xlu0 %v262, 63
    %v1000 = vpop.permute.xlu0 %999
    %1001 = vrot.lane.b32.xlu0 %v263, 63
    %v1002 = vpop.permute.xlu0 %1001
    %1003 = vrot.lane.b32.xlu0 %v264, 63
    %v1004 = vpop.permute.xlu0 %1003
    %1005 = vrot.lane.b32.xlu0 %v265, 63
    %v1006 = vpop.permute.xlu0 %1005
    %1007 = vrot.lane.b32.xlu0 %v266, 63
    %v1008 = vpop.permute.xlu0 %1007
    %1009 = vrot.lane.b32.xlu0 %v267, 63
    %v1010 = vpop.permute.xlu0 %1009
    %1011 = vrot.lane.b32.xlu0 %v268, 63
    %v1012 = vpop.permute.xlu0 %1011
    %1013 = vrot.lane.b32.xlu0 %v269, 63
    %v1014 = vpop.permute.xlu0 %1013
    %vm1015 = vcmask 515072
    %v1016 = vsel %vm1015, %v950, %v952
    %v1017 = vsel %vm1015, %v952, %v954
    %v1018 = vsel %vm1015, %v954, %v956
    %v1019 = vsel %vm1015, %v956, %v958
    %v1020 = vsel %vm1015, %v958, %v960
    %v1021 = vsel %vm1015, %v960, %v962
    %v1022 = vsel %vm1015, %v962, %v964
    %v1023 = vsel %vm1015, %v964, %v966
    %v1024 = vsel %vm1015, %v966, %v968
    %v1025 = vsel %vm1015, %v968, %v970
    %v1026 = vsel %vm1015, %v970, %v972
    %v1027 = vsel %vm1015, %v972, %v974
    %v1028 = vsel %vm1015, %v974, %v976
    %v1029 = vsel %vm1015, %v976, %v978
    %v1030 = vsel %vm1015, %v978, %v980
    %v1031 = vsel %vm1015, %v980, %v982
    %v1032 = vsel %vm1015, %v982, %v984
    %v1033 = vsel %vm1015, %v984, %v986
    %v1034 = vsel %vm1015, %v986, %v988
    %v1035 = vsel %vm1015, %v988, %v990
    %v1036 = vsel %vm1015, %v990, %v992
    %v1037 = vsel %vm1015, %v992, %v994
    %v1038 = vsel %vm1015, %v994, %v996
    %v1039 = vsel %vm1015, %v996, %v998
    %v1040 = vsel %vm1015, %v998, %v1000
    %v1041 = vsel %vm1015, %v1000, %v1002
    %v1042 = vsel %vm1015, %v1002, %v1004
    %v1043 = vsel %vm1015, %v1004, %v1006
    %v1044 = vsel %vm1015, %v1006, %v1008
    %v1045 = vsel %vm1015, %v1008, %v1010
    %v1046 = vsel %vm1015, %v1010, %v1012
    %v1047 = vsel %vm1015, %v1012, %v1014
    %v1080 = vsel %vm917, %v1016, 0.0
    %v1081 = vsel %vm918, %v1017, 0.0
    %v1082 = vsel %vm919, %v1018, 0.0
    %v1083 = vsel %vm920, %v1019, 0.0
    %v1084 = vsel %vm921, %v1020, 0.0
    %v1085 = vsel %vm922, %v1021, 0.0
    %v1086 = vsel %vm923, %v1022, 0.0
    %v1087 = vsel %vm924, %v1023, 0.0
    %v1088 = vsel %vm925, %v1024, 0.0
    %v1089 = vsel %vm926, %v1025, 0.0
    %v1090 = vsel %vm927, %v1026, 0.0
    %v1091 = vsel %vm928, %v1027, 0.0
    %v1092 = vsel %vm929, %v1028, 0.0
    %v1093 = vsel %vm930, %v1029, 0.0
    %v1094 = vsel %vm931, %v1030, 0.0
    %v1095 = vsel %vm932, %v1031, 0.0
    %v1096 = vsel %vm933, %v1032, 0.0
    %v1097 = vsel %vm934, %v1033, 0.0
    %v1098 = vsel %vm935, %v1034, 0.0
    %v1099 = vsel %vm936, %v1035, 0.0
    %v1100 = vsel %vm937, %v1036, 0.0
    %v1101 = vsel %vm938, %v1037, 0.0
    %v1102 = vsel %vm939, %v1038, 0.0
    %v1103 = vsel %vm940, %v1039, 0.0
    %v1104 = vsel %vm941, %v1040, 0.0
    %v1105 = vsel %vm942, %v1041, 0.0
    %v1106 = vsel %vm943, %v1042, 0.0
    %v1107 = vsel %vm944, %v1043, 0.0
    %v1108 = vsel %vm945, %v1044, 0.0
    %v1109 = vsel %vm946, %v1045, 0.0
    %v1110 = vsel %vm947, %v1046, 0.0
    %v1111 = vsel %vm948, %v1047, 0.0
    %1112 = vst [vmem:[#allocation2 + $0x300] sm:$0xff] %v1080
    %1113 = vst [vmem:[#allocation2 + $0x308] sm:$0xff] %v1081
    %1114 = vst [vmem:[#allocation2 + $0x310] sm:$0xff] %v1082
    %1115 = vst [vmem:[#allocation2 + $0x318] sm:$0xff] %v1083
    %1116 = vst [vmem:[#allocation2 + $0x320] sm:$0xff] %v1084
    %1117 = vst [vmem:[#allocation2 + $0x328] sm:$0xff] %v1085
    %1118 = vst [vmem:[#allocation2 + $0x330] sm:$0xff] %v1086
    %1119 = vst [vmem:[#allocation2 + $0x338] sm:$0xff] %v1087
    %1120 = vst [vmem:[#allocation2 + $0x340] sm:$0xff] %v1088
    %1121 = vst [vmem:[#allocation2 + $0x348] sm:$0xff] %v1089
    %1122 = vst [vmem:[#allocation2 + $0x350] sm:$0xff] %v1090
    %1123 = vst [vmem:[#allocation2 + $0x358] sm:$0xff] %v1091
    %1124 = vst [vmem:[#allocation2 + $0x360] sm:$0xff] %v1092
    %1125 = vst [vmem:[#allocation2 + $0x368] sm:$0xff] %v1093
    %1126 = vst [vmem:[#allocation2 + $0x370] sm:$0xff] %v1094
    %1127 = vst [vmem:[#allocation2 + $0x378] sm:$0xff] %v1095
    %1128 = vst [vmem:[#allocation2 + $0x380] sm:$0xff] %v1096
    %1129 = vst [vmem:[#allocation2 + $0x388] sm:$0xff] %v1097
    %1130 = vst [vmem:[#allocation2 + $0x390] sm:$0xff] %v1098
    %1131 = vst [vmem:[#allocation2 + $0x398] sm:$0xff] %v1099
    %1132 = vst [vmem:[#allocation2 + $0x3a0] sm:$0xff] %v1100
    %1133 = vst [vmem:[#allocation2 + $0x3a8] sm:$0xff] %v1101
    %1134 = vst [vmem:[#allocation2 + $0x3b0] sm:$0xff] %v1102
    %1135 = vst [vmem:[#allocation2 + $0x3b8] sm:$0xff] %v1103
    %1136 = vst [vmem:[#allocation2 + $0x3c0] sm:$0xff] %v1104
    %1137 = vst [vmem:[#allocation2 + $0x3c8] sm:$0xff] %v1105
    %1138 = vst [vmem:[#allocation2 + $0x3d0] sm:$0xff] %v1106
    %1139 = vst [vmem:[#allocation2 + $0x3d8] sm:$0xff] %v1107
    %1140 = vst [vmem:[#allocation2 + $0x3e0] sm:$0xff] %v1108
    %1141 = vst [vmem:[#allocation2 + $0x3e8] sm:$0xff] %v1109
    %1142 = vst [vmem:[#allocation2 + $0x3f0] sm:$0xff] %v1110
    %1143 = vst [vmem:[#allocation2 + $0x3f8] sm:$0xff] %v1111
    %v1144 = vld [vmem:[#allocation3] sm:$0xff]
    %v1145 = vld [vmem:[#allocation3 + $0x8] sm:$0xff]
    %v1146 = vld [vmem:[#allocation3 + $0x10] sm:$0xff]
    %v1147 = vld [vmem:[#allocation3 + $0x18] sm:$0xff]
    %v1148 = vld [vmem:[#allocation2] sm:$0xff]
    %v1149 = vld [vmem:[#allocation2 + $0x8] sm:$0xff]
    %v1150 = vld [vmem:[#allocation2 + $0x10] sm:$0xff]
    %v1151 = vld [vmem:[#allocation2 + $0x18] sm:$0xff]
    %v1152 = vld [vmem:[#allocation2 + $0x20] sm:$0xff]
    %v1153 = vld [vmem:[#allocation2 + $0x28] sm:$0xff]
    %v1154 = vld [vmem:[#allocation2 + $0x30] sm:$0xff]
    %v1155 = vld [vmem:[#allocation2 + $0x38] sm:$0xff]
    %v1156 = vld [vmem:[#allocation2 + $0x40] sm:$0xff]
    %v1157 = vld [vmem:[#allocation2 + $0x48] sm:$0xff]
    %v1158 = vld [vmem:[#allocation2 + $0x50] sm:$0xff]
    %v1159 = vld [vmem:[#allocation2 + $0x58] sm:$0xff]
    %v1160 = vld [vmem:[#allocation2 + $0x60] sm:$0xff]
    %v1161 = vld [vmem:[#allocation2 + $0x68] sm:$0xff]
    %v1162 = vld [vmem:[#allocation2 + $0x70] sm:$0xff]
    %v1163 = vld [vmem:[#allocation2 + $0x78] sm:$0xff]
    %v1164 = vld [vmem:[#allocation2 + $0x80] sm:$0xff]
    %v1165 = vld [vmem:[#allocation2 + $0x88] sm:$0xff]
    %v1166 = vld [vmem:[#allocation2 + $0x90] sm:$0xff]
    %v1167 = vld [vmem:[#allocation2 + $0x98] sm:$0xff]
    %v1168 = vld [vmem:[#allocation2 + $0xa0] sm:$0xff]
    %v1169 = vld [vmem:[#allocation2 + $0xa8] sm:$0xff]
    %v1170 = vld [vmem:[#allocation2 + $0xb0] sm:$0xff]
    %v1171 = vld [vmem:[#allocation2 + $0xb8] sm:$0xff]
    %v1172 = vld [vmem:[#allocation2 + $0xc0] sm:$0xff]
    %v1173 = vld [vmem:[#allocation2 + $0xc8] sm:$0xff]
    %v1174 = vld [vmem:[#allocation2 + $0xd0] sm:$0xff]
    %v1175 = vld [vmem:[#allocation2 + $0xd8] sm:$0xff]
    %v1176 = vld [vmem:[#allocation2 + $0xe0] sm:$0xff]
    %v1177 = vld [vmem:[#allocation2 + $0xe8] sm:$0xff]
    %v1178 = vld [vmem:[#allocation2 + $0xf0] sm:$0xff]
    %v1179 = vld [vmem:[#allocation2 + $0xf8] sm:$0xff]
    %v1180 = vld [vmem:[#allocation2 + $0x100] sm:$0xff]
    %v1181 = vld [vmem:[#allocation2 + $0x108] sm:$0xff]
    %v1182 = vld [vmem:[#allocation2 + $0x110] sm:$0xff]
    %v1183 = vld [vmem:[#allocation2 + $0x118] sm:$0xff]
    %v1184 = vld [vmem:[#allocation2 + $0x120] sm:$0xff]
    %v1185 = vld [vmem:[#allocation2 + $0x128] sm:$0xff]
    %v1186 = vld [vmem:[#allocation2 + $0x130] sm:$0xff]
    %v1187 = vld [vmem:[#allocation2 + $0x138] sm:$0xff]
    %v1188 = vld [vmem:[#allocation2 + $0x140] sm:$0xff]
    %v1189 = vld [vmem:[#allocation2 + $0x148] sm:$0xff]
    %v1190 = vld [vmem:[#allocation2 + $0x150] sm:$0xff]
    %v1191 = vld [vmem:[#allocation2 + $0x158] sm:$0xff]
    %v1192 = vld [vmem:[#allocation2 + $0x160] sm:$0xff]
    %v1193 = vld [vmem:[#allocation2 + $0x168] sm:$0xff]
    %v1194 = vld [vmem:[#allocation2 + $0x170] sm:$0xff]
    %v1195 = vld [vmem:[#allocation2 + $0x178] sm:$0xff]
    %v1196 = vld [vmem:[#allocation2 + $0x180] sm:$0xff]
    %v1197 = vld [vmem:[#allocation2 + $0x188] sm:$0xff]
    %v1198 = vld [vmem:[#allocation2 + $0x190] sm:$0xff]
    %v1199 = vld [vmem:[#allocation2 + $0x198] sm:$0xff]
    %v1200 = vld [vmem:[#allocation2 + $0x1a0] sm:$0xff]
    %v1201 = vld [vmem:[#allocation2 + $0x1a8] sm:$0xff]
    %v1202 = vld [vmem:[#allocation2 + $0x1b0] sm:$0xff]
    %v1203 = vld [vmem:[#allocation2 + $0x1b8] sm:$0xff]
    %v1204 = vld [vmem:[#allocation2 + $0x1c0] sm:$0xff]
    %v1205 = vld [vmem:[#allocation2 + $0x1c8] sm:$0xff]
    %v1206 = vld [vmem:[#allocation2 + $0x1d0] sm:$0xff]
    %v1207 = vld [vmem:[#allocation2 + $0x1d8] sm:$0xff]
    %v1208 = vld [vmem:[#allocation2 + $0x1e0] sm:$0xff]
    %v1209 = vld [vmem:[#allocation2 + $0x1e8] sm:$0xff]
    %v1210 = vld [vmem:[#allocation2 + $0x1f0] sm:$0xff]
    %v1211 = vld [vmem:[#allocation2 + $0x1f8] sm:$0xff]
    %v1212 = vld [vmem:[#allocation2 + $0x200] sm:$0xff]
    %v1213 = vld [vmem:[#allocation2 + $0x208] sm:$0xff]
    %v1214 = vld [vmem:[#allocation2 + $0x210] sm:$0xff]
    %v1215 = vld [vmem:[#allocation2 + $0x218] sm:$0xff]
    %v1216 = vld [vmem:[#allocation2 + $0x220] sm:$0xff]
    %v1217 = vld [vmem:[#allocation2 + $0x228] sm:$0xff]
    %v1218 = vld [vmem:[#allocation2 + $0x230] sm:$0xff]
    %v1219 = vld [vmem:[#allocation2 + $0x238] sm:$0xff]
    %v1220 = vld [vmem:[#allocation2 + $0x240] sm:$0xff]
    %v1221 = vld [vmem:[#allocation2 + $0x248] sm:$0xff]
    %v1222 = vld [vmem:[#allocation2 + $0x250] sm:$0xff]
    %v1223 = vld [vmem:[#allocation2 + $0x258] sm:$0xff]
    %v1224 = vld [vmem:[#allocation2 + $0x260] sm:$0xff]
    %v1225 = vld [vmem:[#allocation2 + $0x268] sm:$0xff]
    %v1226 = vld [vmem:[#allocation2 + $0x270] sm:$0xff]
    %v1227 = vld [vmem:[#allocation2 + $0x278] sm:$0xff]
    %v1228 = vld [vmem:[#allocation2 + $0x280] sm:$0xff]
    %v1229 = vld [vmem:[#allocation2 + $0x288] sm:$0xff]
    %v1230 = vld [vmem:[#allocation2 + $0x290] sm:$0xff]
    %v1231 = vld [vmem:[#allocation2 + $0x298] sm:$0xff]
    %v1232 = vld [vmem:[#allocation2 + $0x2a0] sm:$0xff]
    %v1233 = vld [vmem:[#allocation2 + $0x2a8] sm:$0xff]
    %v1234 = vld [vmem:[#allocation2 + $0x2b0] sm:$0xff]
    %v1235 = vld [vmem:[#allocation2 + $0x2b8] sm:$0xff]
    %v1236 = vld [vmem:[#allocation2 + $0x2c0] sm:$0xff]
    %v1237 = vld [vmem:[#allocation2 + $0x2c8] sm:$0xff]
    %v1238 = vld [vmem:[#allocation2 + $0x2d0] sm:$0xff]
    %v1239 = vld [vmem:[#allocation2 + $0x2d8] sm:$0xff]
    %v1240 = vld [vmem:[#allocation2 + $0x2e0] sm:$0xff]
    %v1241 = vld [vmem:[#allocation2 + $0x2e8] sm:$0xff]
    %v1242 = vld [vmem:[#allocation2 + $0x2f0] sm:$0xff]
    %v1243 = vld [vmem:[#allocation2 + $0x2f8] sm:$0xff]
    %v1244 = vld [vmem:[#allocation2 + $0x300] sm:$0xff]
    %v1245 = vld [vmem:[#allocation2 + $0x308] sm:$0xff]
    %v1246 = vld [vmem:[#allocation2 + $0x310] sm:$0xff]
    %v1247 = vld [vmem:[#allocation2 + $0x318] sm:$0xff]
    %v1248 = vld [vmem:[#allocation2 + $0x320] sm:$0xff]
    %v1249 = vld [vmem:[#allocation2 + $0x328] sm:$0xff]
    %v1250 = vld [vmem:[#allocation2 + $0x330] sm:$0xff]
    %v1251 = vld [vmem:[#allocation2 + $0x338] sm:$0xff]
    %v1252 = vld [vmem:[#allocation2 + $0x340] sm:$0xff]
    %v1253 = vld [vmem:[#allocation2 + $0x348] sm:$0xff]
    %v1254 = vld [vmem:[#allocation2 + $0x350] sm:$0xff]
    %v1255 = vld [vmem:[#allocation2 + $0x358] sm:$0xff]
    %v1256 = vld [vmem:[#allocation2 + $0x360] sm:$0xff]
    %v1257 = vld [vmem:[#allocation2 + $0x368] sm:$0xff]
    %v1258 = vld [vmem:[#allocation2 + $0x370] sm:$0xff]
    %v1259 = vld [vmem:[#allocation2 + $0x378] sm:$0xff]
    %v1260 = vld [vmem:[#allocation2 + $0x380] sm:$0xff]
    %v1261 = vld [vmem:[#allocation2 + $0x388] sm:$0xff]
    %v1262 = vld [vmem:[#allocation2 + $0x390] sm:$0xff]
    %v1263 = vld [vmem:[#allocation2 + $0x398] sm:$0xff]
    %v1264 = vld [vmem:[#allocation2 + $0x3a0] sm:$0xff]
    %v1265 = vld [vmem:[#allocation2 + $0x3a8] sm:$0xff]
    %v1266 = vld [vmem:[#allocation2 + $0x3b0] sm:$0xff]
    %v1267 = vld [vmem:[#allocation2 + $0x3b8] sm:$0xff]
    %v1268 = vld [vmem:[#allocation2 + $0x3c0] sm:$0xff]
    %v1269 = vld [vmem:[#allocation2 + $0x3c8] sm:$0xff]
    %v1270 = vld [vmem:[#allocation2 + $0x3d0] sm:$0xff]
    %v1271 = vld [vmem:[#allocation2 + $0x3d8] sm:$0xff]
    %v1272 = vld [vmem:[#allocation2 + $0x3e0] sm:$0xff]
    %v1273 = vld [vmem:[#allocation2 + $0x3e8] sm:$0xff]
    %v1274 = vld [vmem:[#allocation2 + $0x3f0] sm:$0xff]
    %v1275 = vld [vmem:[#allocation2 + $0x3f8] sm:$0xff]
    %vm1276 = vcmask 261120
    %v1278 = vsel %vm1276, %v1144, 0
    %v1281 = vsel %vm1276, %v1145, 0
    %v1284 = vsel %vm1276, %v1146, 0
    %v1287 = vsel %vm1276, %v1147, 0
    %1289 = vmatprep.subr.mxu0 0.0
    %1290 = vmatpush1.msra.mxu0 0.0
    %1291 = vmatprep.subr.mxu0 0.0
    %1292 = vmatpush1.msra.mxu0 0.0
    %1293 = vmatprep.subr.mxu0 0.0
    %1294 = vmatpush1.msra.mxu0 0.0
    %1295 = vmatprep.subr.mxu0 0.0
    %1296 = vmatpush1.msra.mxu0 0.0
    %1297 = vmatprep.subr.mxu0 0.0
    %1298 = vmatpush1.msra.mxu0 0.0
    %1299 = vmatprep.subr.mxu0 0.0
    %1300 = vmatpush1.msra.mxu0 0.0
    %1301 = vmatprep.subr.mxu0 0.0
    %1302 = vmatpush1.msra.mxu0 0.0
    %1303 = vmatprep.subr.mxu0 0.0
    %1304 = vmatpush1.msra.mxu0 0.0
    %1305 = vmatprep.subr.mxu0 0.0
    %1306 = vmatpush1.msra.mxu0 0.0
    %1307 = vmatprep.subr.mxu0 0.0
    %1308 = vmatpush1.msra.mxu0 0.0
    %1309 = vmatprep.subr.mxu0 0.0
    %1310 = vmatpush1.msra.mxu0 0.0
    %1311 = vmatprep.subr.mxu0 0.0
    %1312 = vmatpush1.msra.mxu0 0.0
    %1313 = vmatprep.subr.mxu0 %v1245
    %1314 = vmatpush1.msra.mxu0 %v1244
    %1315 = vmatprep.subr.mxu0 %v1213
    %1316 = vmatpush1.msra.mxu0 %v1212
    %1317 = vmatprep.subr.mxu0 %v1181
    %1318 = vmatpush1.msra.mxu0 %v1180
    %1319 = vmatprep.subr.mxu0 %v1149
    %1320 = vmatpush1.msra.mxu0 %v1148
    %1321 = vmatprep.subr.mxu0 0.0
    %1322 = vmatpush2.msra.mxu0 0.0
    %1323 = vmatprep.subr.mxu0 0.0
    %1324 = vmatpush2.msra.mxu0 0.0
    %1325 = vmatprep.subr.mxu0 0.0
    %1326 = vmatpush2.msra.mxu0 0.0
    %1327 = vmatprep.subr.mxu0 0.0
    %1328 = vmatpush2.msra.mxu0 0.0
    %1329 = vmatprep.subr.mxu0 0.0
    %1330 = vmatpush2.msra.mxu0 0.0
    %1331 = vmatprep.subr.mxu0 0.0
    %1332 = vmatpush2.msra.mxu0 0.0
    %1333 = vmatprep.subr.mxu0 0.0
    %1334 = vmatpush2.msra.mxu0 0.0
    %1335 = vmatprep.subr.mxu0 0.0
    %1336 = vmatpush2.msra.mxu0 0.0
    %1337 = vmatprep.subr.mxu0 0.0
    %1338 = vmatpush2.msra.mxu0 0.0
    %1339 = vmatprep.subr.mxu0 0.0
    %1340 = vmatpush2.msra.mxu0 0.0
    %1341 = vmatprep.subr.mxu0 0.0
    %1342 = vmatpush2.msra.mxu0 0.0
    %1343 = vmatprep.subr.mxu0 0.0
    %1344 = vmatpush2.msra.mxu0 0.0
    %1345 = vmatprep.subr.mxu0 0.0
    %1346 = vmatpush2.msra.mxu0 0.0
    %1347 = vmatprep.subr.mxu0 0.0
    %1348 = vmatpush2.msra.mxu0 0.0
    %1349 = vmatprep.subr.mxu0 0.0
    %1350 = vmatpush2.msra.mxu0 0.0
    %1351 = vmatprep.subr.mxu0 0.0
    %1352 = vmatpush2.msra.mxu0 0.0
    %1353 = vmatprep.mubr.f32.mxu0 0.0
    %1354 = vmatmul.mubr.f32.gmra.mxu0 %v1278
    %v1355 = vpop.f32.mrf.mxu0
    %v1356 = vadd.f32 6.0, %v1355
    %v1357 = vpop.f32.mrf.mxu0
    %v1358 = vadd.f32 6.0, %v1357
    %1359 = vmatprep.mubr.f32.mxu0 0.0
    %1360 = vmatmul.mubr.f32.gmra.mxu0 %v1281
    %v1361 = vpop.f32.mrf.mxu0
    %v1362 = vadd.f32 6.0, %v1361
    %v1363 = vpop.f32.mrf.mxu0
    %v1364 = vadd.f32 6.0, %v1363
    %1365 = vmatprep.mubr.f32.mxu0 0.0
    %1366 = vmatmul.mubr.f32.gmra.mxu0 %v1284
    %v1367 = vpop.f32.mrf.mxu0
    %v1368 = vadd.f32 6.0, %v1367
    %v1369 = vpop.f32.mrf.mxu0
    %v1370 = vadd.f32 6.0, %v1369
    %1371 = vmatprep.mubr.f32.mxu0 0.0
    %1372 = vmatmul.mubr.f32.gmra.mxu0 %v1287
    %v1373 = vpop.f32.mrf.mxu0
    %v1374 = vadd.f32 6.0, %v1373
    %v1375 = vpop.f32.mrf.mxu0
    %v1376 = vadd.f32 6.0, %v1375
    %1377 = vdwg.mxu0
    %1378 = vmatprep.subr.mxu0 0.0
    %1379 = vmatpush1.msra.mxu0 0.0
    %1380 = vmatprep.subr.mxu0 0.0
    %1381 = vmatpush1.msra.mxu0 0.0
    %1382 = vmatprep.subr.mxu0 0.0
    %1383 = vmatpush1.msra.mxu0 0.0
    %1384 = vmatprep.subr.mxu0 0.0
    %1385 = vmatpush1.msra.mxu0 0.0
    %1386 = vmatprep.subr.mxu0 0.0
    %1387 = vmatpush1.msra.mxu0 0.0
    %1388 = vmatprep.subr.mxu0 0.0
    %1389 = vmatpush1.msra.mxu0 0.0
    %1390 = vmatprep.subr.mxu0 0.0
    %1391 = vmatpush1.msra.mxu0 0.0
    %1392 = vmatprep.subr.mxu0 0.0
    %1393 = vmatpush1.msra.mxu0 0.0
    %1394 = vmatprep.subr.mxu0 0.0
    %1395 = vmatpush1.msra.mxu0 0.0
    %1396 = vmatprep.subr.mxu0 0.0
    %1397 = vmatpush1.msra.mxu0 0.0
    %1398 = vmatprep.subr.mxu0 0.0
    %1399 = vmatpush1.msra.mxu0 0.0
    %1400 = vmatprep.subr.mxu0 0.0
    %1401 = vmatpush1.msra.mxu0 0.0
    %1402 = vmatprep.subr.mxu0 %v1247
    %1403 = vmatpush1.msra.mxu0 %v1246
    %1404 = vmatprep.subr.mxu0 %v1215
    %1405 = vmatpush1.msra.mxu0 %v1214
    %1406 = vmatprep.subr.mxu0 %v1183
    %1407 = vmatpush1.msra.mxu0 %v1182
    %1408 = vmatprep.subr.mxu0 %v1151
    %1409 = vmatpush1.msra.mxu0 %v1150
    %1410 = vmatprep.subr.mxu0 0.0
    %1411 = vmatpush2.msra.mxu0 0.0
    %1412 = vmatprep.subr.mxu0 0.0
    %1413 = vmatpush2.msra.mxu0 0.0
    %1414 = vmatprep.subr.mxu0 0.0
    %1415 = vmatpush2.msra.mxu0 0.0
    %1416 = vmatprep.subr.mxu0 0.0
    %1417 = vmatpush2.msra.mxu0 0.0
    %1418 = vmatprep.subr.mxu0 0.0
    %1419 = vmatpush2.msra.mxu0 0.0
    %1420 = vmatprep.subr.mxu0 0.0
    %1421 = vmatpush2.msra.mxu0 0.0
    %1422 = vmatprep.subr.mxu0 0.0
    %1423 = vmatpush2.msra.mxu0 0.0
    %1424 = vmatprep.subr.mxu0 0.0
    %1425 = vmatpush2.msra.mxu0 0.0
    %1426 = vmatprep.subr.mxu0 0.0
    %1427 = vmatpush2.msra.mxu0 0.0
    %1428 = vmatprep.subr.mxu0 0.0
    %1429 = vmatpush2.msra.mxu0 0.0
    %1430 = vmatprep.subr.mxu0 0.0
    %1431 = vmatpush2.msra.mxu0 0.0
    %1432 = vmatprep.subr.mxu0 0.0
    %1433 = vmatpush2.msra.mxu0 0.0
    %1434 = vmatprep.subr.mxu0 0.0
    %1435 = vmatpush2.msra.mxu0 0.0
    %1436 = vmatprep.subr.mxu0 0.0
    %1437 = vmatpush2.msra.mxu0 0.0
    %1438 = vmatprep.subr.mxu0 0.0
    %1439 = vmatpush2.msra.mxu0 0.0
    %1440 = vmatprep.subr.mxu0 0.0
    %1441 = vmatpush2.msra.mxu0 0.0
    %1442 = vmatprep.mubr.f32.mxu0 0.0
    %1443 = vmatmul.mubr.f32.gmra.mxu0 %v1278
    %v1444 = vpop.f32.mrf.mxu0
    %v1445 = vadd.f32 6.0, %v1444
    %v1446 = vpop.f32.mrf.mxu0
    %v1447 = vadd.f32 6.0, %v1446
    %1448 = vmatprep.mubr.f32.mxu0 0.0
    %1449 = vmatmul.mubr.f32.gmra.mxu0 %v1281
    %v1450 = vpop.f32.mrf.mxu0
    %v1451 = vadd.f32 6.0, %v1450
    %v1452 = vpop.f32.mrf.mxu0
    %v1453 = vadd.f32 6.0, %v1452
    %1454 = vmatprep.mubr.f32.mxu0 0.0
    %1455 = vmatmul.mubr.f32.gmra.mxu0 %v1284
    %v1456 = vpop.f32.mrf.mxu0
    %v1457 = vadd.f32 6.0, %v1456
    %v1458 = vpop.f32.mrf.mxu0
    %v1459 = vadd.f32 6.0, %v1458
    %1460 = vmatprep.mubr.f32.mxu0 0.0
    %1461 = vmatmul.mubr.f32.gmra.mxu0 %v1287
    %v1462 = vpop.f32.mrf.mxu0
    %v1463 = vadd.f32 6.0, %v1462
    %v1464 = vpop.f32.mrf.mxu0
    %v1465 = vadd.f32 6.0, %v1464
    %1466 = vdwg.mxu0
    %1467 = vmatprep.subr.mxu0 0.0
    %1468 = vmatpush1.msra.mxu0 0.0
    %1469 = vmatprep.subr.mxu0 0.0
    %1470 = vmatpush1.msra.mxu0 0.0
    %1471 = vmatprep.subr.mxu0 0.0
    %1472 = vmatpush1.msra.mxu0 0.0
    %1473 = vmatprep.subr.mxu0 0.0
    %1474 = vmatpush1.msra.mxu0 0.0
    %1475 = vmatprep.subr.mxu0 0.0
    %1476 = vmatpush1.msra.mxu0 0.0
    %1477 = vmatprep.subr.mxu0 0.0
    %1478 = vmatpush1.msra.mxu0 0.0
    %1479 = vmatprep.subr.mxu0 0.0
    %1480 = vmatpush1.msra.mxu0 0.0
    %1481 = vmatprep.subr.mxu0 0.0
    %1482 = vmatpush1.msra.mxu0 0.0
    %1483 = vmatprep.subr.mxu0 0.0
    %1484 = vmatpush1.msra.mxu0 0.0
    %1485 = vmatprep.subr.mxu0 0.0
    %1486 = vmatpush1.msra.mxu0 0.0
    %1487 = vmatprep.subr.mxu0 0.0
    %1488 = vmatpush1.msra.mxu0 0.0
    %1489 = vmatprep.subr.mxu0 0.0
    %1490 = vmatpush1.msra.mxu0 0.0
    %1491 = vmatprep.subr.mxu0 %v1249
    %1492 = vmatpush1.msra.mxu0 %v1248
    %1493 = vmatprep.subr.mxu0 %v1217
    %1494 = vmatpush1.msra.mxu0 %v1216
    %1495 = vmatprep.subr.mxu0 %v1185
    %1496 = vmatpush1.msra.mxu0 %v1184
    %1497 = vmatprep.subr.mxu0 %v1153
    %1498 = vmatpush1.msra.mxu0 %v1152
    %1499 = vmatprep.subr.mxu0 0.0
    %1500 = vmatpush2.msra.mxu0 0.0
    %1501 = vmatprep.subr.mxu0 0.0
    %1502 = vmatpush2.msra.mxu0 0.0
    %1503 = vmatprep.subr.mxu0 0.0
    %1504 = vmatpush2.msra.mxu0 0.0
    %1505 = vmatprep.subr.mxu0 0.0
    %1506 = vmatpush2.msra.mxu0 0.0
    %1507 = vmatprep.subr.mxu0 0.0
    %1508 = vmatpush2.msra.mxu0 0.0
    %1509 = vmatprep.subr.mxu0 0.0
    %1510 = vmatpush2.msra.mxu0 0.0
    %1511 = vmatprep.subr.mxu0 0.0
    %1512 = vmatpush2.msra.mxu0 0.0
    %1513 = vmatprep.subr.mxu0 0.0
    %1514 = vmatpush2.msra.mxu0 0.0
    %1515 = vmatprep.subr.mxu0 0.0
    %1516 = vmatpush2.msra.mxu0 0.0
    %1517 = vmatprep.subr.mxu0 0.0
    %1518 = vmatpush2.msra.mxu0 0.0
    %1519 = vmatprep.subr.mxu0 0.0
    %1520 = vmatpush2.msra.mxu0 0.0
    %1521 = vmatprep.subr.mxu0 0.0
    %1522 = vmatpush2.msra.mxu0 0.0
    %1523 = vmatprep.subr.mxu0 0.0
    %1524 = vmatpush2.msra.mxu0 0.0
    %1525 = vmatprep.subr.mxu0 0.0
    %1526 = vmatpush2.msra.mxu0 0.0
    %1527 = vmatprep.subr.mxu0 0.0
    %1528 = vmatpush2.msra.mxu0 0.0
    %1529 = vmatprep.subr.mxu0 0.0
    %1530 = vmatpush2.msra.mxu0 0.0
    %1531 = vmatprep.mubr.f32.mxu0 0.0
    %1532 = vmatmul.mubr.f32.gmra.mxu0 %v1278
    %v1533 = vpop.f32.mrf.mxu0
    %v1534 = vadd.f32 6.0, %v1533
    %v1535 = vpop.f32.mrf.mxu0
    %v1536 = vadd.f32 6.0, %v1535
    %1537 = vmatprep.mubr.f32.mxu0 0.0
    %1538 = vmatmul.mubr.f32.gmra.mxu0 %v1281
    %v1539 = vpop.f32.mrf.mxu0
    %v1540 = vadd.f32 6.0, %v1539
    %v1541 = vpop.f32.mrf.mxu0
    %v1542 = vadd.f32 6.0, %v1541
    %1543 = vmatprep.mubr.f32.mxu0 0.0
    %1544 = vmatmul.mubr.f32.gmra.mxu0 %v1284
    %v1545 = vpop.f32.mrf.mxu0
    %v1546 = vadd.f32 6.0, %v1545
    %v1547 = vpop.f32.mrf.mxu0
    %v1548 = vadd.f32 6.0, %v1547
    %1549 = vmatprep.mubr.f32.mxu0 0.0
    %1550 = vmatmul.mubr.f32.gmra.mxu0 %v1287
    %v1551 = vpop.f32.mrf.mxu0
    %v1552 = vadd.f32 6.0, %v1551
    %v1553 = vpop.f32.mrf.mxu0
    %v1554 = vadd.f32 6.0, %v1553
    %1555 = vdwg.mxu0
    %1556 = vmatprep.subr.mxu0 0.0
    %1557 = vmatpush1.msra.mxu0 0.0
    %1558 = vmatprep.subr.mxu0 0.0
    %1559 = vmatpush1.msra.mxu0 0.0
    %1560 = vmatprep.subr.mxu0 0.0
    %1561 = vmatpush1.msra.mxu0 0.0
    %1562 = vmatprep.subr.mxu0 0.0
    %1563 = vmatpush1.msra.mxu0 0.0
    %1564 = vmatprep.subr.mxu0 0.0
    %1565 = vmatpush1.msra.mxu0 0.0
    %1566 = vmatprep.subr.mxu0 0.0
    %1567 = vmatpush1.msra.mxu0 0.0
    %1568 = vmatprep.subr.mxu0 0.0
    %1569 = vmatpush1.msra.mxu0 0.0
    %1570 = vmatprep.subr.mxu0 0.0
    %1571 = vmatpush1.msra.mxu0 0.0
    %1572 = vmatprep.subr.mxu0 0.0
    %1573 = vmatpush1.msra.mxu0 0.0
    %1574 = vmatprep.subr.mxu0 0.0
    %1575 = vmatpush1.msra.mxu0 0.0
    %1576 = vmatprep.subr.mxu0 0.0
    %1577 = vmatpush1.msra.mxu0 0.0
    %1578 = vmatprep.subr.mxu0 0.0
    %1579 = vmatpush1.msra.mxu0 0.0
    %1580 = vmatprep.subr.mxu0 %v1251
    %1581 = vmatpush1.msra.mxu0 %v1250
    %1582 = vmatprep.subr.mxu0 %v1219
    %1583 = vmatpush1.msra.mxu0 %v1218
    %1584 = vmatprep.subr.mxu0 %v1187
    %1585 = vmatpush1.msra.mxu0 %v1186
    %1586 = vmatprep.subr.mxu0 %v1155
    %1587 = vmatpush1.msra.mxu0 %v1154
    %1588 = vmatprep.subr.mxu0 0.0
    %1589 = vmatpush2.msra.mxu0 0.0
    %1590 = vmatprep.subr.mxu0 0.0
    %1591 = vmatpush2.msra.mxu0 0.0
    %1592 = vmatprep.subr.mxu0 0.0
    %1593 = vmatpush2.msra.mxu0 0.0
    %1594 = vmatprep.subr.mxu0 0.0
    %1595 = vmatpush2.msra.mxu0 0.0
    %1596 = vmatprep.subr.mxu0 0.0
    %1597 = vmatpush2.msra.mxu0 0.0
    %1598 = vmatprep.subr.mxu0 0.0
    %1599 = vmatpush2.msra.mxu0 0.0
    %1600 = vmatprep.subr.mxu0 0.0
    %1601 = vmatpush2.msra.mxu0 0.0
    %1602 = vmatprep.subr.mxu0 0.0
    %1603 = vmatpush2.msra.mxu0 0.0
    %1604 = vmatprep.subr.mxu0 0.0
    %1605 = vmatpush2.msra.mxu0 0.0
    %1606 = vmatprep.subr.mxu0 0.0
    %1607 = vmatpush2.msra.mxu0 0.0
    %1608 = vmatprep.subr.mxu0 0.0
    %1609 = vmatpush2.msra.mxu0 0.0
    %1610 = vmatprep.subr.mxu0 0.0
    %1611 = vmatpush2.msra.mxu0 0.0
    %1612 = vmatprep.subr.mxu0 0.0
    %1613 = vmatpush2.msra.mxu0 0.0
    %1614 = vmatprep.subr.mxu0 0.0
    %1615 = vmatpush2.msra.mxu0 0.0
    %1616 = vmatprep.subr.mxu0 0.0
    %1617 = vmatpush2.msra.mxu0 0.0
    %1618 = vmatprep.subr.mxu0 0.0
    %1619 = vmatpush2.msra.mxu0 0.0
    %1620 = vmatprep.mubr.f32.mxu0 0.0
    %1621 = vmatmul.mubr.f32.gmra.mxu0 %v1278
    %v1622 = vpop.f32.mrf.mxu0
    %v1623 = vadd.f32 6.0, %v1622
    %v1624 = vpop.f32.mrf.mxu0
    %v1625 = vadd.f32 6.0, %v1624
    %1626 = vmatprep.mubr.f32.mxu0 0.0
    %1627 = vmatmul.mubr.f32.gmra.mxu0 %v1281
    %v1628 = vpop.f32.mrf.mxu0
    %v1629 = vadd.f32 6.0, %v1628
    %v1630 = vpop.f32.mrf.mxu0
    %v1631 = vadd.f32 6.0, %v1630
    %1632 = vmatprep.mubr.f32.mxu0 0.0
    %1633 = vmatmul.mubr.f32.gmra.mxu0 %v1284
    %v1634 = vpop.f32.mrf.mxu0
    %v1635 = vadd.f32 6.0, %v1634
    %v1636 = vpop.f32.mrf.mxu0
    %v1637 = vadd.f32 6.0, %v1636
    %1638 = vmatprep.mubr.f32.mxu0 0.0
    %1639 = vmatmul.mubr.f32.gmra.mxu0 %v1287
    %v1640 = vpop.f32.mrf.mxu0
    %v1641 = vadd.f32 6.0, %v1640
    %v1642 = vpop.f32.mrf.mxu0
    %v1643 = vadd.f32 6.0, %v1642
    %1644 = vdwg.mxu0
    %1645 = vmatprep.subr.mxu0 0.0
    %1646 = vmatpush1.msra.mxu0 0.0
    %1647 = vmatprep.subr.mxu0 0.0
    %1648 = vmatpush1.msra.mxu0 0.0
    %1649 = vmatprep.subr.mxu0 0.0
    %1650 = vmatpush1.msra.mxu0 0.0
    %1651 = vmatprep.subr.mxu0 0.0
    %1652 = vmatpush1.msra.mxu0 0.0
    %1653 = vmatprep.subr.mxu0 0.0
    %1654 = vmatpush1.msra.mxu0 0.0
    %1655 = vmatprep.subr.mxu0 0.0
    %1656 = vmatpush1.msra.mxu0 0.0
    %1657 = vmatprep.subr.mxu0 0.0
    %1658 = vmatpush1.msra.mxu0 0.0
    %1659 = vmatprep.subr.mxu0 0.0
    %1660 = vmatpush1.msra.mxu0 0.0
    %1661 = vmatprep.subr.mxu0 0.0
    %1662 = vmatpush1.msra.mxu0 0.0
    %1663 = vmatprep.subr.mxu0 0.0
    %1664 = vmatpush1.msra.mxu0 0.0
    %1665 = vmatprep.subr.mxu0 0.0
    %1666 = vmatpush1.msra.mxu0 0.0
    %1667 = vmatprep.subr.mxu0 0.0
    %1668 = vmatpush1.msra.mxu0 0.0
    %1669 = vmatprep.subr.mxu0 %v1253
    %1670 = vmatpush1.msra.mxu0 %v1252
    %1671 = vmatprep.subr.mxu0 %v1221
    %1672 = vmatpush1.msra.mxu0 %v1220
    %1673 = vmatprep.subr.mxu0 %v1189
    %1674 = vmatpush1.msra.mxu0 %v1188
    %1675 = vmatprep.subr.mxu0 %v1157
    %1676 = vmatpush1.msra.mxu0 %v1156
    %1677 = vmatprep.subr.mxu0 0.0
    %1678 = vmatpush2.msra.mxu0 0.0
    %1679 = vmatprep.subr.mxu0 0.0
    %1680 = vmatpush2.msra.mxu0 0.0
    %1681 = vmatprep.subr.mxu0 0.0
    %1682 = vmatpush2.msra.mxu0 0.0
    %1683 = vmatprep.subr.mxu0 0.0
    %1684 = vmatpush2.msra.mxu0 0.0
    %1685 = vmatprep.subr.mxu0 0.0
    %1686 = vmatpush2.msra.mxu0 0.0
    %1687 = vmatprep.subr.mxu0 0.0
    %1688 = vmatpush2.msra.mxu0 0.0
    %1689 = vmatprep.subr.mxu0 0.0
    %1690 = vmatpush2.msra.mxu0 0.0
    %1691 = vmatprep.subr.mxu0 0.0
    %1692 = vmatpush2.msra.mxu0 0.0
    %1693 = vmatprep.subr.mxu0 0.0
    %1694 = vmatpush2.msra.mxu0 0.0
    %1695 = vmatprep.subr.mxu0 0.0
    %1696 = vmatpush2.msra.mxu0 0.0
    %1697 = vmatprep.subr.mxu0 0.0
    %1698 = vmatpush2.msra.mxu0 0.0
    %1699 = vmatprep.subr.mxu0 0.0
    %1700 = vmatpush2.msra.mxu0 0.0
    %1701 = vmatprep.subr.mxu0 0.0
    %1702 = vmatpush2.msra.mxu0 0.0
    %1703 = vmatprep.subr.mxu0 0.0
    %1704 = vmatpush2.msra.mxu0 0.0
    %1705 = vmatprep.subr.mxu0 0.0
    %1706 = vmatpush2.msra.mxu0 0.0
    %1707 = vmatprep.subr.mxu0 0.0
    %1708 = vmatpush2.msra.mxu0 0.0
    %1709 = vmatprep.mubr.f32.mxu0 0.0
    %1710 = vmatmul.mubr.f32.gmra.mxu0 %v1278
    %v1711 = vpop.f32.mrf.mxu0
    %v1712 = vadd.f32 6.0, %v1711
    %v1713 = vpop.f32.mrf.mxu0
    %v1714 = vadd.f32 6.0, %v1713
    %1715 = vmatprep.mubr.f32.mxu0 0.0
    %1716 = vmatmul.mubr.f32.gmra.mxu0 %v1281
    %v1717 = vpop.f32.mrf.mxu0
    %v1718 = vadd.f32 6.0, %v1717
    %v1719 = vpop.f32.mrf.mxu0
    %v1720 = vadd.f32 6.0, %v1719
    %1721 = vmatprep.mubr.f32.mxu0 0.0
    %1722 = vmatmul.mubr.f32.gmra.mxu0 %v1284
    %v1723 = vpop.f32.mrf.mxu0
    %v1724 = vadd.f32 6.0, %v1723
    %v1725 = vpop.f32.mrf.mxu0
    %v1726 = vadd.f32 6.0, %v1725
    %1727 = vmatprep.mubr.f32.mxu0 0.0
    %1728 = vmatmul.mubr.f32.gmra.mxu0 %v1287
    %v1729 = vpop.f32.mrf.mxu0
    %v1730 = vadd.f32 6.0, %v1729
    %v1731 = vpop.f32.mrf.mxu0
    %v1732 = vadd.f32 6.0, %v1731
    %1733 = vdwg.mxu0
    %1734 = vmatprep.subr.mxu0 0.0
    %1735 = vmatpush1.msra.mxu0 0.0
    %1736 = vmatprep.subr.mxu0 0.0
    %1737 = vmatpush1.msra.mxu0 0.0
    %1738 = vmatprep.subr.mxu0 0.0
    %1739 = vmatpush1.msra.mxu0 0.0
    %1740 = vmatprep.subr.mxu0 0.0
    %1741 = vmatpush1.msra.mxu0 0.0
    %1742 = vmatprep.subr.mxu0 0.0
    %1743 = vmatpush1.msra.mxu0 0.0
    %1744 = vmatprep.subr.mxu0 0.0
    %1745 = vmatpush1.msra.mxu0 0.0
    %1746 = vmatprep.subr.mxu0 0.0
    %1747 = vmatpush1.msra.mxu0 0.0
    %1748 = vmatprep.subr.mxu0 0.0
    %1749 = vmatpush1.msra.mxu0 0.0
    %1750 = vmatprep.subr.mxu0 0.0
    %1751 = vmatpush1.msra.mxu0 0.0
    %1752 = vmatprep.subr.mxu0 0.0
    %1753 = vmatpush1.msra.mxu0 0.0
    %1754 = vmatprep.subr.mxu0 0.0
    %1755 = vmatpush1.msra.mxu0 0.0
    %1756 = vmatprep.subr.mxu0 0.0
    %1757 = vmatpush1.msra.mxu0 0.0
    %1758 = vmatprep.subr.mxu0 %v1255
    %1759 = vmatpush1.msra.mxu0 %v1254
    %1760 = vmatprep.subr.mxu0 %v1223
    %1761 = vmatpush1.msra.mxu0 %v1222
    %1762 = vmatprep.subr.mxu0 %v1191
    %1763 = vmatpush1.msra.mxu0 %v1190
    %1764 = vmatprep.subr.mxu0 %v1159
    %1765 = vmatpush1.msra.mxu0 %v1158
    %1766 = vmatprep.subr.mxu0 0.0
    %1767 = vmatpush2.msra.mxu0 0.0
    %1768 = vmatprep.subr.mxu0 0.0
    %1769 = vmatpush2.msra.mxu0 0.0
    %1770 = vmatprep.subr.mxu0 0.0
    %1771 = vmatpush2.msra.mxu0 0.0
    %1772 = vmatprep.subr.mxu0 0.0
    %1773 = vmatpush2.msra.mxu0 0.0
    %1774 = vmatprep.subr.mxu0 0.0
    %1775 = vmatpush2.msra.mxu0 0.0
    %1776 = vmatprep.subr.mxu0 0.0
    %1777 = vmatpush2.msra.mxu0 0.0
    %1778 = vmatprep.subr.mxu0 0.0
    %1779 = vmatpush2.msra.mxu0 0.0
    %1780 = vmatprep.subr.mxu0 0.0
    %1781 = vmatpush2.msra.mxu0 0.0
    %1782 = vmatprep.subr.mxu0 0.0
    %1783 = vmatpush2.msra.mxu0 0.0
    %1784 = vmatprep.subr.mxu0 0.0
    %1785 = vmatpush2.msra.mxu0 0.0
    %1786 = vmatprep.subr.mxu0 0.0
    %1787 = vmatpush2.msra.mxu0 0.0
    %1788 = vmatprep.subr.mxu0 0.0
    %1789 = vmatpush2.msra.mxu0 0.0
    %1790 = vmatprep.subr.mxu0 0.0
    %1791 = vmatpush2.msra.mxu0 0.0
    %1792 = vmatprep.subr.mxu0 0.0
    %1793 = vmatpush2.msra.mxu0 0.0
    %1794 = vmatprep.subr.mxu0 0.0
    %1795 = vmatpush2.msra.mxu0 0.0
    %1796 = vmatprep.subr.mxu0 0.0
    %1797 = vmatpush2.msra.mxu0 0.0
    %1798 = vmatprep.mubr.f32.mxu0 0.0
    %1799 = vmatmul.mubr.f32.gmra.mxu0 %v1278
    %v1800 = vpop.f32.mrf.mxu0
    %v1801 = vadd.f32 6.0, %v1800
    %v1802 = vpop.f32.mrf.mxu0
    %v1803 = vadd.f32 6.0, %v1802
    %1804 = vmatprep.mubr.f32.mxu0 0.0
    %1805 = vmatmul.mubr.f32.gmra.mxu0 %v1281
    %v1806 = vpop.f32.mrf.mxu0
    %v1807 = vadd.f32 6.0, %v1806
    %v1808 = vpop.f32.mrf.mxu0
    %v1809 = vadd.f32 6.0, %v1808
    %1810 = vmatprep.mubr.f32.mxu0 0.0
    %1811 = vmatmul.mubr.f32.gmra.mxu0 %v1284
    %v1812 = vpop.f32.mrf.mxu0
    %v1813 = vadd.f32 6.0, %v1812
    %v1814 = vpop.f32.mrf.mxu0
    %v1815 = vadd.f32 6.0, %v1814
    %1816 = vmatprep.mubr.f32.mxu0 0.0
    %1817 = vmatmul.mubr.f32.gmra.mxu0 %v1287
    %v1818 = vpop.f32.mrf.mxu0
    %v1819 = vadd.f32 6.0, %v1818
    %v1820 = vpop.f32.mrf.mxu0
    %v1821 = vadd.f32 6.0, %v1820
    %1822 = vdwg.mxu0
    %1823 = vmatprep.subr.mxu0 0.0
    %1824 = vmatpush1.msra.mxu0 0.0
    %1825 = vmatprep.subr.mxu0 0.0
    %1826 = vmatpush1.msra.mxu0 0.0
    %1827 = vmatprep.subr.mxu0 0.0
    %1828 = vmatpush1.msra.mxu0 0.0
    %1829 = vmatprep.subr.mxu0 0.0
    %1830 = vmatpush1.msra.mxu0 0.0
    %1831 = vmatprep.subr.mxu0 0.0
    %1832 = vmatpush1.msra.mxu0 0.0
    %1833 = vmatprep.subr.mxu0 0.0
    %1834 = vmatpush1.msra.mxu0 0.0
    %1835 = vmatprep.subr.mxu0 0.0
    %1836 = vmatpush1.msra.mxu0 0.0
    %1837 = vmatprep.subr.mxu0 0.0
    %1838 = vmatpush1.msra.mxu0 0.0
    %1839 = vmatprep.subr.mxu0 0.0
    %1840 = vmatpush1.msra.mxu0 0.0
    %1841 = vmatprep.subr.mxu0 0.0
    %1842 = vmatpush1.msra.mxu0 0.0
    %1843 = vmatprep.subr.mxu0 0.0
    %1844 = vmatpush1.msra.mxu0 0.0
    %1845 = vmatprep.subr.mxu0 0.0
    %1846 = vmatpush1.msra.mxu0 0.0
    %1847 = vmatprep.subr.mxu0 %v1257
    %1848 = vmatpush1.msra.mxu0 %v1256
    %1849 = vmatprep.subr.mxu0 %v1225
    %1850 = vmatpush1.msra.mxu0 %v1224
    %1851 = vmatprep.subr.mxu0 %v1193
    %1852 = vmatpush1.msra.mxu0 %v1192
    %1853 = vmatprep.subr.mxu0 %v1161
    %1854 = vmatpush1.msra.mxu0 %v1160
    %1855 = vmatprep.subr.mxu0 0.0
    %1856 = vmatpush2.msra.mxu0 0.0
    %1857 = vmatprep.subr.mxu0 0.0
    %1858 = vmatpush2.msra.mxu0 0.0
    %1859 = vmatprep.subr.mxu0 0.0
    %1860 = vmatpush2.msra.mxu0 0.0
    %1861 = vmatprep.subr.mxu0 0.0
    %1862 = vmatpush2.msra.mxu0 0.0
    %1863 = vmatprep.subr.mxu0 0.0
    %1864 = vmatpush2.msra.mxu0 0.0
    %1865 = vmatprep.subr.mxu0 0.0
    %1866 = vmatpush2.msra.mxu0 0.0
    %1867 = vmatprep.subr.mxu0 0.0
    %1868 = vmatpush2.msra.mxu0 0.0
    %1869 = vmatprep.subr.mxu0 0.0
    %1870 = vmatpush2.msra.mxu0 0.0
    %1871 = vmatprep.subr.mxu0 0.0
    %1872 = vmatpush2.msra.mxu0 0.0
    %1873 = vmatprep.subr.mxu0 0.0
    %1874 = vmatpush2.msra.mxu0 0.0
    %1875 = vmatprep.subr.mxu0 0.0
    %1876 = vmatpush2.msra.mxu0 0.0
    %1877 = vmatprep.subr.mxu0 0.0
    %1878 = vmatpush2.msra.mxu0 0.0
    %1879 = vmatprep.subr.mxu0 0.0
    %1880 = vmatpush2.msra.mxu0 0.0
    %1881 = vmatprep.subr.mxu0 0.0
    %1882 = vmatpush2.msra.mxu0 0.0
    %1883 = vmatprep.subr.mxu0 0.0
    %1884 = vmatpush2.msra.mxu0 0.0
    %1885 = vmatprep.subr.mxu0 0.0
    %1886 = vmatpush2.msra.mxu0 0.0
    %1887 = vmatprep.mubr.f32.mxu0 0.0
    %1888 = vmatmul.mubr.f32.gmra.mxu0 %v1278
    %v1889 = vpop.f32.mrf.mxu0
    %v1890 = vadd.f32 6.0, %v1889
    %v1891 = vpop.f32.mrf.mxu0
    %v1892 = vadd.f32 6.0, %v1891
    %1893 = vmatprep.mubr.f32.mxu0 0.0
    %1894 = vmatmul.mubr.f32.gmra.mxu0 %v1281
    %v1895 = vpop.f32.mrf.mxu0
    %v1896 = vadd.f32 6.0, %v1895
    %v1897 = vpop.f32.mrf.mxu0
    %v1898 = vadd.f32 6.0, %v1897
    %1899 = vmatprep.mubr.f32.mxu0 0.0
    %1900 = vmatmul.mubr.f32.gmra.mxu0 %v1284
    %v1901 = vpop.f32.mrf.mxu0
    %v1902 = vadd.f32 6.0, %v1901
    %v1903 = vpop.f32.mrf.mxu0
    %v1904 = vadd.f32 6.0, %v1903
    %1905 = vmatprep.mubr.f32.mxu0 0.0
    %1906 = vmatmul.mubr.f32.gmra.mxu0 %v1287
    %v1907 = vpop.f32.mrf.mxu0
    %v1908 = vadd.f32 6.0, %v1907
    %v1909 = vpop.f32.mrf.mxu0
    %v1910 = vadd.f32 6.0, %v1909
    %1911 = vdwg.mxu0
    %1912 = vmatprep.subr.mxu0 0.0
    %1913 = vmatpush1.msra.mxu0 0.0
    %1914 = vmatprep.subr.mxu0 0.0
    %1915 = vmatpush1.msra.mxu0 0.0
    %1916 = vmatprep.subr.mxu0 0.0
    %1917 = vmatpush1.msra.mxu0 0.0
    %1918 = vmatprep.subr.mxu0 0.0
    %1919 = vmatpush1.msra.mxu0 0.0
    %1920 = vmatprep.subr.mxu0 0.0
    %1921 = vmatpush1.msra.mxu0 0.0
    %1922 = vmatprep.subr.mxu0 0.0
    %1923 = vmatpush1.msra.mxu0 0.0
    %1924 = vmatprep.subr.mxu0 0.0
    %1925 = vmatpush1.msra.mxu0 0.0
    %1926 = vmatprep.subr.mxu0 0.0
    %1927 = vmatpush1.msra.mxu0 0.0
    %1928 = vmatprep.subr.mxu0 0.0
    %1929 = vmatpush1.msra.mxu0 0.0
    %1930 = vmatprep.subr.mxu0 0.0
    %1931 = vmatpush1.msra.mxu0 0.0
    %1932 = vmatprep.subr.mxu0 0.0
    %1933 = vmatpush1.msra.mxu0 0.0
    %1934 = vmatprep.subr.mxu0 0.0
    %1935 = vmatpush1.msra.mxu0 0.0
    %1936 = vmatprep.subr.mxu0 %v1259
    %1937 = vmatpush1.msra.mxu0 %v1258
    %1938 = vmatprep.subr.mxu0 %v1227
    %1939 = vmatpush1.msra.mxu0 %v1226
    %1940 = vmatprep.subr.mxu0 %v1195
    %1941 = vmatpush1.msra.mxu0 %v1194
    %1942 = vmatprep.subr.mxu0 %v1163
    %1943 = vmatpush1.msra.mxu0 %v1162
    %1944 = vmatprep.subr.mxu0 0.0
    %1945 = vmatpush2.msra.mxu0 0.0
    %1946 = vmatprep.subr.mxu0 0.0
    %1947 = vmatpush2.msra.mxu0 0.0
    %1948 = vmatprep.subr.mxu0 0.0
    %1949 = vmatpush2.msra.mxu0 0.0
    %1950 = vmatprep.subr.mxu0 0.0
    %1951 = vmatpush2.msra.mxu0 0.0
    %1952 = vmatprep.subr.mxu0 0.0
    %1953 = vmatpush2.msra.mxu0 0.0
    %1954 = vmatprep.subr.mxu0 0.0
    %1955 = vmatpush2.msra.mxu0 0.0
    %1956 = vmatprep.subr.mxu0 0.0
    %1957 = vmatpush2.msra.mxu0 0.0
    %1958 = vmatprep.subr.mxu0 0.0
    %1959 = vmatpush2.msra.mxu0 0.0
    %1960 = vmatprep.subr.mxu0 0.0
    %1961 = vmatpush2.msra.mxu0 0.0
    %1962 = vmatprep.subr.mxu0 0.0
    %1963 = vmatpush2.msra.mxu0 0.0
    %1964 = vmatprep.subr.mxu0 0.0
    %1965 = vmatpush2.msra.mxu0 0.0
    %1966 = vmatprep.subr.mxu0 0.0
    %1967 = vmatpush2.msra.mxu0 0.0
    %1968 = vmatprep.subr.mxu0 0.0
    %1969 = vmatpush2.msra.mxu0 0.0
    %1970 = vmatprep.subr.mxu0 0.0
    %1971 = vmatpush2.msra.mxu0 0.0
    %1972 = vmatprep.subr.mxu0 0.0
    %1973 = vmatpush2.msra.mxu0 0.0
    %1974 = vmatprep.subr.mxu0 0.0
    %1975 = vmatpush2.msra.mxu0 0.0
    %1976 = vmatprep.mubr.f32.mxu0 0.0
    %1977 = vmatmul.mubr.f32.gmra.mxu0 %v1278
    %v1978 = vpop.f32.mrf.mxu0
    %v1979 = vadd.f32 6.0, %v1978
    %v1980 = vpop.f32.mrf.mxu0
    %v1981 = vadd.f32 6.0, %v1980
    %1982 = vmatprep.mubr.f32.mxu0 0.0
    %1983 = vmatmul.mubr.f32.gmra.mxu0 %v1281
    %v1984 = vpop.f32.mrf.mxu0
    %v1985 = vadd.f32 6.0, %v1984
    %v1986 = vpop.f32.mrf.mxu0
    %v1987 = vadd.f32 6.0, %v1986
    %1988 = vmatprep.mubr.f32.mxu0 0.0
    %1989 = vmatmul.mubr.f32.gmra.mxu0 %v1284
    %v1990 = vpop.f32.mrf.mxu0
    %v1991 = vadd.f32 6.0, %v1990
    %v1992 = vpop.f32.mrf.mxu0
    %v1993 = vadd.f32 6.0, %v1992
    %1994 = vmatprep.mubr.f32.mxu0 0.0
    %1995 = vmatmul.mubr.f32.gmra.mxu0 %v1287
    %v1996 = vpop.f32.mrf.mxu0
    %v1997 = vadd.f32 6.0, %v1996
    %v1998 = vpop.f32.mrf.mxu0
    %v1999 = vadd.f32 6.0, %v1998
    %2000 = vdwg.mxu0
    %2001 = vmatprep.subr.mxu0 0.0
    %2002 = vmatpush1.msra.mxu0 0.0
    %2003 = vmatprep.subr.mxu0 0.0
    %2004 = vmatpush1.msra.mxu0 0.0
    %2005 = vmatprep.subr.mxu0 0.0
    %2006 = vmatpush1.msra.mxu0 0.0
    %2007 = vmatprep.subr.mxu0 0.0
    %2008 = vmatpush1.msra.mxu0 0.0
    %2009 = vmatprep.subr.mxu0 0.0
    %2010 = vmatpush1.msra.mxu0 0.0
    %2011 = vmatprep.subr.mxu0 0.0
    %2012 = vmatpush1.msra.mxu0 0.0
    %2013 = vmatprep.subr.mxu0 0.0
    %2014 = vmatpush1.msra.mxu0 0.0
    %2015 = vmatprep.subr.mxu0 0.0
    %2016 = vmatpush1.msra.mxu0 0.0
    %2017 = vmatprep.subr.mxu0 0.0
    %2018 = vmatpush1.msra.mxu0 0.0
    %2019 = vmatprep.subr.mxu0 0.0
    %2020 = vmatpush1.msra.mxu0 0.0
    %2021 = vmatprep.subr.mxu0 0.0
    %2022 = vmatpush1.msra.mxu0 0.0
    %2023 = vmatprep.subr.mxu0 0.0
    %2024 = vmatpush1.msra.mxu0 0.0
    %2025 = vmatprep.subr.mxu0 %v1261
    %2026 = vmatpush1.msra.mxu0 %v1260
    %2027 = vmatprep.subr.mxu0 %v1229
    %2028 = vmatpush1.msra.mxu0 %v1228
    %2029 = vmatprep.subr.mxu0 %v1197
    %2030 = vmatpush1.msra.mxu0 %v1196
    %2031 = vmatprep.subr.mxu0 %v1165
    %2032 = vmatpush1.msra.mxu0 %v1164
    %2033 = vmatprep.subr.mxu0 0.0
    %2034 = vmatpush2.msra.mxu0 0.0
    %2035 = vmatprep.subr.mxu0 0.0
    %2036 = vmatpush2.msra.mxu0 0.0
    %2037 = vmatprep.subr.mxu0 0.0
    %2038 = vmatpush2.msra.mxu0 0.0
    %2039 = vmatprep.subr.mxu0 0.0
    %2040 = vmatpush2.msra.mxu0 0.0
    %2041 = vmatprep.subr.mxu0 0.0
    %2042 = vmatpush2.msra.mxu0 0.0
    %2043 = vmatprep.subr.mxu0 0.0
    %2044 = vmatpush2.msra.mxu0 0.0
    %2045 = vmatprep.subr.mxu0 0.0
    %2046 = vmatpush2.msra.mxu0 0.0
    %2047 = vmatprep.subr.mxu0 0.0
    %2048 = vmatpush2.msra.mxu0 0.0
    %2049 = vmatprep.subr.mxu0 0.0
    %2050 = vmatpush2.msra.mxu0 0.0
    %2051 = vmatprep.subr.mxu0 0.0
    %2052 = vmatpush2.msra.mxu0 0.0
    %2053 = vmatprep.subr.mxu0 0.0
    %2054 = vmatpush2.msra.mxu0 0.0
    %2055 = vmatprep.subr.mxu0 0.0
    %2056 = vmatpush2.msra.mxu0 0.0
    %2057 = vmatprep.subr.mxu0 0.0
    %2058 = vmatpush2.msra.mxu0 0.0
    %2059 = vmatprep.subr.mxu0 0.0
    %2060 = vmatpush2.msra.mxu0 0.0
    %2061 = vmatprep.subr.mxu0 0.0
    %2062 = vmatpush2.msra.mxu0 0.0
    %2063 = vmatprep.subr.mxu0 0.0
    %2064 = vmatpush2.msra.mxu0 0.0
    %2065 = vmatprep.mubr.f32.mxu0 0.0
    %2066 = vmatmul.mubr.f32.gmra.mxu0 %v1278
    %v2067 = vpop.f32.mrf.mxu0
    %v2068 = vadd.f32 6.0, %v2067
    %v2069 = vpop.f32.mrf.mxu0
    %v2070 = vadd.f32 6.0, %v2069
    %2071 = vmatprep.mubr.f32.mxu0 0.0
    %2072 = vmatmul.mubr.f32.gmra.mxu0 %v1281
    %v2073 = vpop.f32.mrf.mxu0
    %v2074 = vadd.f32 6.0, %v2073
    %v2075 = vpop.f32.mrf.mxu0
    %v2076 = vadd.f32 6.0, %v2075
    %2077 = vmatprep.mubr.f32.mxu0 0.0
    %2078 = vmatmul.mubr.f32.gmra.mxu0 %v1284
    %v2079 = vpop.f32.mrf.mxu0
    %v2080 = vadd.f32 6.0, %v2079
    %v2081 = vpop.f32.mrf.mxu0
    %v2082 = vadd.f32 6.0, %v2081
    %2083 = vmatprep.mubr.f32.mxu0 0.0
    %2084 = vmatmul.mubr.f32.gmra.mxu0 %v1287
    %v2085 = vpop.f32.mrf.mxu0
    %v2086 = vadd.f32 6.0, %v2085
    %v2087 = vpop.f32.mrf.mxu0
    %v2088 = vadd.f32 6.0, %v2087
    %2089 = vdwg.mxu0
    %2090 = vmatprep.subr.mxu0 0.0
    %2091 = vmatpush1.msra.mxu0 0.0
    %2092 = vmatprep.subr.mxu0 0.0
    %2093 = vmatpush1.msra.mxu0 0.0
    %2094 = vmatprep.subr.mxu0 0.0
    %2095 = vmatpush1.msra.mxu0 0.0
    %2096 = vmatprep.subr.mxu0 0.0
    %2097 = vmatpush1.msra.mxu0 0.0
    %2098 = vmatprep.subr.mxu0 0.0
    %2099 = vmatpush1.msra.mxu0 0.0
    %2100 = vmatprep.subr.mxu0 0.0
    %2101 = vmatpush1.msra.mxu0 0.0
    %2102 = vmatprep.subr.mxu0 0.0
    %2103 = vmatpush1.msra.mxu0 0.0
    %2104 = vmatprep.subr.mxu0 0.0
    %2105 = vmatpush1.msra.mxu0 0.0
    %2106 = vmatprep.subr.mxu0 0.0
    %2107 = vmatpush1.msra.mxu0 0.0
    %2108 = vmatprep.subr.mxu0 0.0
    %2109 = vmatpush1.msra.mxu0 0.0
    %2110 = vmatprep.subr.mxu0 0.0
    %2111 = vmatpush1.msra.mxu0 0.0
    %2112 = vmatprep.subr.mxu0 0.0
    %2113 = vmatpush1.msra.mxu0 0.0
    %2114 = vmatprep.subr.mxu0 %v1263
    %2115 = vmatpush1.msra.mxu0 %v1262
    %2116 = vmatprep.subr.mxu0 %v1231
    %2117 = vmatpush1.msra.mxu0 %v1230
    %2118 = vmatprep.subr.mxu0 %v1199
    %2119 = vmatpush1.msra.mxu0 %v1198
    %2120 = vmatprep.subr.mxu0 %v1167
    %2121 = vmatpush1.msra.mxu0 %v1166
    %2122 = vmatprep.subr.mxu0 0.0
    %2123 = vmatpush2.msra.mxu0 0.0
    %2124 = vmatprep.subr.mxu0 0.0
    %2125 = vmatpush2.msra.mxu0 0.0
    %2126 = vmatprep.subr.mxu0 0.0
    %2127 = vmatpush2.msra.mxu0 0.0
    %2128 = vmatprep.subr.mxu0 0.0
    %2129 = vmatpush2.msra.mxu0 0.0
    %2130 = vmatprep.subr.mxu0 0.0
    %2131 = vmatpush2.msra.mxu0 0.0
    %2132 = vmatprep.subr.mxu0 0.0
    %2133 = vmatpush2.msra.mxu0 0.0
    %2134 = vmatprep.subr.mxu0 0.0
    %2135 = vmatpush2.msra.mxu0 0.0
    %2136 = vmatprep.subr.mxu0 0.0
    %2137 = vmatpush2.msra.mxu0 0.0
    %2138 = vmatprep.subr.mxu0 0.0
    %2139 = vmatpush2.msra.mxu0 0.0
    %2140 = vmatprep.subr.mxu0 0.0
    %2141 = vmatpush2.msra.mxu0 0.0
    %2142 = vmatprep.subr.mxu0 0.0
    %2143 = vmatpush2.msra.mxu0 0.0
    %2144 = vmatprep.subr.mxu0 0.0
    %2145 = vmatpush2.msra.mxu0 0.0
    %2146 = vmatprep.subr.mxu0 0.0
    %2147 = vmatpush2.msra.mxu0 0.0
    %2148 = vmatprep.subr.mxu0 0.0
    %2149 = vmatpush2.msra.mxu0 0.0
    %2150 = vmatprep.subr.mxu0 0.0
    %2151 = vmatpush2.msra.mxu0 0.0
    %2152 = vmatprep.subr.mxu0 0.0
    %2153 = vmatpush2.msra.mxu0 0.0
    %2154 = vmatprep.mubr.f32.mxu0 0.0
    %2155 = vmatmul.mubr.f32.gmra.mxu0 %v1278
    %v2156 = vpop.f32.mrf.mxu0
    %v2157 = vadd.f32 6.0, %v2156
    %v2158 = vpop.f32.mrf.mxu0
    %v2159 = vadd.f32 6.0, %v2158
    %2160 = vmatprep.mubr.f32.mxu0 0.0
    %2161 = vmatmul.mubr.f32.gmra.mxu0 %v1281
    %v2162 = vpop.f32.mrf.mxu0
    %v2163 = vadd.f32 6.0, %v2162
    %v2164 = vpop.f32.mrf.mxu0
    %v2165 = vadd.f32 6.0, %v2164
    %2166 = vmatprep.mubr.f32.mxu0 0.0
    %2167 = vmatmul.mubr.f32.gmra.mxu0 %v1284
    %v2168 = vpop.f32.mrf.mxu0
    %v2169 = vadd.f32 6.0, %v2168
    %v2170 = vpop.f32.mrf.mxu0
    %v2171 = vadd.f32 6.0, %v2170
    %2172 = vmatprep.mubr.f32.mxu0 0.0
    %2173 = vmatmul.mubr.f32.gmra.mxu0 %v1287
    %v2174 = vpop.f32.mrf.mxu0
    %v2175 = vadd.f32 6.0, %v2174
    %v2176 = vpop.f32.mrf.mxu0
    %v2177 = vadd.f32 6.0, %v2176
    %2178 = vdwg.mxu0
    %2179 = vmatprep.subr.mxu0 0.0
    %2180 = vmatpush1.msra.mxu0 0.0
    %2181 = vmatprep.subr.mxu0 0.0
    %2182 = vmatpush1.msra.mxu0 0.0
    %2183 = vmatprep.subr.mxu0 0.0
    %2184 = vmatpush1.msra.mxu0 0.0
    %2185 = vmatprep.subr.mxu0 0.0
    %2186 = vmatpush1.msra.mxu0 0.0
    %2187 = vmatprep.subr.mxu0 0.0
    %2188 = vmatpush1.msra.mxu0 0.0
    %2189 = vmatprep.subr.mxu0 0.0
    %2190 = vmatpush1.msra.mxu0 0.0
    %2191 = vmatprep.subr.mxu0 0.0
    %2192 = vmatpush1.msra.mxu0 0.0
    %2193 = vmatprep.subr.mxu0 0.0
    %2194 = vmatpush1.msra.mxu0 0.0
    %2195 = vmatprep.subr.mxu0 0.0
    %2196 = vmatpush1.msra.mxu0 0.0
    %2197 = vmatprep.subr.mxu0 0.0
    %2198 = vmatpush1.msra.mxu0 0.0
    %2199 = vmatprep.subr.mxu0 0.0
    %2200 = vmatpush1.msra.mxu0 0.0
    %2201 = vmatprep.subr.mxu0 0.0
    %2202 = vmatpush1.msra.mxu0 0.0
    %2203 = vmatprep.subr.mxu0 %v1265
    %2204 = vmatpush1.msra.mxu0 %v1264
    %2205 = vmatprep.subr.mxu0 %v1233
    %2206 = vmatpush1.msra.mxu0 %v1232
    %2207 = vmatprep.subr.mxu0 %v1201
    %2208 = vmatpush1.msra.mxu0 %v1200
    %2209 = vmatprep.subr.mxu0 %v1169
    %2210 = vmatpush1.msra.mxu0 %v1168
    %2211 = vmatprep.subr.mxu0 0.0
    %2212 = vmatpush2.msra.mxu0 0.0
    %2213 = vmatprep.subr.mxu0 0.0
    %2214 = vmatpush2.msra.mxu0 0.0
    %2215 = vmatprep.subr.mxu0 0.0
    %2216 = vmatpush2.msra.mxu0 0.0
    %2217 = vmatprep.subr.mxu0 0.0
    %2218 = vmatpush2.msra.mxu0 0.0
    %2219 = vmatprep.subr.mxu0 0.0
    %2220 = vmatpush2.msra.mxu0 0.0
    %2221 = vmatprep.subr.mxu0 0.0
    %2222 = vmatpush2.msra.mxu0 0.0
    %2223 = vmatprep.subr.mxu0 0.0
    %2224 = vmatpush2.msra.mxu0 0.0
    %2225 = vmatprep.subr.mxu0 0.0
    %2226 = vmatpush2.msra.mxu0 0.0
    %2227 = vmatprep.subr.mxu0 0.0
    %2228 = vmatpush2.msra.mxu0 0.0
    %2229 = vmatprep.subr.mxu0 0.0
    %2230 = vmatpush2.msra.mxu0 0.0
    %2231 = vmatprep.subr.mxu0 0.0
    %2232 = vmatpush2.msra.mxu0 0.0
    %2233 = vmatprep.subr.mxu0 0.0
    %2234 = vmatpush2.msra.mxu0 0.0
    %2235 = vmatprep.subr.mxu0 0.0
    %2236 = vmatpush2.msra.mxu0 0.0
    %2237 = vmatprep.subr.mxu0 0.0
    %2238 = vmatpush2.msra.mxu0 0.0
    %2239 = vmatprep.subr.mxu0 0.0
    %2240 = vmatpush2.msra.mxu0 0.0
    %2241 = vmatprep.subr.mxu0 0.0
    %2242 = vmatpush2.msra.mxu0 0.0
    %2243 = vmatprep.mubr.f32.mxu0 0.0
    %2244 = vmatmul.mubr.f32.gmra.mxu0 %v1278
    %v2245 = vpop.f32.mrf.mxu0
    %v2246 = vadd.f32 6.0, %v2245
    %v2247 = vpop.f32.mrf.mxu0
    %v2248 = vadd.f32 6.0, %v2247
    %2249 = vmatprep.mubr.f32.mxu0 0.0
    %2250 = vmatmul.mubr.f32.gmra.mxu0 %v1281
    %v2251 = vpop.f32.mrf.mxu0
    %v2252 = vadd.f32 6.0, %v2251
    %v2253 = vpop.f32.mrf.mxu0
    %v2254 = vadd.f32 6.0, %v2253
    %2255 = vmatprep.mubr.f32.mxu0 0.0
    %2256 = vmatmul.mubr.f32.gmra.mxu0 %v1284
    %v2257 = vpop.f32.mrf.mxu0
    %v2258 = vadd.f32 6.0, %v2257
    %v2259 = vpop.f32.mrf.mxu0
    %v2260 = vadd.f32 6.0, %v2259
    %2261 = vmatprep.mubr.f32.mxu0 0.0
    %2262 = vmatmul.mubr.f32.gmra.mxu0 %v1287
    %v2263 = vpop.f32.mrf.mxu0
    %v2264 = vadd.f32 6.0, %v2263
    %v2265 = vpop.f32.mrf.mxu0
    %v2266 = vadd.f32 6.0, %v2265
    %2267 = vdwg.mxu0
    %2268 = vmatprep.subr.mxu0 0.0
    %2269 = vmatpush1.msra.mxu0 0.0
    %2270 = vmatprep.subr.mxu0 0.0
    %2271 = vmatpush1.msra.mxu0 0.0
    %2272 = vmatprep.subr.mxu0 0.0
    %2273 = vmatpush1.msra.mxu0 0.0
    %2274 = vmatprep.subr.mxu0 0.0
    %2275 = vmatpush1.msra.mxu0 0.0
    %2276 = vmatprep.subr.mxu0 0.0
    %2277 = vmatpush1.msra.mxu0 0.0
    %2278 = vmatprep.subr.mxu0 0.0
    %2279 = vmatpush1.msra.mxu0 0.0
    %2280 = vmatprep.subr.mxu0 0.0
    %2281 = vmatpush1.msra.mxu0 0.0
    %2282 = vmatprep.subr.mxu0 0.0
    %2283 = vmatpush1.msra.mxu0 0.0
    %2284 = vmatprep.subr.mxu0 0.0
    %2285 = vmatpush1.msra.mxu0 0.0
    %2286 = vmatprep.subr.mxu0 0.0
    %2287 = vmatpush1.msra.mxu0 0.0
    %2288 = vmatprep.subr.mxu0 0.0
    %2289 = vmatpush1.msra.mxu0 0.0
    %2290 = vmatprep.subr.mxu0 0.0
    %2291 = vmatpush1.msra.mxu0 0.0
    %2292 = vmatprep.subr.mxu0 %v1267
    %2293 = vmatpush1.msra.mxu0 %v1266
    %2294 = vmatprep.subr.mxu0 %v1235
    %2295 = vmatpush1.msra.mxu0 %v1234
    %2296 = vmatprep.subr.mxu0 %v1203
    %2297 = vmatpush1.msra.mxu0 %v1202
    %2298 = vmatprep.subr.mxu0 %v1171
    %2299 = vmatpush1.msra.mxu0 %v1170
    %2300 = vmatprep.subr.mxu0 0.0
    %2301 = vmatpush2.msra.mxu0 0.0
    %2302 = vmatprep.subr.mxu0 0.0
    %2303 = vmatpush2.msra.mxu0 0.0
    %2304 = vmatprep.subr.mxu0 0.0
    %2305 = vmatpush2.msra.mxu0 0.0
    %2306 = vmatprep.subr.mxu0 0.0
    %2307 = vmatpush2.msra.mxu0 0.0
    %2308 = vmatprep.subr.mxu0 0.0
    %2309 = vmatpush2.msra.mxu0 0.0
    %2310 = vmatprep.subr.mxu0 0.0
    %2311 = vmatpush2.msra.mxu0 0.0
    %2312 = vmatprep.subr.mxu0 0.0
    %2313 = vmatpush2.msra.mxu0 0.0
    %2314 = vmatprep.subr.mxu0 0.0
    %2315 = vmatpush2.msra.mxu0 0.0
    %2316 = vmatprep.subr.mxu0 0.0
    %2317 = vmatpush2.msra.mxu0 0.0
    %2318 = vmatprep.subr.mxu0 0.0
    %2319 = vmatpush2.msra.mxu0 0.0
    %2320 = vmatprep.subr.mxu0 0.0
    %2321 = vmatpush2.msra.mxu0 0.0
    %2322 = vmatprep.subr.mxu0 0.0
    %2323 = vmatpush2.msra.mxu0 0.0
    %2324 = vmatprep.subr.mxu0 0.0
    %2325 = vmatpush2.msra.mxu0 0.0
    %2326 = vmatprep.subr.mxu0 0.0
    %2327 = vmatpush2.msra.mxu0 0.0
    %2328 = vmatprep.subr.mxu0 0.0
    %2329 = vmatpush2.msra.mxu0 0.0
    %2330 = vmatprep.subr.mxu0 0.0
    %2331 = vmatpush2.msra.mxu0 0.0
    %2332 = vmatprep.mubr.f32.mxu0 0.0
    %2333 = vmatmul.mubr.f32.gmra.mxu0 %v1278
    %v2334 = vpop.f32.mrf.mxu0
    %v2335 = vadd.f32 6.0, %v2334
    %v2336 = vpop.f32.mrf.mxu0
    %v2337 = vadd.f32 6.0, %v2336
    %2338 = vmatprep.mubr.f32.mxu0 0.0
    %2339 = vmatmul.mubr.f32.gmra.mxu0 %v1281
    %v2340 = vpop.f32.mrf.mxu0
    %v2341 = vadd.f32 6.0, %v2340
    %v2342 = vpop.f32.mrf.mxu0
    %v2343 = vadd.f32 6.0, %v2342
    %2344 = vmatprep.mubr.f32.mxu0 0.0
    %2345 = vmatmul.mubr.f32.gmra.mxu0 %v1284
    %v2346 = vpop.f32.mrf.mxu0
    %v2347 = vadd.f32 6.0, %v2346
    %v2348 = vpop.f32.mrf.mxu0
    %v2349 = vadd.f32 6.0, %v2348
    %2350 = vmatprep.mubr.f32.mxu0 0.0
    %2351 = vmatmul.mubr.f32.gmra.mxu0 %v1287
    %v2352 = vpop.f32.mrf.mxu0
    %v2353 = vadd.f32 6.0, %v2352
    %v2354 = vpop.f32.mrf.mxu0
    %v2355 = vadd.f32 6.0, %v2354
    %2356 = vdwg.mxu0
    %2357 = vmatprep.subr.mxu0 0.0
    %2358 = vmatpush1.msra.mxu0 0.0
    %2359 = vmatprep.subr.mxu0 0.0
    %2360 = vmatpush1.msra.mxu0 0.0
    %2361 = vmatprep.subr.mxu0 0.0
    %2362 = vmatpush1.msra.mxu0 0.0
    %2363 = vmatprep.subr.mxu0 0.0
    %2364 = vmatpush1.msra.mxu0 0.0
    %2365 = vmatprep.subr.mxu0 0.0
    %2366 = vmatpush1.msra.mxu0 0.0
    %2367 = vmatprep.subr.mxu0 0.0
    %2368 = vmatpush1.msra.mxu0 0.0
    %2369 = vmatprep.subr.mxu0 0.0
    %2370 = vmatpush1.msra.mxu0 0.0
    %2371 = vmatprep.subr.mxu0 0.0
    %2372 = vmatpush1.msra.mxu0 0.0
    %2373 = vmatprep.subr.mxu0 0.0
    %2374 = vmatpush1.msra.mxu0 0.0
    %2375 = vmatprep.subr.mxu0 0.0
    %2376 = vmatpush1.msra.mxu0 0.0
    %2377 = vmatprep.subr.mxu0 0.0
    %2378 = vmatpush1.msra.mxu0 0.0
    %2379 = vmatprep.subr.mxu0 0.0
    %2380 = vmatpush1.msra.mxu0 0.0
    %2381 = vmatprep.subr.mxu0 %v1269
    %2382 = vmatpush1.msra.mxu0 %v1268
    %2383 = vmatprep.subr.mxu0 %v1237
    %2384 = vmatpush1.msra.mxu0 %v1236
    %2385 = vmatprep.subr.mxu0 %v1205
    %2386 = vmatpush1.msra.mxu0 %v1204
    %2387 = vmatprep.subr.mxu0 %v1173
    %2388 = vmatpush1.msra.mxu0 %v1172
    %2389 = vmatprep.subr.mxu0 0.0
    %2390 = vmatpush2.msra.mxu0 0.0
    %2391 = vmatprep.subr.mxu0 0.0
    %2392 = vmatpush2.msra.mxu0 0.0
    %2393 = vmatprep.subr.mxu0 0.0
    %2394 = vmatpush2.msra.mxu0 0.0
    %2395 = vmatprep.subr.mxu0 0.0
    %2396 = vmatpush2.msra.mxu0 0.0
    %2397 = vmatprep.subr.mxu0 0.0
    %2398 = vmatpush2.msra.mxu0 0.0
    %2399 = vmatprep.subr.mxu0 0.0
    %2400 = vmatpush2.msra.mxu0 0.0
    %2401 = vmatprep.subr.mxu0 0.0
    %2402 = vmatpush2.msra.mxu0 0.0
    %2403 = vmatprep.subr.mxu0 0.0
    %2404 = vmatpush2.msra.mxu0 0.0
    %2405 = vmatprep.subr.mxu0 0.0
    %2406 = vmatpush2.msra.mxu0 0.0
    %2407 = vmatprep.subr.mxu0 0.0
    %2408 = vmatpush2.msra.mxu0 0.0
    %2409 = vmatprep.subr.mxu0 0.0
    %2410 = vmatpush2.msra.mxu0 0.0
    %2411 = vmatprep.subr.mxu0 0.0
    %2412 = vmatpush2.msra.mxu0 0.0
    %2413 = vmatprep.subr.mxu0 0.0
    %2414 = vmatpush2.msra.mxu0 0.0
    %2415 = vmatprep.subr.mxu0 0.0
    %2416 = vmatpush2.msra.mxu0 0.0
    %2417 = vmatprep.subr.mxu0 0.0
    %2418 = vmatpush2.msra.mxu0 0.0
    %2419 = vmatprep.subr.mxu0 0.0
    %2420 = vmatpush2.msra.mxu0 0.0
    %2421 = vmatprep.mubr.f32.mxu0 0.0
    %2422 = vmatmul.mubr.f32.gmra.mxu0 %v1278
    %v2423 = vpop.f32.mrf.mxu0
    %v2424 = vadd.f32 6.0, %v2423
    %v2425 = vpop.f32.mrf.mxu0
    %v2426 = vadd.f32 6.0, %v2425
    %2427 = vmatprep.mubr.f32.mxu0 0.0
    %2428 = vmatmul.mubr.f32.gmra.mxu0 %v1281
    %v2429 = vpop.f32.mrf.mxu0
    %v2430 = vadd.f32 6.0, %v2429
    %v2431 = vpop.f32.mrf.mxu0
    %v2432 = vadd.f32 6.0, %v2431
    %2433 = vmatprep.mubr.f32.mxu0 0.0
    %2434 = vmatmul.mubr.f32.gmra.mxu0 %v1284
    %v2435 = vpop.f32.mrf.mxu0
    %v2436 = vadd.f32 6.0, %v2435
    %v2437 = vpop.f32.mrf.mxu0
    %v2438 = vadd.f32 6.0, %v2437
    %2439 = vmatprep.mubr.f32.mxu0 0.0
    %2440 = vmatmul.mubr.f32.gmra.mxu0 %v1287
    %v2441 = vpop.f32.mrf.mxu0
    %v2442 = vadd.f32 6.0, %v2441
    %v2443 = vpop.f32.mrf.mxu0
    %v2444 = vadd.f32 6.0, %v2443
    %2445 = vdwg.mxu0
    %2446 = vmatprep.subr.mxu0 0.0
    %2447 = vmatpush1.msra.mxu0 0.0
    %2448 = vmatprep.subr.mxu0 0.0
    %2449 = vmatpush1.msra.mxu0 0.0
    %2450 = vmatprep.subr.mxu0 0.0
    %2451 = vmatpush1.msra.mxu0 0.0
    %2452 = vmatprep.subr.mxu0 0.0
    %2453 = vmatpush1.msra.mxu0 0.0
    %2454 = vmatprep.subr.mxu0 0.0
    %2455 = vmatpush1.msra.mxu0 0.0
    %2456 = vmatprep.subr.mxu0 0.0
    %2457 = vmatpush1.msra.mxu0 0.0
    %2458 = vmatprep.subr.mxu0 0.0
    %2459 = vmatpush1.msra.mxu0 0.0
    %2460 = vmatprep.subr.mxu0 0.0
    %2461 = vmatpush1.msra.mxu0 0.0
    %2462 = vmatprep.subr.mxu0 0.0
    %2463 = vmatpush1.msra.mxu0 0.0
    %2464 = vmatprep.subr.mxu0 0.0
    %2465 = vmatpush1.msra.mxu0 0.0
    %2466 = vmatprep.subr.mxu0 0.0
    %2467 = vmatpush1.msra.mxu0 0.0
    %2468 = vmatprep.subr.mxu0 0.0
    %2469 = vmatpush1.msra.mxu0 0.0
    %2470 = vmatprep.subr.mxu0 %v1271
    %2471 = vmatpush1.msra.mxu0 %v1270
    %2472 = vmatprep.subr.mxu0 %v1239
    %2473 = vmatpush1.msra.mxu0 %v1238
    %2474 = vmatprep.subr.mxu0 %v1207
    %2475 = vmatpush1.msra.mxu0 %v1206
    %2476 = vmatprep.subr.mxu0 %v1175
    %2477 = vmatpush1.msra.mxu0 %v1174
    %2478 = vmatprep.subr.mxu0 0.0
    %2479 = vmatpush2.msra.mxu0 0.0
    %2480 = vmatprep.subr.mxu0 0.0
    %2481 = vmatpush2.msra.mxu0 0.0
    %2482 = vmatprep.subr.mxu0 0.0
    %2483 = vmatpush2.msra.mxu0 0.0
    %2484 = vmatprep.subr.mxu0 0.0
    %2485 = vmatpush2.msra.mxu0 0.0
    %2486 = vmatprep.subr.mxu0 0.0
    %2487 = vmatpush2.msra.mxu0 0.0
    %2488 = vmatprep.subr.mxu0 0.0
    %2489 = vmatpush2.msra.mxu0 0.0
    %2490 = vmatprep.subr.mxu0 0.0
    %2491 = vmatpush2.msra.mxu0 0.0
    %2492 = vmatprep.subr.mxu0 0.0
    %2493 = vmatpush2.msra.mxu0 0.0
    %2494 = vmatprep.subr.mxu0 0.0
    %2495 = vmatpush2.msra.mxu0 0.0
    %2496 = vmatprep.subr.mxu0 0.0
    %2497 = vmatpush2.msra.mxu0 0.0
    %2498 = vmatprep.subr.mxu0 0.0
    %2499 = vmatpush2.msra.mxu0 0.0
    %2500 = vmatprep.subr.mxu0 0.0
    %2501 = vmatpush2.msra.mxu0 0.0
    %2502 = vmatprep.subr.mxu0 0.0
    %2503 = vmatpush2.msra.mxu0 0.0
    %2504 = vmatprep.subr.mxu0 0.0
    %2505 = vmatpush2.msra.mxu0 0.0
    %2506 = vmatprep.subr.mxu0 0.0
    %2507 = vmatpush2.msra.mxu0 0.0
    %2508 = vmatprep.subr.mxu0 0.0
    %2509 = vmatpush2.msra.mxu0 0.0
    %2510 = vmatprep.mubr.f32.mxu0 0.0
    %2511 = vmatmul.mubr.f32.gmra.mxu0 %v1278
    %v2512 = vpop.f32.mrf.mxu0
    %v2513 = vadd.f32 6.0, %v2512
    %v2514 = vpop.f32.mrf.mxu0
    %v2515 = vadd.f32 6.0, %v2514
    %2516 = vmatprep.mubr.f32.mxu0 0.0
    %2517 = vmatmul.mubr.f32.gmra.mxu0 %v1281
    %v2518 = vpop.f32.mrf.mxu0
    %v2519 = vadd.f32 6.0, %v2518
    %v2520 = vpop.f32.mrf.mxu0
    %v2521 = vadd.f32 6.0, %v2520
    %2522 = vmatprep.mubr.f32.mxu0 0.0
    %2523 = vmatmul.mubr.f32.gmra.mxu0 %v1284
    %v2524 = vpop.f32.mrf.mxu0
    %v2525 = vadd.f32 6.0, %v2524
    %v2526 = vpop.f32.mrf.mxu0
    %v2527 = vadd.f32 6.0, %v2526
    %2528 = vmatprep.mubr.f32.mxu0 0.0
    %2529 = vmatmul.mubr.f32.gmra.mxu0 %v1287
    %v2530 = vpop.f32.mrf.mxu0
    %v2531 = vadd.f32 6.0, %v2530
    %v2532 = vpop.f32.mrf.mxu0
    %v2533 = vadd.f32 6.0, %v2532
    %2534 = vdwg.mxu0
    %2535 = vmatprep.subr.mxu0 0.0
    %2536 = vmatpush1.msra.mxu0 0.0
    %2537 = vmatprep.subr.mxu0 0.0
    %2538 = vmatpush1.msra.mxu0 0.0
    %2539 = vmatprep.subr.mxu0 0.0
    %2540 = vmatpush1.msra.mxu0 0.0
    %2541 = vmatprep.subr.mxu0 0.0
    %2542 = vmatpush1.msra.mxu0 0.0
    %2543 = vmatprep.subr.mxu0 0.0
    %2544 = vmatpush1.msra.mxu0 0.0
    %2545 = vmatprep.subr.mxu0 0.0
    %2546 = vmatpush1.msra.mxu0 0.0
    %2547 = vmatprep.subr.mxu0 0.0
    %2548 = vmatpush1.msra.mxu0 0.0
    %2549 = vmatprep.subr.mxu0 0.0
    %2550 = vmatpush1.msra.mxu0 0.0
    %2551 = vmatprep.subr.mxu0 0.0
    %2552 = vmatpush1.msra.mxu0 0.0
    %2553 = vmatprep.subr.mxu0 0.0
    %2554 = vmatpush1.msra.mxu0 0.0
    %2555 = vmatprep.subr.mxu0 0.0
    %2556 = vmatpush1.msra.mxu0 0.0
    %2557 = vmatprep.subr.mxu0 0.0
    %2558 = vmatpush1.msra.mxu0 0.0
    %2559 = vmatprep.subr.mxu0 %v1273
    %2560 = vmatpush1.msra.mxu0 %v1272
    %2561 = vmatprep.subr.mxu0 %v1241
    %2562 = vmatpush1.msra.mxu0 %v1240
    %2563 = vmatprep.subr.mxu0 %v1209
    %2564 = vmatpush1.msra.mxu0 %v1208
    %2565 = vmatprep.subr.mxu0 %v1177
    %2566 = vmatpush1.msra.mxu0 %v1176
    %2567 = vmatprep.subr.mxu0 0.0
    %2568 = vmatpush2.msra.mxu0 0.0
    %2569 = vmatprep.subr.mxu0 0.0
    %2570 = vmatpush2.msra.mxu0 0.0
    %2571 = vmatprep.subr.mxu0 0.0
    %2572 = vmatpush2.msra.mxu0 0.0
    %2573 = vmatprep.subr.mxu0 0.0
    %2574 = vmatpush2.msra.mxu0 0.0
    %2575 = vmatprep.subr.mxu0 0.0
    %2576 = vmatpush2.msra.mxu0 0.0
    %2577 = vmatprep.subr.mxu0 0.0
    %2578 = vmatpush2.msra.mxu0 0.0
    %2579 = vmatprep.subr.mxu0 0.0
    %2580 = vmatpush2.msra.mxu0 0.0
    %2581 = vmatprep.subr.mxu0 0.0
    %2582 = vmatpush2.msra.mxu0 0.0
    %2583 = vmatprep.subr.mxu0 0.0
    %2584 = vmatpush2.msra.mxu0 0.0
    %2585 = vmatprep.subr.mxu0 0.0
    %2586 = vmatpush2.msra.mxu0 0.0
    %2587 = vmatprep.subr.mxu0 0.0
    %2588 = vmatpush2.msra.mxu0 0.0
    %2589 = vmatprep.subr.mxu0 0.0
    %2590 = vmatpush2.msra.mxu0 0.0
    %2591 = vmatprep.subr.mxu0 0.0
    %2592 = vmatpush2.msra.mxu0 0.0
    %2593 = vmatprep.subr.mxu0 0.0
    %2594 = vmatpush2.msra.mxu0 0.0
    %2595 = vmatprep.subr.mxu0 0.0
    %2596 = vmatpush2.msra.mxu0 0.0
    %2597 = vmatprep.subr.mxu0 0.0
    %2598 = vmatpush2.msra.mxu0 0.0
    %2599 = vmatprep.mubr.f32.mxu0 0.0
    %2600 = vmatmul.mubr.f32.gmra.mxu0 %v1278
    %v2601 = vpop.f32.mrf.mxu0
    %v2602 = vadd.f32 6.0, %v2601
    %v2603 = vpop.f32.mrf.mxu0
    %v2604 = vadd.f32 6.0, %v2603
    %2605 = vmatprep.mubr.f32.mxu0 0.0
    %2606 = vmatmul.mubr.f32.gmra.mxu0 %v1281
    %v2607 = vpop.f32.mrf.mxu0
    %v2608 = vadd.f32 6.0, %v2607
    %v2609 = vpop.f32.mrf.mxu0
    %v2610 = vadd.f32 6.0, %v2609
    %2611 = vmatprep.mubr.f32.mxu0 0.0
    %2612 = vmatmul.mubr.f32.gmra.mxu0 %v1284
    %v2613 = vpop.f32.mrf.mxu0
    %v2614 = vadd.f32 6.0, %v2613
    %v2615 = vpop.f32.mrf.mxu0
    %v2616 = vadd.f32 6.0, %v2615
    %2617 = vmatprep.mubr.f32.mxu0 0.0
    %2618 = vmatmul.mubr.f32.gmra.mxu0 %v1287
    %v2619 = vpop.f32.mrf.mxu0
    %v2620 = vadd.f32 6.0, %v2619
    %v2621 = vpop.f32.mrf.mxu0
    %v2622 = vadd.f32 6.0, %v2621
    %2623 = vdwg.mxu0
    %2624 = vmatprep.subr.mxu0 0.0
    %2625 = vmatpush1.msra.mxu0 0.0
    %2626 = vmatprep.subr.mxu0 0.0
    %2627 = vmatpush1.msra.mxu0 0.0
    %2628 = vmatprep.subr.mxu0 0.0
    %2629 = vmatpush1.msra.mxu0 0.0
    %2630 = vmatprep.subr.mxu0 0.0
    %2631 = vmatpush1.msra.mxu0 0.0
    %2632 = vmatprep.subr.mxu0 0.0
    %2633 = vmatpush1.msra.mxu0 0.0
    %2634 = vmatprep.subr.mxu0 0.0
    %2635 = vmatpush1.msra.mxu0 0.0
    %2636 = vmatprep.subr.mxu0 0.0
    %2637 = vmatpush1.msra.mxu0 0.0
    %2638 = vmatprep.subr.mxu0 0.0
    %2639 = vmatpush1.msra.mxu0 0.0
    %2640 = vmatprep.subr.mxu0 0.0
    %2641 = vmatpush1.msra.mxu0 0.0
    %2642 = vmatprep.subr.mxu0 0.0
    %2643 = vmatpush1.msra.mxu0 0.0
    %2644 = vmatprep.subr.mxu0 0.0
    %2645 = vmatpush1.msra.mxu0 0.0
    %2646 = vmatprep.subr.mxu0 0.0
    %2647 = vmatpush1.msra.mxu0 0.0
    %2648 = vmatprep.subr.mxu0 %v1275
    %2649 = vmatpush1.msra.mxu0 %v1274
    %2650 = vmatprep.subr.mxu0 %v1243
    %2651 = vmatpush1.msra.mxu0 %v1242
    %2652 = vmatprep.subr.mxu0 %v1211
    %2653 = vmatpush1.msra.mxu0 %v1210
    %2654 = vmatprep.subr.mxu0 %v1179
    %2655 = vmatpush1.msra.mxu0 %v1178
    %2656 = vmatprep.subr.mxu0 0.0
    %2657 = vmatpush2.msra.mxu0 0.0
    %2658 = vmatprep.subr.mxu0 0.0
    %2659 = vmatpush2.msra.mxu0 0.0
    %2660 = vmatprep.subr.mxu0 0.0
    %2661 = vmatpush2.msra.mxu0 0.0
    %2662 = vmatprep.subr.mxu0 0.0
    %2663 = vmatpush2.msra.mxu0 0.0
    %2664 = vmatprep.subr.mxu0 0.0
    %2665 = vmatpush2.msra.mxu0 0.0
    %2666 = vmatprep.subr.mxu0 0.0
    %2667 = vmatpush2.msra.mxu0 0.0
    %2668 = vmatprep.subr.mxu0 0.0
    %2669 = vmatpush2.msra.mxu0 0.0
    %2670 = vmatprep.subr.mxu0 0.0
    %2671 = vmatpush2.msra.mxu0 0.0
    %2672 = vmatprep.subr.mxu0 0.0
    %2673 = vmatpush2.msra.mxu0 0.0
    %2674 = vmatprep.subr.mxu0 0.0
    %2675 = vmatpush2.msra.mxu0 0.0
    %2676 = vmatprep.subr.mxu0 0.0
    %2677 = vmatpush2.msra.mxu0 0.0
    %2678 = vmatprep.subr.mxu0 0.0
    %2679 = vmatpush2.msra.mxu0 0.0
    %2680 = vmatprep.subr.mxu0 0.0
    %2681 = vmatpush2.msra.mxu0 0.0
    %2682 = vmatprep.subr.mxu0 0.0
    %2683 = vmatpush2.msra.mxu0 0.0
    %2684 = vmatprep.subr.mxu0 0.0
    %2685 = vmatpush2.msra.mxu0 0.0
    %2686 = vmatprep.subr.mxu0 0.0
    %2687 = vmatpush2.msra.mxu0 0.0
    %2688 = vmatprep.mubr.f32.mxu0 0.0
    %2689 = vmatmul.mubr.f32.gmra.mxu0 %v1278
    %v2690 = vpop.f32.mrf.mxu0
    %v2691 = vadd.f32 6.0, %v2690
    %v2692 = vpop.f32.mrf.mxu0
    %v2693 = vadd.f32 6.0, %v2692
    %2694 = vmatprep.mubr.f32.mxu0 0.0
    %2695 = vmatmul.mubr.f32.gmra.mxu0 %v1281
    %v2696 = vpop.f32.mrf.mxu0
    %v2697 = vadd.f32 6.0, %v2696
    %v2698 = vpop.f32.mrf.mxu0
    %v2699 = vadd.f32 6.0, %v2698
    %2700 = vmatprep.mubr.f32.mxu0 0.0
    %2701 = vmatmul.mubr.f32.gmra.mxu0 %v1284
    %v2702 = vpop.f32.mrf.mxu0
    %v2703 = vadd.f32 6.0, %v2702
    %v2704 = vpop.f32.mrf.mxu0
    %v2705 = vadd.f32 6.0, %v2704
    %2706 = vmatprep.mubr.f32.mxu0 0.0
    %2707 = vmatmul.mubr.f32.gmra.mxu0 %v1287
    %v2708 = vpop.f32.mrf.mxu0
    %v2709 = vadd.f32 6.0, %v2708
    %v2710 = vpop.f32.mrf.mxu0
    %v2711 = vadd.f32 6.0, %v2710
    %2712 = vdwg.mxu0
    %v2713 = vmax.f32 %v1356, 0.0
    %v2714 = vmax.f32 %v1358, 0.0
    %v2715 = vmax.f32 %v1445, 0.0
    %v2716 = vmax.f32 %v1447, 0.0
    %v2717 = vmax.f32 %v1534, 0.0
    %v2718 = vmax.f32 %v1536, 0.0
    %v2719 = vmax.f32 %v1623, 0.0
    %v2720 = vmax.f32 %v1625, 0.0
    %v2721 = vmax.f32 %v1712, 0.0
    %v2722 = vmax.f32 %v1714, 0.0
    %v2723 = vmax.f32 %v1801, 0.0
    %v2724 = vmax.f32 %v1803, 0.0
    %v2725 = vmax.f32 %v1890, 0.0
    %v2726 = vmax.f32 %v1892, 0.0
    %v2727 = vmax.f32 %v1979, 0.0
    %v2728 = vmax.f32 %v1981, 0.0
    %v2729 = vmax.f32 %v2068, 0.0
    %v2730 = vmax.f32 %v2070, 0.0
    %v2731 = vmax.f32 %v2157, 0.0
    %v2732 = vmax.f32 %v2159, 0.0
    %v2733 = vmax.f32 %v2246, 0.0
    %v2734 = vmax.f32 %v2248, 0.0
    %v2735 = vmax.f32 %v2335, 0.0
    %v2736 = vmax.f32 %v2337, 0.0
    %v2737 = vmax.f32 %v2424, 0.0
    %v2738 = vmax.f32 %v2426, 0.0
    %v2739 = vmax.f32 %v2513, 0.0
    %v2740 = vmax.f32 %v2515, 0.0
    %v2741 = vmax.f32 %v2602, 0.0
    %v2742 = vmax.f32 %v2604, 0.0
    %v2743 = vmax.f32 %v2691, 0.0
    %v2744 = vmax.f32 %v2693, 0.0
    %v2745 = vmax.f32 %v1362, 0.0
    %v2746 = vmax.f32 %v1364, 0.0
    %v2747 = vmax.f32 %v1451, 0.0
    %v2748 = vmax.f32 %v1453, 0.0
    %v2749 = vmax.f32 %v1540, 0.0
    %v2750 = vmax.f32 %v1542, 0.0
    %v2751 = vmax.f32 %v1629, 0.0
    %v2752 = vmax.f32 %v1631, 0.0
    %v2753 = vmax.f32 %v1718, 0.0
    %v2754 = vmax.f32 %v1720, 0.0
    %v2755 = vmax.f32 %v1807, 0.0
    %v2756 = vmax.f32 %v1809, 0.0
    %v2757 = vmax.f32 %v1896, 0.0
    %v2758 = vmax.f32 %v1898, 0.0
    %v2759 = vmax.f32 %v1985, 0.0
    %v2760 = vmax.f32 %v1987, 0.0
    %v2761 = vmax.f32 %v2074, 0.0
    %v2762 = vmax.f32 %v2076, 0.0
    %v2763 = vmax.f32 %v2163, 0.0
    %v2764 = vmax.f32 %v2165, 0.0
    %v2765 = vmax.f32 %v2252, 0.0
    %v2766 = vmax.f32 %v2254, 0.0
    %v2767 = vmax.f32 %v2341, 0.0
    %v2768 = vmax.f32 %v2343, 0.0
    %v2769 = vmax.f32 %v2430, 0.0
    %v2770 = vmax.f32 %v2432, 0.0
    %v2771 = vmax.f32 %v2519, 0.0
    %v2772 = vmax.f32 %v2521, 0.0
    %v2773 = vmax.f32 %v2608, 0.0
    %v2774 = vmax.f32 %v2610, 0.0
    %v2775 = vmax.f32 %v2697, 0.0
    %v2776 = vmax.f32 %v2699, 0.0
    %v2777 = vmax.f32 %v1368, 0.0
    %v2778 = vmax.f32 %v1370, 0.0
    %v2779 = vmax.f32 %v1457, 0.0
    %v2780 = vmax.f32 %v1459, 0.0
    %v2781 = vmax.f32 %v1546, 0.0
    %v2782 = vmax.f32 %v1548, 0.0
    %v2783 = vmax.f32 %v1635, 0.0
    %v2784 = vmax.f32 %v1637, 0.0
    %v2785 = vmax.f32 %v1724, 0.0
    %v2786 = vmax.f32 %v1726, 0.0
    %v2787 = vmax.f32 %v1813, 0.0
    %v2788 = vmax.f32 %v1815, 0.0
    %v2789 = vmax.f32 %v1902, 0.0
    %v2790 = vmax.f32 %v1904, 0.0
    %v2791 = vmax.f32 %v1991, 0.0
    %v2792 = vmax.f32 %v1993, 0.0
    %v2793 = vmax.f32 %v2080, 0.0
    %v2794 = vmax.f32 %v2082, 0.0
    %v2795 = vmax.f32 %v2169, 0.0
    %v2796 = vmax.f32 %v2171, 0.0
    %v2797 = vmax.f32 %v2258, 0.0
    %v2798 = vmax.f32 %v2260, 0.0
    %v2799 = vmax.f32 %v2347, 0.0
    %v2800 = vmax.f32 %v2349, 0.0
    %v2801 = vmax.f32 %v2436, 0.0
    %v2802 = vmax.f32 %v2438, 0.0
    %v2803 = vmax.f32 %v2525, 0.0
    %v2804 = vmax.f32 %v2527, 0.0
    %v2805 = vmax.f32 %v2614, 0.0
    %v2806 = vmax.f32 %v2616, 0.0
    %v2807 = vmax.f32 %v2703, 0.0
    %v2808 = vmax.f32 %v2705, 0.0
    %v2809 = vmax.f32 %v1374, 0.0
    %v2810 = vmax.f32 %v1376, 0.0
    %v2811 = vmax.f32 %v1463, 0.0
    %v2812 = vmax.f32 %v1465, 0.0
    %v2813 = vmax.f32 %v1552, 0.0
    %v2814 = vmax.f32 %v1554, 0.0
    %v2815 = vmax.f32 %v1641, 0.0
    %v2816 = vmax.f32 %v1643, 0.0
    %v2817 = vmax.f32 %v1730, 0.0
    %v2818 = vmax.f32 %v1732, 0.0
    %v2819 = vmax.f32 %v1819, 0.0
    %v2820 = vmax.f32 %v1821, 0.0
    %v2821 = vmax.f32 %v1908, 0.0
    %v2822 = vmax.f32 %v1910, 0.0
    %v2823 = vmax.f32 %v1997, 0.0
    %v2824 = vmax.f32 %v1999, 0.0
    %v2825 = vmax.f32 %v2086, 0.0
    %v2826 = vmax.f32 %v2088, 0.0
    %v2827 = vmax.f32 %v2175, 0.0
    %v2828 = vmax.f32 %v2177, 0.0
    %v2829 = vmax.f32 %v2264, 0.0
    %v2830 = vmax.f32 %v2266, 0.0
    %v2831 = vmax.f32 %v2353, 0.0
    %v2832 = vmax.f32 %v2355, 0.0
    %v2833 = vmax.f32 %v2442, 0.0
    %v2834 = vmax.f32 %v2444, 0.0
    %v2835 = vmax.f32 %v2531, 0.0
    %v2836 = vmax.f32 %v2533, 0.0
    %v2837 = vmax.f32 %v2620, 0.0
    %v2838 = vmax.f32 %v2622, 0.0
    %v2839 = vmax.f32 %v2709, 0.0
    %v2840 = vmax.f32 %v2711, 0.0
    %v2841 = vmin.f32 %v2713, 6.0
    %v2842 = vmin.f32 %v2714, 6.0
    %v2843 = vmin.f32 %v2715, 6.0
    %v2844 = vmin.f32 %v2716, 6.0
    %v2845 = vmin.f32 %v2717, 6.0
    %v2846 = vmin.f32 %v2718, 6.0
    %v2847 = vmin.f32 %v2719, 6.0
    %v2848 = vmin.f32 %v2720, 6.0
    %v2849 = vmin.f32 %v2721, 6.0
    %v2850 = vmin.f32 %v2722, 6.0
    %v2851 = vmin.f32 %v2723, 6.0
    %v2852 = vmin.f32 %v2724, 6.0
    %v2853 = vmin.f32 %v2725, 6.0
    %v2854 = vmin.f32 %v2726, 6.0
    %v2855 = vmin.f32 %v2727, 6.0
    %v2856 = vmin.f32 %v2728, 6.0
    %v2857 = vmin.f32 %v2729, 6.0
    %v2858 = vmin.f32 %v2730, 6.0
    %v2859 = vmin.f32 %v2731, 6.0
    %v2860 = vmin.f32 %v2732, 6.0
    %v2861 = vmin.f32 %v2733, 6.0
    %v2862 = vmin.f32 %v2734, 6.0
    %v2863 = vmin.f32 %v2735, 6.0
    %v2864 = vmin.f32 %v2736, 6.0
    %v2865 = vmin.f32 %v2737, 6.0
    %v2866 = vmin.f32 %v2738, 6.0
    %v2867 = vmin.f32 %v2739, 6.0
    %v2868 = vmin.f32 %v2740, 6.0
    %v2869 = vmin.f32 %v2741, 6.0
    %v2870 = vmin.f32 %v2742, 6.0
    %v2871 = vmin.f32 %v2743, 6.0
    %v2872 = vmin.f32 %v2744, 6.0
    %v2873 = vmin.f32 %v2745, 6.0
    %v2874 = vmin.f32 %v2746, 6.0
    %v2875 = vmin.f32 %v2747, 6.0
    %v2876 = vmin.f32 %v2748, 6.0
    %v2877 = vmin.f32 %v2749, 6.0
    %v2878 = vmin.f32 %v2750, 6.0
    %v2879 = vmin.f32 %v2751, 6.0
    %v2880 = vmin.f32 %v2752, 6.0
    %v2881 = vmin.f32 %v2753, 6.0
    %v2882 = vmin.f32 %v2754, 6.0
    %v2883 = vmin.f32 %v2755, 6.0
    %v2884 = vmin.f32 %v2756, 6.0
    %v2885 = vmin.f32 %v2757, 6.0
    %v2886 = vmin.f32 %v2758, 6.0
    %v2887 = vmin.f32 %v2759, 6.0
    %v2888 = vmin.f32 %v2760, 6.0
    %v2889 = vmin.f32 %v2761, 6.0
    %v2890 = vmin.f32 %v2762, 6.0
    %v2891 = vmin.f32 %v2763, 6.0
    %v2892 = vmin.f32 %v2764, 6.0
    %v2893 = vmin.f32 %v2765, 6.0
    %v2894 = vmin.f32 %v2766, 6.0
    %v2895 = vmin.f32 %v2767, 6.0
    %v2896 = vmin.f32 %v2768, 6.0
    %v2897 = vmin.f32 %v2769, 6.0
    %v2898 = vmin.f32 %v2770, 6.0
    %v2899 = vmin.f32 %v2771, 6.0
    %v2900 = vmin.f32 %v2772, 6.0
    %v2901 = vmin.f32 %v2773, 6.0
    %v2902 = vmin.f32 %v2774, 6.0
    %v2903 = vmin.f32 %v2775, 6.0
    %v2904 = vmin.f32 %v2776, 6.0
    %v2905 = vmin.f32 %v2777, 6.0
    %v2906 = vmin.f32 %v2778, 6.0
    %v2907 = vmin.f32 %v2779, 6.0
    %v2908 = vmin.f32 %v2780, 6.0
    %v2909 = vmin.f32 %v2781, 6.0
    %v2910 = vmin.f32 %v2782, 6.0
    %v2911 = vmin.f32 %v2783, 6.0
    %v2912 = vmin.f32 %v2784, 6.0
    %v2913 = vmin.f32 %v2785, 6.0
    %v2914 = vmin.f32 %v2786, 6.0
    %v2915 = vmin.f32 %v2787, 6.0
    %v2916 = vmin.f32 %v2788, 6.0
    %v2917 = vmin.f32 %v2789, 6.0
    %v2918 = vmin.f32 %v2790, 6.0
    %v2919 = vmin.f32 %v2791, 6.0
    %v2920 = vmin.f32 %v2792, 6.0
    %v2921 = vmin.f32 %v2793, 6.0
    %v2922 = vmin.f32 %v2794, 6.0
    %v2923 = vmin.f32 %v2795, 6.0
    %v2924 = vmin.f32 %v2796, 6.0
    %v2925 = vmin.f32 %v2797, 6.0
    %v2926 = vmin.f32 %v2798, 6.0
    %v2927 = vmin.f32 %v2799, 6.0
    %v2928 = vmin.f32 %v2800, 6.0
    %v2929 = vmin.f32 %v2801, 6.0
    %v2930 = vmin.f32 %v2802, 6.0
    %v2931 = vmin.f32 %v2803, 6.0
    %v2932 = vmin.f32 %v2804, 6.0
    %v2933 = vmin.f32 %v2805, 6.0
    %v2934 = vmin.f32 %v2806, 6.0
    %v2935 = vmin.f32 %v2807, 6.0
    %v2936 = vmin.f32 %v2808, 6.0
    %v2937 = vmin.f32 %v2809, 6.0
    %v2938 = vmin.f32 %v2810, 6.0
    %v2939 = vmin.f32 %v2811, 6.0
    %v2940 = vmin.f32 %v2812, 6.0
    %v2941 = vmin.f32 %v2813, 6.0
    %v2942 = vmin.f32 %v2814, 6.0
    %v2943 = vmin.f32 %v2815, 6.0
    %v2944 = vmin.f32 %v2816, 6.0
    %v2945 = vmin.f32 %v2817, 6.0
    %v2946 = vmin.f32 %v2818, 6.0
    %v2947 = vmin.f32 %v2819, 6.0
    %v2948 = vmin.f32 %v2820, 6.0
    %v2949 = vmin.f32 %v2821, 6.0
    %v2950 = vmin.f32 %v2822, 6.0
    %v2951 = vmin.f32 %v2823, 6.0
    %v2952 = vmin.f32 %v2824, 6.0
    %v2953 = vmin.f32 %v2825, 6.0
    %v2954 = vmin.f32 %v2826, 6.0
    %v2955 = vmin.f32 %v2827, 6.0
    %v2956 = vmin.f32 %v2828, 6.0
    %v2957 = vmin.f32 %v2829, 6.0
    %v2958 = vmin.f32 %v2830, 6.0
    %v2959 = vmin.f32 %v2831, 6.0
    %v2960 = vmin.f32 %v2832, 6.0
    %v2961 = vmin.f32 %v2833, 6.0
    %v2962 = vmin.f32 %v2834, 6.0
    %v2963 = vmin.f32 %v2835, 6.0
    %v2964 = vmin.f32 %v2836, 6.0
    %v2965 = vmin.f32 %v2837, 6.0
    %v2966 = vmin.f32 %v2838, 6.0
    %v2967 = vmin.f32 %v2839, 6.0
    %v2968 = vmin.f32 %v2840, 6.0
    %v2969 = vmul.f32 %v2841, 0.16666667
    %v2970 = vmul.f32 %v2842, 0.16666667
    %v2971 = vmul.f32 %v2843, 0.16666667
    %v2972 = vmul.f32 %v2844, 0.16666667
    %v2973 = vmul.f32 %v2845, 0.16666667
    %v2974 = vmul.f32 %v2846, 0.16666667
    %v2975 = vmul.f32 %v2847, 0.16666667
    %v2976 = vmul.f32 %v2848, 0.16666667
    %v2977 = vmul.f32 %v2849, 0.16666667
    %v2978 = vmul.f32 %v2850, 0.16666667
    %v2979 = vmul.f32 %v2851, 0.16666667
    %v2980 = vmul.f32 %v2852, 0.16666667
    %v2981 = vmul.f32 %v2853, 0.16666667
    %v2982 = vmul.f32 %v2854, 0.16666667
    %v2983 = vmul.f32 %v2855, 0.16666667
    %v2984 = vmul.f32 %v2856, 0.16666667
    %v2985 = vmul.f32 %v2857, 0.16666667
    %v2986 = vmul.f32 %v2858, 0.16666667
    %v2987 = vmul.f32 %v2859, 0.16666667
    %v2988 = vmul.f32 %v2860, 0.16666667
    %v2989 = vmul.f32 %v2861, 0.16666667
    %v2990 = vmul.f32 %v2862, 0.16666667
    %v2991 = vmul.f32 %v2863, 0.16666667
    %v2992 = vmul.f32 %v2864, 0.16666667
    %v2993 = vmul.f32 %v2865, 0.16666667
    %v2994 = vmul.f32 %v2866, 0.16666667
    %v2995 = vmul.f32 %v2867, 0.16666667
    %v2996 = vmul.f32 %v2868, 0.16666667
    %v2997 = vmul.f32 %v2869, 0.16666667
    %v2998 = vmul.f32 %v2870, 0.16666667
    %v2999 = vmul.f32 %v2871, 0.16666667
    %v3000 = vmul.f32 %v2872, 0.16666667
    %v3001 = vmul.f32 %v2873, 0.16666667
    %v3002 = vmul.f32 %v2874, 0.16666667
    %v3003 = vmul.f32 %v2875, 0.16666667
    %v3004 = vmul.f32 %v2876, 0.16666667
    %v3005 = vmul.f32 %v2877, 0.16666667
    %v3006 = vmul.f32 %v2878, 0.16666667
    %v3007 = vmul.f32 %v2879, 0.16666667
    %v3008 = vmul.f32 %v2880, 0.16666667
    %v3009 = vmul.f32 %v2881, 0.16666667
    %v3010 = vmul.f32 %v2882, 0.16666667
    %v3011 = vmul.f32 %v2883, 0.16666667
    %v3012 = vmul.f32 %v2884, 0.16666667
    %v3013 = vmul.f32 %v2885, 0.16666667
    %v3014 = vmul.f32 %v2886, 0.16666667
    %v3015 = vmul.f32 %v2887, 0.16666667
    %v3016 = vmul.f32 %v2888, 0.16666667
    %v3017 = vmul.f32 %v2889, 0.16666667
    %v3018 = vmul.f32 %v2890, 0.16666667
    %v3019 = vmul.f32 %v2891, 0.16666667
    %v3020 = vmul.f32 %v2892, 0.16666667
    %v3021 = vmul.f32 %v2893, 0.16666667
    %v3022 = vmul.f32 %v2894, 0.16666667
    %v3023 = vmul.f32 %v2895, 0.16666667
    %v3024 = vmul.f32 %v2896, 0.16666667
    %v3025 = vmul.f32 %v2897, 0.16666667
    %v3026 = vmul.f32 %v2898, 0.16666667
    %v3027 = vmul.f32 %v2899, 0.16666667
    %v3028 = vmul.f32 %v2900, 0.16666667
    %v3029 = vmul.f32 %v2901, 0.16666667
    %v3030 = vmul.f32 %v2902, 0.16666667
    %v3031 = vmul.f32 %v2903, 0.16666667
    %v3032 = vmul.f32 %v2904, 0.16666667
    %v3033 = vmul.f32 %v2905, 0.16666667
    %v3034 = vmul.f32 %v2906, 0.16666667
    %v3035 = vmul.f32 %v2907, 0.16666667
    %v3036 = vmul.f32 %v2908, 0.16666667
    %v3037 = vmul.f32 %v2909, 0.16666667
    %v3038 = vmul.f32 %v2910, 0.16666667
    %v3039 = vmul.f32 %v2911, 0.16666667
    %v3040 = vmul.f32 %v2912, 0.16666667
    %v3041 = vmul.f32 %v2913, 0.16666667
    %v3042 = vmul.f32 %v2914, 0.16666667
    %v3043 = vmul.f32 %v2915, 0.16666667
    %v3044 = vmul.f32 %v2916, 0.16666667
    %v3045 = vmul.f32 %v2917, 0.16666667
    %v3046 = vmul.f32 %v2918, 0.16666667
    %v3047 = vmul.f32 %v2919, 0.16666667
    %v3048 = vmul.f32 %v2920, 0.16666667
    %v3049 = vmul.f32 %v2921, 0.16666667
    %v3050 = vmul.f32 %v2922, 0.16666667
    %v3051 = vmul.f32 %v2923, 0.16666667
    %v3052 = vmul.f32 %v2924, 0.16666667
    %v3053 = vmul.f32 %v2925, 0.16666667
    %v3054 = vmul.f32 %v2926, 0.16666667
    %v3055 = vmul.f32 %v2927, 0.16666667
    %v3056 = vmul.f32 %v2928, 0.16666667
    %v3057 = vmul.f32 %v2929, 0.16666667
    %v3058 = vmul.f32 %v2930, 0.16666667
    %v3059 = vmul.f32 %v2931, 0.16666667
    %v3060 = vmul.f32 %v2932, 0.16666667
    %v3061 = vmul.f32 %v2933, 0.16666667
    %v3062 = vmul.f32 %v2934, 0.16666667
    %v3063 = vmul.f32 %v2935, 0.16666667
    %v3064 = vmul.f32 %v2936, 0.16666667
    %v3065 = vmul.f32 %v2937, 0.16666667
    %v3066 = vmul.f32 %v2938, 0.16666667
    %v3067 = vmul.f32 %v2939, 0.16666667
    %v3068 = vmul.f32 %v2940, 0.16666667
    %v3069 = vmul.f32 %v2941, 0.16666667
    %v3070 = vmul.f32 %v2942, 0.16666667
    %v3071 = vmul.f32 %v2943, 0.16666667
    %v3072 = vmul.f32 %v2944, 0.16666667
    %v3073 = vmul.f32 %v2945, 0.16666667
    %v3074 = vmul.f32 %v2946, 0.16666667
    %v3075 = vmul.f32 %v2947, 0.16666667
    %v3076 = vmul.f32 %v2948, 0.16666667
    %v3077 = vmul.f32 %v2949, 0.16666667
    %v3078 = vmul.f32 %v2950, 0.16666667
    %v3079 = vmul.f32 %v2951, 0.16666667
    %v3080 = vmul.f32 %v2952, 0.16666667
    %v3081 = vmul.f32 %v2953, 0.16666667
    %v3082 = vmul.f32 %v2954, 0.16666667
    %v3083 = vmul.f32 %v2955, 0.16666667
    %v3084 = vmul.f32 %v2956, 0.16666667
    %v3085 = vmul.f32 %v2957, 0.16666667
    %v3086 = vmul.f32 %v2958, 0.16666667
    %v3087 = vmul.f32 %v2959, 0.16666667
    %v3088 = vmul.f32 %v2960, 0.16666667
    %v3089 = vmul.f32 %v2961, 0.16666667
    %v3090 = vmul.f32 %v2962, 0.16666667
    %v3091 = vmul.f32 %v2963, 0.16666667
    %v3092 = vmul.f32 %v2964, 0.16666667
    %v3093 = vmul.f32 %v2965, 0.16666667
    %v3094 = vmul.f32 %v2966, 0.16666667
    %v3095 = vmul.f32 %v2967, 0.16666667
    %v3096 = vmul.f32 %v2968, 0.16666667
    %3097 = vst [vmem:[#allocation8] sm:$0xff] %v2969
    %3098 = vst [vmem:[#allocation8 + $0x8] sm:$0xff] %v2970
    %3099 = vst [vmem:[#allocation8 + $0x10] sm:$0xff] %v2971
    %3100 = vst [vmem:[#allocation8 + $0x18] sm:$0xff] %v2972
    %3101 = vst [vmem:[#allocation8 + $0x20] sm:$0xff] %v2973
    %3102 = vst [vmem:[#allocation8 + $0x28] sm:$0xff] %v2974
    %3103 = vst [vmem:[#allocation8 + $0x30] sm:$0xff] %v2975
    %3104 = vst [vmem:[#allocation8 + $0x38] sm:$0xff] %v2976
    %3105 = vst [vmem:[#allocation8 + $0x40] sm:$0xff] %v2977
    %3106 = vst [vmem:[#allocation8 + $0x48] sm:$0xff] %v2978
    %3107 = vst [vmem:[#allocation8 + $0x50] sm:$0xff] %v2979
    %3108 = vst [vmem:[#allocation8 + $0x58] sm:$0xff] %v2980
    %3109 = vst [vmem:[#allocation8 + $0x60] sm:$0xff] %v2981
    %3110 = vst [vmem:[#allocation8 + $0x68] sm:$0xff] %v2982
    %3111 = vst [vmem:[#allocation8 + $0x70] sm:$0xff] %v2983
    %3112 = vst [vmem:[#allocation8 + $0x78] sm:$0xff] %v2984
    %3113 = vst [vmem:[#allocation8 + $0x80] sm:$0xff] %v2985
    %3114 = vst [vmem:[#allocation8 + $0x88] sm:$0xff] %v2986
    %3115 = vst [vmem:[#allocation8 + $0x90] sm:$0xff] %v2987
    %3116 = vst [vmem:[#allocation8 + $0x98] sm:$0xff] %v2988
    %3117 = vst [vmem:[#allocation8 + $0xa0] sm:$0xff] %v2989
    %3118 = vst [vmem:[#allocation8 + $0xa8] sm:$0xff] %v2990
    %3119 = vst [vmem:[#allocation8 + $0xb0] sm:$0xff] %v2991
    %3120 = vst [vmem:[#allocation8 + $0xb8] sm:$0xff] %v2992
    %3121 = vst [vmem:[#allocation8 + $0xc0] sm:$0xff] %v2993
    %3122 = vst [vmem:[#allocation8 + $0xc8] sm:$0xff] %v2994
    %3123 = vst [vmem:[#allocation8 + $0xd0] sm:$0xff] %v2995
    %3124 = vst [vmem:[#allocation8 + $0xd8] sm:$0xff] %v2996
    %3125 = vst [vmem:[#allocation8 + $0xe0] sm:$0xff] %v2997
    %3126 = vst [vmem:[#allocation8 + $0xe8] sm:$0xff] %v2998
    %3127 = vst [vmem:[#allocation8 + $0xf0] sm:$0xff] %v2999
    %3128 = vst [vmem:[#allocation8 + $0xf8] sm:$0xff] %v3000
    %3129 = vst [vmem:[#allocation8 + $0x100] sm:$0xff] %v3001
    %3130 = vst [vmem:[#allocation8 + $0x108] sm:$0xff] %v3002
    %3131 = vst [vmem:[#allocation8 + $0x110] sm:$0xff] %v3003
    %3132 = vst [vmem:[#allocation8 + $0x118] sm:$0xff] %v3004
    %3133 = vst [vmem:[#allocation8 + $0x120] sm:$0xff] %v3005
    %3134 = vst [vmem:[#allocation8 + $0x128] sm:$0xff] %v3006
    %3135 = vst [vmem:[#allocation8 + $0x130] sm:$0xff] %v3007
    %3136 = vst [vmem:[#allocation8 + $0x138] sm:$0xff] %v3008
    %3137 = vst [vmem:[#allocation8 + $0x140] sm:$0xff] %v3009
    %3138 = vst [vmem:[#allocation8 + $0x148] sm:$0xff] %v3010
    %3139 = vst [vmem:[#allocation8 + $0x150] sm:$0xff] %v3011
    %3140 = vst [vmem:[#allocation8 + $0x158] sm:$0xff] %v3012
    %3141 = vst [vmem:[#allocation8 + $0x160] sm:$0xff] %v3013
    %3142 = vst [vmem:[#allocation8 + $0x168] sm:$0xff] %v3014
    %3143 = vst [vmem:[#allocation8 + $0x170] sm:$0xff] %v3015
    %3144 = vst [vmem:[#allocation8 + $0x178] sm:$0xff] %v3016
    %3145 = vst [vmem:[#allocation8 + $0x180] sm:$0xff] %v3017
    %3146 = vst [vmem:[#allocation8 + $0x188] sm:$0xff] %v3018
    %3147 = vst [vmem:[#allocation8 + $0x190] sm:$0xff] %v3019
    %3148 = vst [vmem:[#allocation8 + $0x198] sm:$0xff] %v3020
    %3149 = vst [vmem:[#allocation8 + $0x1a0] sm:$0xff] %v3021
    %3150 = vst [vmem:[#allocation8 + $0x1a8] sm:$0xff] %v3022
    %3151 = vst [vmem:[#allocation8 + $0x1b0] sm:$0xff] %v3023
    %3152 = vst [vmem:[#allocation8 + $0x1b8] sm:$0xff] %v3024
    %3153 = vst [vmem:[#allocation8 + $0x1c0] sm:$0xff] %v3025
    %3154 = vst [vmem:[#allocation8 + $0x1c8] sm:$0xff] %v3026
    %3155 = vst [vmem:[#allocation8 + $0x1d0] sm:$0xff] %v3027
    %3156 = vst [vmem:[#allocation8 + $0x1d8] sm:$0xff] %v3028
    %3157 = vst [vmem:[#allocation8 + $0x1e0] sm:$0xff] %v3029
    %3158 = vst [vmem:[#allocation8 + $0x1e8] sm:$0xff] %v3030
    %3159 = vst [vmem:[#allocation8 + $0x1f0] sm:$0xff] %v3031
    %3160 = vst [vmem:[#allocation8 + $0x1f8] sm:$0xff] %v3032
    %3161 = vst [vmem:[#allocation8 + $0x200] sm:$0xff] %v3033
    %3162 = vst [vmem:[#allocation8 + $0x208] sm:$0xff] %v3034
    %3163 = vst [vmem:[#allocation8 + $0x210] sm:$0xff] %v3035
    %3164 = vst [vmem:[#allocation8 + $0x218] sm:$0xff] %v3036
    %3165 = vst [vmem:[#allocation8 + $0x220] sm:$0xff] %v3037
    %3166 = vst [vmem:[#allocation8 + $0x228] sm:$0xff] %v3038
    %3167 = vst [vmem:[#allocation8 + $0x230] sm:$0xff] %v3039
    %3168 = vst [vmem:[#allocation8 + $0x238] sm:$0xff] %v3040
    %3169 = vst [vmem:[#allocation8 + $0x240] sm:$0xff] %v3041
    %3170 = vst [vmem:[#allocation8 + $0x248] sm:$0xff] %v3042
    %3171 = vst [vmem:[#allocation8 + $0x250] sm:$0xff] %v3043
    %3172 = vst [vmem:[#allocation8 + $0x258] sm:$0xff] %v3044
    %3173 = vst [vmem:[#allocation8 + $0x260] sm:$0xff] %v3045
    %3174 = vst [vmem:[#allocation8 + $0x268] sm:$0xff] %v3046
    %3175 = vst [vmem:[#allocation8 + $0x270] sm:$0xff] %v3047
    %3176 = vst [vmem:[#allocation8 + $0x278] sm:$0xff] %v3048
    %3177 = vst [vmem:[#allocation8 + $0x280] sm:$0xff] %v3049
    %3178 = vst [vmem:[#allocation8 + $0x288] sm:$0xff] %v3050
    %3179 = vst [vmem:[#allocation8 + $0x290] sm:$0xff] %v3051
    %3180 = vst [vmem:[#allocation8 + $0x298] sm:$0xff] %v3052
    %3181 = vst [vmem:[#allocation8 + $0x2a0] sm:$0xff] %v3053
    %3182 = vst [vmem:[#allocation8 + $0x2a8] sm:$0xff] %v3054
    %3183 = vst [vmem:[#allocation8 + $0x2b0] sm:$0xff] %v3055
    %3184 = vst [vmem:[#allocation8 + $0x2b8] sm:$0xff] %v3056
    %3185 = vst [vmem:[#allocation8 + $0x2c0] sm:$0xff] %v3057
    %3186 = vst [vmem:[#allocation8 + $0x2c8] sm:$0xff] %v3058
    %3187 = vst [vmem:[#allocation8 + $0x2d0] sm:$0xff] %v3059
    %3188 = vst [vmem:[#allocation8 + $0x2d8] sm:$0xff] %v3060
    %3189 = vst [vmem:[#allocation8 + $0x2e0] sm:$0xff] %v3061
    %3190 = vst [vmem:[#allocation8 + $0x2e8] sm:$0xff] %v3062
    %3191 = vst [vmem:[#allocation8 + $0x2f0] sm:$0xff] %v3063
    %3192 = vst [vmem:[#allocation8 + $0x2f8] sm:$0xff] %v3064
    %3193 = vst [vmem:[#allocation8 + $0x300] sm:$0xff] %v3065
    %3194 = vst [vmem:[#allocation8 + $0x308] sm:$0xff] %v3066
    %3195 = vst [vmem:[#allocation8 + $0x310] sm:$0xff] %v3067
    %3196 = vst [vmem:[#allocation8 + $0x318] sm:$0xff] %v3068
    %3197 = vst [vmem:[#allocation8 + $0x320] sm:$0xff] %v3069
    %3198 = vst [vmem:[#allocation8 + $0x328] sm:$0xff] %v3070
    %3199 = vst [vmem:[#allocation8 + $0x330] sm:$0xff] %v3071
    %3200 = vst [vmem:[#allocation8 + $0x338] sm:$0xff] %v3072
    %3201 = vst [vmem:[#allocation8 + $0x340] sm:$0xff] %v3073
    %3202 = vst [vmem:[#allocation8 + $0x348] sm:$0xff] %v3074
    %3203 = vst [vmem:[#allocation8 + $0x350] sm:$0xff] %v3075
    %3204 = vst [vmem:[#allocation8 + $0x358] sm:$0xff] %v3076
    %3205 = vst [vmem:[#allocation8 + $0x360] sm:$0xff] %v3077
    %3206 = vst [vmem:[#allocation8 + $0x368] sm:$0xff] %v3078
    %3207 = vst [vmem:[#allocation8 + $0x370] sm:$0xff] %v3079
    %3208 = vst [vmem:[#allocation8 + $0x378] sm:$0xff] %v3080
    %3209 = vst [vmem:[#allocation8 + $0x380] sm:$0xff] %v3081
    %3210 = vst [vmem:[#allocation8 + $0x388] sm:$0xff] %v3082
    %3211 = vst [vmem:[#allocation8 + $0x390] sm:$0xff] %v3083
    %3212 = vst [vmem:[#allocation8 + $0x398] sm:$0xff] %v3084
    %3213 = vst [vmem:[#allocation8 + $0x3a0] sm:$0xff] %v3085
    %3214 = vst [vmem:[#allocation8 + $0x3a8] sm:$0xff] %v3086
    %3215 = vst [vmem:[#allocation8 + $0x3b0] sm:$0xff] %v3087
    %3216 = vst [vmem:[#allocation8 + $0x3b8] sm:$0xff] %v3088
    %3217 = vst [vmem:[#allocation8 + $0x3c0] sm:$0xff] %v3089
    %3218 = vst [vmem:[#allocation8 + $0x3c8] sm:$0xff] %v3090
    %3219 = vst [vmem:[#allocation8 + $0x3d0] sm:$0xff] %v3091
    %3220 = vst [vmem:[#allocation8 + $0x3d8] sm:$0xff] %v3092
    %3221 = vst [vmem:[#allocation8 + $0x3e0] sm:$0xff] %v3093
    %3222 = vst [vmem:[#allocation8 + $0x3e8] sm:$0xff] %v3094
    %3223 = vst [vmem:[#allocation8 + $0x3f0] sm:$0xff] %v3095
    %3224 = vst [vmem:[#allocation8 + $0x3f8] sm:$0xff] %v3096
    // Predicated region
    $region18: #{tpu_custom_call.1} parent=1 // pred_check
      _
    $region19: #{tpu_custom_call.1} parent=1 // pred_check_branch
      %3226 = sbr.rel (0) target = $region21
    $region20: #{tpu_custom_call.1} parent=1 // pred_region
      %s3228 = ssub.s32 16384, 16384
      %3229 = vsyncadd [#allocation5], %s3228
      %s3230 = sshll.u32 [#allocation8], 4
      %s3231 = int_to_ptr.vmem [resolvable:$true] %s3230
      %3236 = dma.vmem_to_hbm [thread:$0]  %s3231, 16384, %s2, [#allocation5], 4096, 4096, 256
    $region21: #{tpu_custom_call.1} parent=1 // pred_fallthru
      _
    // Predicated region
    $region22: #{tpu_custom_call.1} parent=1 // pred_check
      _
    $region23: #{tpu_custom_call.1} parent=1 // pred_check_branch
      %3238 = sbr.rel (0) target = $region25
    $region24: #{tpu_custom_call.1} parent=1 // pred_region
      %3239 = dma.done [#allocation5], 16384
    $region25: #{tpu_custom_call.1} parent=1 // pred_fallthru
      _
    %3240 = vsyncpa [#allocation4], 1
    %3241 = vsyncpa [#allocation7], 1
    %3242 = vsyncpa [#allocation5], 1

</llo_original>
